<compile_context>
chip_gen: v7x
topology: tpu7x:2x2x1
jax: 0.10.0
libtpu: 0.0.40
codegen_flags: <defaults>
</compile_context>

<pallas_src>
import functools

import jax
import jax.numpy as jnp
import numpy as np
from jax.experimental import pallas as pl
from jax.experimental.pallas import tpu as pltpu

BN_EPS = 1e-5
_VMEM_LIMIT = 32 * 1024 * 1024          # explicit scoped-VMEM limit, safe on v5e/v6e/v7x


def _compiler_params(n_grid_axes):
    return pltpu.CompilerParams(
        dimension_semantics=("parallel",) * n_grid_axes,   # every grid axis is independent
        vmem_limit_bytes=_VMEM_LIMIT)


def _round_up(x, mult):
    return ((x + mult - 1) // mult) * mult


def _pick_row_tile(row_channels):
    """Rows-per-tile for the 1x1-conv stages (kept a multiple of 128 when possible)."""
    try:
        vmem = pltpu.get_tpu_info().vmem_capacity_bytes    # 64 MiB/TC on v7x, 128 MiB v5e/v6e
    except Exception:                                      # pragma: no cover
        vmem = 64 * 1024 * 1024
    budget = min(_VMEM_LIMIT, vmem // 4)                   # headroom for double buffering
    row_bytes = 4 * row_channels * 6                       # f32 in+out tiles, 2 buffers, slack
    tm = 256
    while tm > 8 and tm * row_bytes > budget:
        tm //= 2
    return tm


def _write_channel_stats(y_f32, st_ref):
    """One-pass per-channel (sum, sum_sq) of this tile's f32 conv output."""
    s = jnp.sum(y_f32, axis=0, keepdims=True)
    ss = jnp.sum(y_f32 * y_f32, axis=0, keepdims=True)
    st_ref[...] = jnp.concatenate([s, ss], axis=0)[None]   # (1, 2, C)


def _mm_and_stats(a_f32, w_ref, y_ref, st_ref):
    """bf16-operand MXU matmul with f32 accumulation + per-tile BN stats."""
    y = jnp.dot(a_f32.astype(jnp.bfloat16), w_ref[...],
                preferred_element_type=jnp.float32)
    y_ref[...] = y
    _write_channel_stats(y, st_ref)


def _bn_fold(st, count, gamma, beta):
    """Reduce per-tile partial stats and fold BN into a single scale/shift (f32)."""
    s = jnp.sum(st[:, 0, :], axis=0)
    ss = jnp.sum(st[:, 1, :], axis=0)
    mean = s / count
    var = ss / count - mean * mean          # biased variance (training-mode BN), f32
    inv = jax.lax.rsqrt(var + BN_EPS)
    scale = gamma.reshape(-1).astype(jnp.float32) * inv
    shift = beta.reshape(-1).astype(jnp.float32) - mean * scale
    return scale.reshape(1, -1), shift.reshape(1, -1)


# --------------------------------------------------------------------------- #
# Stage kernels
# --------------------------------------------------------------------------- #
def _conv1x1_stage(x2d, w_bf16, *, tm, scale=None, shift=None):
    """[optional fused BN-affine + ReLU] -> 1x1 conv (matmul) -> per-tile BN stats.

    Tiled over rows of the flattened (N*H*W, C) activation; the grid axis is
    fully parallel because statistics are emitted as per-tile partials.
    """
    m, cin = x2d.shape
    cout = w_bf16.shape[1]
    mp = _round_up(m, tm)
    nt = mp // tm
    xp = x2d if mp == m else jnp.pad(x2d, ((0, mp - m), (0, 0)))
    need_mask = (scale is not None) and (mp != m)   # padded rows must not pollute stats

    if scale is None:
        def kernel(x_ref, w_ref, y_ref, st_ref):
            _mm_and_stats(x_ref[...], w_ref, y_ref, st_ref)

        inputs = (xp, w_bf16)
        in_specs = [pl.BlockSpec((tm, cin), lambda i: (i, 0)),
                    pl.BlockSpec((cin, cout), lambda i: (0, 0))]
    else:
        def kernel(x_ref, sc_ref, sh_ref, w_ref, y_ref, st_ref):
            a = jnp.maximum(x_ref[...] * sc_ref[...] + sh_ref[...], 0.0)   # f32 VPU
            if need_mask:
                rid = (pl.program_id(0) * tm
                       + jax.lax.broadcasted_iota(jnp.int32, a.shape, 0))
                a = jnp.where(rid < m, a, 0.0)
            _mm_and_stats(a, w_ref, y_ref, st_ref)

        inputs = (xp, scale, shift, w_bf16)
        in_specs = [pl.BlockSpec((tm, cin), lambda i: (i, 0)),
                    pl.BlockSpec((1, cin), lambda i: (0, 0)),
                    pl.BlockSpec((1, cin), lambda i: (0, 0)),
                    pl.BlockSpec((cin, cout), lambda i: (0, 0))]

    y, st = pl.pallas_call(
        kernel,
        grid=(nt,),
        in_specs=in_specs,
        out_specs=(pl.BlockSpec((tm, cout), lambda i: (i, 0)),
                   pl.BlockSpec((1, 2, cout), lambda i: (i, 0, 0))),
        out_shape=(jax.ShapeDtypeStruct((mp, cout), jnp.float32),
                   jax.ShapeDtypeStruct((nt, 2, cout), jnp.float32)),
        compiler_params=_compiler_params(1),
    )(*inputs)
    return (y if mp == m else y[:m]), st


def _conv3x3_stats_kernel(d, h, w, p, h1_ref, sc_ref, sh_ref, w2_ref,
                          h2_ref, st_ref, pad_ref):
    """bn1-affine + ReLU + 3x3 dilated conv (single im2col matmul) + bn2 stats."""
    a = jnp.maximum(h1_ref[0] * sc_ref[...] + sh_ref[...], 0.0)      # (H, W, P) f32

    # Zero only the 2*d halo strips, and only once per kernel launch.
    @pl.when(pl.program_id(0) == 0)
    def _zero_halo():
        pad_ref[:d, :, :] = jnp.zeros((d, w + 2 * d, p), jnp.float32)
        pad_ref[d + h:, :, :] = jnp.zeros((d, w + 2 * d, p), jnp.float32)
        pad_ref[d:d + h, :d, :] = jnp.zeros((h, d, p), jnp.float32)
        pad_ref[d:d + h, d + w:, :] = jnp.zeros((h, d, p), jnp.float32)

    pad_ref[d:d + h, d:d + w, :] = a

    # im2col: one (H*W, 9P) x (9P, P) MXU matmul instead of nine K=P matmuls.
    cols = jnp.concatenate(
        [pad_ref[ky * d:ky * d + h, kx * d:kx * d + w, :].reshape(h * w, p)
         for ky in range(3) for kx in range(3)],
        axis=-1).astype(jnp.bfloat16)
    h2 = jnp.dot(cols, w2_ref[...], preferred_element_type=jnp.float32)

    h2_ref[...] = h2.reshape(1, h, w, p)
    _write_channel_stats(h2, st_ref)


def _conv2_stage(h1_nhwc, scale1, shift1, w2col_bf16, d):
    """Grid over batch images (one image's feature map is the natural conv tile)."""
    # TODO(synk): for very large H*W (DeepLab output stride 8), additionally tile
    #             over H rows with a 2*d-row halo (manual DMA) inside this stage.
    n, h, w, p = h1_nhwc.shape
    kern = functools.partial(_conv3x3_stats_kernel, d, h, w, p)
    h2, st = pl.pallas_call(
        kern,
        grid=(n,),
        in_specs=[pl.BlockSpec((1, h, w, p), lambda i: (i, 0, 0, 0)),
                  pl.BlockSpec((1, p), lambda i: (0, 0)),
                  pl.BlockSpec((1, p), lambda i: (0, 0)),
                  pl.BlockSpec((9 * p, p), lambda i: (0, 0))],
        out_specs=(pl.BlockSpec((1, h, w, p), lambda i: (i, 0, 0, 0)),
                   pl.BlockSpec((1, 2, p), lambda i: (i, 0, 0))),
        out_shape=(jax.ShapeDtypeStruct((n, h, w, p), jnp.float32),
                   jax.ShapeDtypeStruct((n, 2, p), jnp.float32)),
        scratch_shapes=[pltpu.VMEM((h + 2 * d, w + 2 * d, p), jnp.float32)],
        compiler_params=_compiler_params(1),
    )(h1_nhwc, scale1, shift1, w2col_bf16)
    return h2, st


def _bn_residual_relu_kernel(h_ref, x_ref, sc_ref, sh_ref, o_ref):
    y = h_ref[...] * sc_ref[...] + sh_ref[...]
    y = jnp.maximum(y + x_ref[...].astype(jnp.float32), 0.0)
    o_ref[...] = y.astype(o_ref.dtype)


def _bn_add_relu_stage(h3_2d, x2d, scale3, shift3, *, tm):
    m, c = x2d.shape
    mp = _round_up(m, tm)
    nt = mp // tm
    hp = h3_2d if mp == m else jnp.pad(h3_2d, ((0, mp - m), (0, 0)))
    xp = x2d if mp == m else jnp.pad(x2d, ((0, mp - m), (0, 0)))
    y = pl.pallas_call(
        _bn_residual_relu_kernel,
        grid=(nt,),
        in_specs=[pl.BlockSpec((tm, c), lambda i: (i, 0)),
                  pl.BlockSpec((tm, c), lambda i: (i, 0)),
                  pl.BlockSpec((1, c), lambda i: (0, 0)),
                  pl.BlockSpec((1, c), lambda i: (0, 0))],
        out_specs=pl.BlockSpec((tm, c), lambda i: (i, 0)),
        out_shape=jax.ShapeDtypeStruct((mp, c), jnp.float32),
        compiler_params=_compiler_params(1),
    )(hp, xp, scale3, shift3)
    return y if mp == m else y[:m]


# --------------------------------------------------------------------------- #
# Full Bottleneck forward
# --------------------------------------------------------------------------- #
@functools.partial(jax.jit, static_argnames=("dilation", "multi_grid", "stride"))
def bottleneck_forward(x_nchw, params, dilation=1, multi_grid=1, stride=1):
    # TODO(synk): stride>1 and the optional `downsample` branch are not implemented
    #             (module defaults: stride=1, downsample=None).
    assert stride == 1
    d = int(dilation * multi_grid)
    assert d >= 1

    x = jnp.transpose(x_nchw, (0, 2, 3, 1))                # NCHW -> NHWC (lane = channels)
    n, h, w, cin = x.shape
    p = params["w1"].shape[1]
    assert cin == 4 * p, "residual add without downsample requires inplanes == 4*planes"

    m = n * h * w
    x2d = x.reshape(m, cin).astype(jnp.float32)

    # Weights pre-cast to bf16 for the MXU (accumulation stays f32 in-kernel).
    w1 = params["w1"].astype(jnp.bfloat16)                 # (Cin, P)
    w2 = params["w2"].reshape(9 * p, p).astype(jnp.bfloat16)   # HWIO -> (9P, P), tap-major
    w3 = params["w3"].astype(jnp.bfloat16)                 # (P, 4P)

    tm = _pick_row_tile(cin + 4 * p)

    # stage 1: conv1 (1x1) + bn1 partial stats
    h1_2d, st1 = _conv1x1_stage(x2d, w1, tm=tm)
    sc1, sh1 = _bn_fold(st1, m, params["g1"], params["b1"])

    # stage 2: bn1 + relu + conv2 (3x3, dilation d) + bn2 partial stats
    h2, st2 = _conv2_stage(h1_2d.reshape(n, h, w, p), sc1, sh1, w2, d)
    sc2, sh2 = _bn_fold(st2, m, params["g2"], params["b2"])

    # stage 3: bn2 + relu + conv3 (1x1) + bn3 partial stats
    h3_2d, st3 = _conv1x1_stage(h2.reshape(m, p), w3, tm=tm, scale=sc2, shift=sh2)
    sc3, sh3 = _bn_fold(st3, m, params["g3"], params["b3"])

    # stage 4: bn3 + residual add (re-read x, not held live) + relu
    y2d = _bn_add_relu_stage(h3_2d, x2d, sc3, sh3, tm=tm)

    out = jnp.transpose(y2d.reshape(n, h, w, cin), (0, 3, 1, 2))   # NHWC -> NCHW
    return out.astype(x_nchw.dtype)


# --------------------------------------------------------------------------- #
# Pure-JAX reference (same math via XLA convs), used only for the sanity check.
# conv_dtype=bf16 mirrors the kernel's bf16 MXU operands (f32 accumulation).
# --------------------------------------------------------------------------- #
def _reference_forward(x_nhwc, prm, d, conv_dtype=jnp.float32):
    def bn(t, g, b):
        mean = t.mean(axis=(0, 1, 2), keepdims=True)
        var = ((t - mean) ** 2).mean(axis=(0, 1, 2), keepdims=True)
        return ((t - mean) * jax.lax.rsqrt(var + BN_EPS)
                * g.reshape(1, 1, 1, -1) + b.reshape(1, 1, 1, -1))

    def c(t):
        return t.astype(conv_dtype)

    hh = jnp.einsum("nhwc,cp->nhwp", c(x_nhwc), c(prm["w1"]),
                    preferred_element_type=jnp.float32)
    hh = jax.nn.relu(bn(hh, prm["g1"], prm["b1"]))
    hh = jax.lax.conv_general_dilated(
        c(hh), c(prm["w2"]), window_strides=(1, 1), padding=[(d, d), (d, d)],
        rhs_dilation=(d, d), dimension_numbers=("NHWC", "HWIO", "NHWC"),
        preferred_element_type=jnp.float32)
    hh = jax.nn.relu(bn(hh, prm["g2"], prm["b2"]))
    hh = jnp.einsum("nhwc,cp->nhwp", c(hh), c(prm["w3"]),
                    preferred_element_type=jnp.float32)
    hh = bn(hh, prm["g3"], prm["b3"])
    return jax.nn.relu(hh + x_nhwc.astype(jnp.float32))


if __name__ == "__main__":
    key = jax.random.PRNGKey(0)
    n, hgt, wdt = 2, 16, 16
    planes = 32
    inplanes = planes * 4            # 128: residual add works without downsample
    dilation, multi_grid = 1, 1

    ks = jax.random.split(key, 10)
    params = {
        "w1": jax.random.normal(ks[0], (inplanes, planes), jnp.float32) / np.sqrt(inplanes),
        "g1": 1.0 + 0.1 * jax.random.normal(ks[1], (1, planes), jnp.float32),
        "b1": 0.1 * jax.random.normal(ks[2], (1, planes), jnp.float32),
        "w2": jax.random.normal(ks[3], (3, 3, planes, planes), jnp.float32) / np.sqrt(9 * planes),
        "g2": 1.0 + 0.1 * jax.random.normal(ks[4], (1, planes), jnp.float32),
        "b2": 0.1 * jax.random.normal(ks[5], (1, planes), jnp.float32),
        "w3": jax.random.normal(ks[6], (planes, planes * 4), jnp.float32) / np.sqrt(planes),
        "g3": 1.0 + 0.1 * jax.random.normal(ks[7], (1, planes * 4), jnp.float32),
        "b3": 0.1 * jax.random.normal(ks[8], (1, planes * 4), jnp.float32),
    }
    x_nchw = jax.random.normal(ks[9], (n, inplanes, hgt, wdt), jnp.float32)

    out = bottleneck_forward(x_nchw, params, dilation=dilation, multi_grid=multi_grid)
    out = jax.block_until_ready(out)
    assert out.shape == (n, inplanes, hgt, wdt)

    x_nhwc = jnp.transpose(x_nchw, (0, 2, 3, 1))
    d = dilation * multi_grid

    # Tight structural check: reference using the same bf16 MXU operands.
    ref_mx = jnp.transpose(_reference_forward(x_nhwc, params, d, jnp.bfloat16), (0, 3, 1, 2))
    err_mx = float(jnp.max(jnp.abs(out - ref_mx)))
    assert err_mx < 2e-2, f"mixed-precision-mirrored max abs err {err_mx}"

    # Loose check vs pure-f32 module semantics (bf16 MXU operands are the only deviation).
    ref_f32 = jnp.transpose(_reference_forward(x_nhwc, params, d, jnp.float32), (0, 3, 1, 2))
    err_f32 = float(jnp.max(jnp.abs(out - ref_f32)))
    assert err_f32 < 1e-1, f"f32-reference max abs err {err_f32}"

    print("KERNEL_OK")
</pallas_src>

<mosaic_0001>
module attributes {stable_mosaic.version = 11 : i64} {
  func.func @kernel(%arg0: i32, %arg1: memref<256x128xf32, #tpu.memory_space<vmem>>, %arg2: memref<128x32xbf16, #tpu.memory_space<vmem>>, %arg3: memref<256x32xf32, #tpu.memory_space<vmem>>, %arg4: memref<1x2x32xf32, #tpu.memory_space<vmem>>) attributes {dimension_semantics = [#tpu.dimension_semantics<parallel>], iteration_bounds = array<i64: 2>, scalar_prefetch = 0 : i64, scratch_operands = 0 : i64, tpu.core_type = #tpu.core_type<tc>, window_params = [{transform_indices = @transform_0, window_bounds = array<i64: 256, 128>}, {pipeline_mode = #tpu.pipeline_mode<synchronous>, transform_indices = @transform_1, window_bounds = array<i64: 128, 32>}, {transform_indices = @transform_2, window_bounds = array<i64: 256, 32>}, {transform_indices = @transform_3, window_bounds = array<i64: 1, 2, 32>}]} {
    %c0 = arith.constant 0 : index
    %c0_0 = arith.constant 0 : index
    %0 = vector.load %arg1[%c0, %c0_0] : memref<256x128xf32, #tpu.memory_space<vmem>>, vector<256x128xf32>
    %1 = arith.truncf %0 : vector<256x128xf32> to vector<256x128xbf16>
    %c0_1 = arith.constant 0 : index
    %c0_2 = arith.constant 0 : index
    %2 = vector.load %arg2[%c0_1, %c0_2] : memref<128x32xbf16, #tpu.memory_space<vmem>>, vector<128x32xbf16>
    %cst = arith.constant dense<0.000000e+00> : vector<256x32xf32>
    %3 = tpu.matmul %1, %2, %cst {dimension_numbers = #tpu.dot_dimension_numbers<[1], [0], [0], [1], [0, 0, 1, 1], [], []>} : vector<256x128xbf16>, vector<128x32xbf16>, vector<256x32xf32> -> vector<256x32xf32>
    %c0_3 = arith.constant 0 : index
    %c0_4 = arith.constant 0 : index
    %4 = vector.load %arg3[%c0_3, %c0_4] : memref<256x32xf32, #tpu.memory_space<vmem>>, vector<256x32xf32>
    tpu.vector_store %arg3[%c0_3, %c0_4], %3 {strides = array<i32>} : memref<256x32xf32, #tpu.memory_space<vmem>>, vector<256x32xf32>,
    %cst_5 = arith.constant dense<0.000000e+00> : vector<32xf32>
    %5 = vector.multi_reduction <add>, %3, %cst_5 [0] : vector<256x32xf32> to vector<32xf32>
    %6 = vector.shape_cast %5 : vector<32xf32> to vector<1x32xf32>
    %7 = arith.mulf %3, %3 : vector<256x32xf32>
    %cst_6 = arith.constant dense<0.000000e+00> : vector<32xf32>
    %8 = vector.multi_reduction <add>, %7, %cst_6 [0] : vector<256x32xf32> to vector<32xf32>
    %9 = vector.shape_cast %8 : vector<32xf32> to vector<1x32xf32>
    %10 = tpu.concatenate %6, %9 in 0 : vector<1x32xf32>, vector<1x32xf32> -> vector<2x32xf32>
    %11 = vector.shape_cast %10 : vector<2x32xf32> to vector<1x2x32xf32>
    %c0_7 = arith.constant 0 : index
    %c0_8 = arith.constant 0 : index
    %c0_9 = arith.constant 0 : index
    %12 = vector.load %arg4[%c0_7, %c0_8, %c0_9] : memref<1x2x32xf32, #tpu.memory_space<vmem>>, vector<1x2x32xf32>
    tpu.vector_store %arg4[%c0_7, %c0_8, %c0_9], %11 {strides = array<i32>} : memref<1x2x32xf32, #tpu.memory_space<vmem>>, vector<1x2x32xf32>,
    return
  }
  func.func @transform_0(%arg0: i32) -> (i32, i32) {
    %c0_i32 = arith.constant 0 : i32
    %c0_i32_0 = arith.constant 0 : i32
    return %arg0, %c0_i32 : i32, i32
  }
  func.func @transform_1(%arg0: i32) -> (i32, i32) {
    %c0_i32 = arith.constant 0 : i32
    %c0_i32_0 = arith.constant 0 : i32
    %c0_i32_1 = arith.constant 0 : i32
    return %c0_i32, %c0_i32_0 : i32, i32
  }
  func.func @transform_2(%arg0: i32) -> (i32, i32) {
    %c0_i32 = arith.constant 0 : i32
    %c0_i32_0 = arith.constant 0 : i32
    return %arg0, %c0_i32 : i32, i32
  }
  func.func @transform_3(%arg0: i32) -> (i32, i32, i32) {
    %c0_i32 = arith.constant 0 : i32
    %c0_i32_0 = arith.constant 0 : i32
    %c0_i32_1 = arith.constant 0 : i32
    return %arg0, %c0_i32, %c0_i32_0 : i32, i32, i32
  }
}

module attributes {stable_mosaic.version = 11 : i64} {
  func.func @_conv3x3_stats_kernel(%arg0: i32, %arg1: memref<1x16x16x32xf32, #tpu.memory_space<vmem>>, %arg2: memref<1x32xf32, #tpu.memory_space<vmem>>, %arg3: memref<1x32xf32, #tpu.memory_space<vmem>>, %arg4: memref<288x32xbf16, #tpu.memory_space<vmem>>, %arg5: memref<1x16x16x32xf32, #tpu.memory_space<vmem>>, %arg6: memref<1x2x32xf32, #tpu.memory_space<vmem>>, %arg7: memref<18x18x32xf32, #tpu.memory_space<vmem>>) attributes {dimension_semantics = [#tpu.dimension_semantics<parallel>], iteration_bounds = array<i64: 2>, scalar_prefetch = 0 : i64, scratch_operands = 1 : i64, tpu.core_type = #tpu.core_type<tc>, window_params = [{transform_indices = @transform_0, window_bounds = array<i64: 1, 16, 16, 32>}, {pipeline_mode = #tpu.pipeline_mode<synchronous>, transform_indices = @transform_1, window_bounds = array<i64: 1, 32>}, {pipeline_mode = #tpu.pipeline_mode<synchronous>, transform_indices = @transform_2, window_bounds = array<i64: 1, 32>}, {pipeline_mode = #tpu.pipeline_mode<synchronous>, transform_indices = @transform_3, window_bounds = array<i64: 288, 32>}, {transform_indices = @transform_4, window_bounds = array<i64: 1, 16, 16, 32>}, {transform_indices = @transform_5, window_bounds = array<i64: 1, 2, 32>}]} {
    %c0 = arith.constant 0 : index
    %c0_0 = arith.constant 0 : index
    %c0_1 = arith.constant 0 : index
    %c0_2 = arith.constant 0 : index
    %0 = vector.load %arg1[%c0, %c0_0, %c0_1, %c0_2] : memref<1x16x16x32xf32, #tpu.memory_space<vmem>>, vector<1x16x16x32xf32>
    %1 = vector.shape_cast %0 : vector<1x16x16x32xf32> to vector<16x16x32xf32>
    %c0_3 = arith.constant 0 : index
    %c0_4 = arith.constant 0 : index
    %2 = vector.load %arg2[%c0_3, %c0_4] : memref<1x32xf32, #tpu.memory_space<vmem>>, vector<1x32xf32>
    %3 = vector.shape_cast %2 : vector<1x32xf32> to vector<1x1x32xf32>
    %4 = vector.broadcast %3 : vector<1x1x32xf32> to vector<16x16x32xf32>
    %5 = arith.mulf %1, %4 : vector<16x16x32xf32>
    %c0_5 = arith.constant 0 : index
    %c0_6 = arith.constant 0 : index
    %6 = vector.load %arg3[%c0_5, %c0_6] : memref<1x32xf32, #tpu.memory_space<vmem>>, vector<1x32xf32>
    %7 = vector.shape_cast %6 : vector<1x32xf32> to vector<1x1x32xf32>
    %8 = vector.broadcast %7 : vector<1x1x32xf32> to vector<16x16x32xf32>
    %9 = arith.addf %5, %8 : vector<16x16x32xf32>
    %cst = arith.constant 0.000000e+00 : f32
    %10 = vector.broadcast %cst : f32 to vector<16x16x32xf32>
    %11 = arith.maximumf %9, %10 : vector<16x16x32xf32>
    %c0_i32 = arith.constant 0 : i32
    %12 = arith.cmpi eq, %arg0, %c0_i32 : i32
    %13 = arith.extui %12 : i1 to i32
    %c0_i32_7 = arith.constant 0 : i32
    %14 = arith.cmpi ne, %13, %c0_i32_7 : i32
    scf.if %14 {
      %cst_48 = arith.constant 0.000000e+00 : f32
      %48 = vector.broadcast %cst_48 : f32 to vector<1x18x32xf32>
      %c0_49 = arith.constant 0 : index
      %c0_50 = arith.constant 0 : index
      %c0_51 = arith.constant 0 : index
      %49 = vector.load %arg7[%c0_49, %c0_50, %c0_51] : memref<18x18x32xf32, #tpu.memory_space<vmem>>, vector<1x18x32xf32>
      tpu.vector_store %arg7[%c0_49, %c0_50, %c0_51], %48 {strides = array<i32>} : memref<18x18x32xf32, #tpu.memory_space<vmem>>, vector<1x18x32xf32>,
      %cst_52 = arith.constant 0.000000e+00 : f32
      %50 = vector.broadcast %cst_52 : f32 to vector<1x18x32xf32>
      %c17 = arith.constant 17 : index
      %c0_53 = arith.constant 0 : index
      %c0_54 = arith.constant 0 : index
      %51 = vector.load %arg7[%c17, %c0_53, %c0_54] : memref<18x18x32xf32, #tpu.memory_space<vmem>>, vector<1x18x32xf32>
      tpu.vector_store %arg7[%c17, %c0_53, %c0_54], %50 {strides = array<i32>} : memref<18x18x32xf32, #tpu.memory_space<vmem>>, vector<1x18x32xf32>,
      %cst_55 = arith.constant 0.000000e+00 : f32
      %52 = vector.broadcast %cst_55 : f32 to vector<16x1x32xf32>
      %c1_56 = arith.constant 1 : index
      %c0_57 = arith.constant 0 : index
      %c0_58 = arith.constant 0 : index
      %53 = vector.load %arg7[%c1_56, %c0_57, %c0_58] : memref<18x18x32xf32, #tpu.memory_space<vmem>>, vector<16x1x32xf32>
      tpu.vector_store %arg7[%c1_56, %c0_57, %c0_58], %52 {strides = array<i32>} : memref<18x18x32xf32, #tpu.memory_space<vmem>>, vector<16x1x32xf32>,
      %cst_59 = arith.constant 0.000000e+00 : f32
      %54 = vector.broadcast %cst_59 : f32 to vector<16x1x32xf32>
      %c1_60 = arith.constant 1 : index
      %c17_61 = arith.constant 17 : index
      %c0_62 = arith.constant 0 : index
      %55 = vector.load %arg7[%c1_60, %c17_61, %c0_62] : memref<18x18x32xf32, #tpu.memory_space<vmem>>, vector<16x1x32xf32>
      tpu.vector_store %arg7[%c1_60, %c17_61, %c0_62], %54 {strides = array<i32>} : memref<18x18x32xf32, #tpu.memory_space<vmem>>, vector<16x1x32xf32>,
    } else {
    }
    %c1 = arith.constant 1 : index
    %c1_8 = arith.constant 1 : index
    %c0_9 = arith.constant 0 : index
    %15 = vector.load %arg7[%c1, %c1_8, %c0_9] : memref<18x18x32xf32, #tpu.memory_space<vmem>>, vector<16x16x32xf32>
    tpu.vector_store %arg7[%c1, %c1_8, %c0_9], %11 {strides = array<i32>} : memref<18x18x32xf32, #tpu.memory_space<vmem>>, vector<16x16x32xf32>,
    %c0_10 = arith.constant 0 : index
    %c0_11 = arith.constant 0 : index
    %c0_12 = arith.constant 0 : index
    %16 = vector.load %arg7[%c0_10, %c0_11, %c0_12] : memref<18x18x32xf32, #tpu.memory_space<vmem>>, vector<16x16x32xf32>
    %17 = vector.shape_cast %16 : vector<16x16x32xf32> to vector<256x32xf32>
    %c0_13 = arith.constant 0 : index
    %c1_14 = arith.constant 1 : index
    %c0_15 = arith.constant 0 : index
    %18 = vector.load %arg7[%c0_13, %c1_14, %c0_15] : memref<18x18x32xf32, #tpu.memory_space<vmem>>, vector<16x16x32xf32>
    %19 = vector.shape_cast %18 : vector<16x16x32xf32> to vector<256x32xf32>
    %c0_16 = arith.constant 0 : index
    %c2 = arith.constant 2 : index
    %c0_17 = arith.constant 0 : index
    %20 = vector.load %arg7[%c0_16, %c2, %c0_17] : memref<18x18x32xf32, #tpu.memory_space<vmem>>, vector<16x16x32xf32>
    %21 = vector.shape_cast %20 : vector<16x16x32xf32> to vector<256x32xf32>
    %c1_18 = arith.constant 1 : index
    %c0_19 = arith.constant 0 : index
    %c0_20 = arith.constant 0 : index
    %22 = vector.load %arg7[%c1_18, %c0_19, %c0_20] : memref<18x18x32xf32, #tpu.memory_space<vmem>>, vector<16x16x32xf32>
    %23 = vector.shape_cast %22 : vector<16x16x32xf32> to vector<256x32xf32>
    %c1_21 = arith.constant 1 : index
    %c1_22 = arith.constant 1 : index
    %c0_23 = arith.constant 0 : index
    %24 = vector.load %arg7[%c1_21, %c1_22, %c0_23] : memref<18x18x32xf32, #tpu.memory_space<vmem>>, vector<16x16x32xf32>
    %25 = vector.shape_cast %24 : vector<16x16x32xf32> to vector<256x32xf32>
    %c1_24 = arith.constant 1 : index
    %c2_25 = arith.constant 2 : index
    %c0_26 = arith.constant 0 : index
    %26 = vector.load %arg7[%c1_24, %c2_25, %c0_26] : memref<18x18x32xf32, #tpu.memory_space<vmem>>, vector<16x16x32xf32>
    %27 = vector.shape_cast %26 : vector<16x16x32xf32> to vector<256x32xf32>
    %c2_27 = arith.constant 2 : index
    %c0_28 = arith.constant 0 : index
    %c0_29 = arith.constant 0 : index
    %28 = vector.load %arg7[%c2_27, %c0_28, %c0_29] : memref<18x18x32xf32, #tpu.memory_space<vmem>>, vector<16x16x32xf32>
    %29 = vector.shape_cast %28 : vector<16x16x32xf32> to vector<256x32xf32>
    %c2_30 = arith.constant 2 : index
    %c1_31 = arith.constant 1 : index
    %c0_32 = arith.constant 0 : index
    %30 = vector.load %arg7[%c2_30, %c1_31, %c0_32] : memref<18x18x32xf32, #tpu.memory_space<vmem>>, vector<16x16x32xf32>
    %31 = vector.shape_cast %30 : vector<16x16x32xf32> to vector<256x32xf32>
    %c2_33 = arith.constant 2 : index
    %c2_34 = arith.constant 2 : index
    %c0_35 = arith.constant 0 : index
    %32 = vector.load %arg7[%c2_33, %c2_34, %c0_35] : memref<18x18x32xf32, #tpu.memory_space<vmem>>, vector<16x16x32xf32>
    %33 = vector.shape_cast %32 : vector<16x16x32xf32> to vector<256x32xf32>
    %34 = tpu.concatenate %17, %19, %21, %23, %25, %27, %29, %31, %33 in 1 : vector<256x32xf32>, vector<256x32xf32>, vector<256x32xf32>, vector<256x32xf32>, vector<256x32xf32>, vector<256x32xf32>, vector<256x32xf32>, vector<256x32xf32>, vector<256x32xf32> -> vector<256x288xf32>
    %35 = arith.truncf %34 : vector<256x288xf32> to vector<256x288xbf16>
    %c0_36 = arith.constant 0 : index
    %c0_37 = arith.constant 0 : index
    %36 = vector.load %arg4[%c0_36, %c0_37] : memref<288x32xbf16, #tpu.memory_space<vmem>>, vector<288x32xbf16>
    %cst_38 = arith.constant dense<0.000000e+00> : vector<256x32xf32>
    %37 = tpu.matmul %35, %36, %cst_38 {dimension_numbers = #tpu.dot_dimension_numbers<[1], [0], [0], [1], [0, 0, 1, 1], [], []>} : vector<256x288xbf16>, vector<288x32xbf16>, vector<256x32xf32> -> vector<256x32xf32>
    %38 = vector.shape_cast %37 : vector<256x32xf32> to vector<1x16x16x32xf32>
    %c0_39 = arith.constant 0 : index
    %c0_40 = arith.constant 0 : index
    %c0_41 = arith.constant 0 : index
    %c0_42 = arith.constant 0 : index
    %39 = vector.load %arg5[%c0_39, %c0_40, %c0_41, %c0_42] : memref<1x16x16x32xf32, #tpu.memory_space<vmem>>, vector<1x16x16x32xf32>
    tpu.vector_store %arg5[%c0_39, %c0_40, %c0_41, %c0_42], %38 {strides = array<i32>} : memref<1x16x16x32xf32, #tpu.memory_space<vmem>>, vector<1x16x16x32xf32>,
    %cst_43 = arith.constant dense<0.000000e+00> : vector<32xf32>
    %40 = vector.multi_reduction <add>, %37, %cst_43 [0] : vector<256x32xf32> to vector<32xf32>
    %41 = vector.shape_cast %40 : vector<32xf32> to vector<1x32xf32>
    %42 = arith.mulf %37, %37 : vector<256x32xf32>
    %cst_44 = arith.constant dense<0.000000e+00> : vector<32xf32>
    %43 = vector.multi_reduction <add>, %42, %cst_44 [0] : vector<256x32xf32> to vector<32xf32>
    %44 = vector.shape_cast %43 : vector<32xf32> to vector<1x32xf32>
    %45 = tpu.concatenate %41, %44 in 0 : vector<1x32xf32>, vector<1x32xf32> -> vector<2x32xf32>
    %46 = vector.shape_cast %45 : vector<2x32xf32> to vector<1x2x32xf32>
    %c0_45 = arith.constant 0 : index
    %c0_46 = arith.constant 0 : index
    %c0_47 = arith.constant 0 : index
    %47 = vector.load %arg6[%c0_45, %c0_46, %c0_47] : memref<1x2x32xf32, #tpu.memory_space<vmem>>, vector<1x2x32xf32>
    tpu.vector_store %arg6[%c0_45, %c0_46, %c0_47], %46 {strides = array<i32>} : memref<1x2x32xf32, #tpu.memory_space<vmem>>, vector<1x2x32xf32>,
    return
  }
  func.func @transform_0(%arg0: i32) -> (i32, i32, i32, i32) {
    %c0_i32 = arith.constant 0 : i32
    %c0_i32_0 = arith.constant 0 : i32
    %c0_i32_1 = arith.constant 0 : i32
    %c0_i32_2 = arith.constant 0 : i32
    return %arg0, %c0_i32, %c0_i32_0, %c0_i32_1 : i32, i32, i32, i32
  }
  func.func @transform_1(%arg0: i32) -> (i32, i32) {
    %c0_i32 = arith.constant 0 : i32
    %c0_i32_0 = arith.constant 0 : i32
    %c0_i32_1 = arith.constant 0 : i32
    return %c0_i32, %c0_i32_0 : i32, i32
  }
  func.func @transform_2(%arg0: i32) -> (i32, i32) {
    %c0_i32 = arith.constant 0 : i32
    %c0_i32_0 = arith.constant 0 : i32
    %c0_i32_1 = arith.constant 0 : i32
    return %c0_i32, %c0_i32_0 : i32, i32
  }
  func.func @transform_3(%arg0: i32) -> (i32, i32) {
    %c0_i32 = arith.constant 0 : i32
    %c0_i32_0 = arith.constant 0 : i32
    %c0_i32_1 = arith.constant 0 : i32
    return %c0_i32, %c0_i32_0 : i32, i32
  }
  func.func @transform_4(%arg0: i32) -> (i32, i32, i32, i32) {
    %c0_i32 = arith.constant 0 : i32
    %c0_i32_0 = arith.constant 0 : i32
    %c0_i32_1 = arith.constant 0 : i32
    %c0_i32_2 = arith.constant 0 : i32
    return %arg0, %c0_i32, %c0_i32_0, %c0_i32_1 : i32, i32, i32, i32
  }
  func.func @transform_5(%arg0: i32) -> (i32, i32, i32) {
    %c0_i32 = arith.constant 0 : i32
    %c0_i32_0 = arith.constant 0 : i32
    %c0_i32_1 = arith.constant 0 : i32
    return %arg0, %c0_i32, %c0_i32_0 : i32, i32, i32
  }
}

module attributes {stable_mosaic.version = 11 : i64} {
  func.func @kernel(%arg0: i32, %arg1: memref<256x32xf32, #tpu.memory_space<vmem>>, %arg2: memref<1x32xf32, #tpu.memory_space<vmem>>, %arg3: memref<1x32xf32, #tpu.memory_space<vmem>>, %arg4: memref<32x128xbf16, #tpu.memory_space<vmem>>, %arg5: memref<256x128xf32, #tpu.memory_space<vmem>>, %arg6: memref<1x2x128xf32, #tpu.memory_space<vmem>>) attributes {dimension_semantics = [#tpu.dimension_semantics<parallel>], iteration_bounds = array<i64: 2>, scalar_prefetch = 0 : i64, scratch_operands = 0 : i64, tpu.core_type = #tpu.core_type<tc>, window_params = [{transform_indices = @transform_0, window_bounds = array<i64: 256, 32>}, {pipeline_mode = #tpu.pipeline_mode<synchronous>, transform_indices = @transform_1, window_bounds = array<i64: 1, 32>}, {pipeline_mode = #tpu.pipeline_mode<synchronous>, transform_indices = @transform_2, window_bounds = array<i64: 1, 32>}, {pipeline_mode = #tpu.pipeline_mode<synchronous>, transform_indices = @transform_3, window_bounds = array<i64: 32, 128>}, {transform_indices = @transform_4, window_bounds = array<i64: 256, 128>}, {transform_indices = @transform_5, window_bounds = array<i64: 1, 2, 128>}]} {
    %c0 = arith.constant 0 : index
    %c0_0 = arith.constant 0 : index
    %0 = vector.load %arg1[%c0, %c0_0] : memref<256x32xf32, #tpu.memory_space<vmem>>, vector<256x32xf32>
    %c0_1 = arith.constant 0 : index
    %c0_2 = arith.constant 0 : index
    %1 = vector.load %arg2[%c0_1, %c0_2] : memref<1x32xf32, #tpu.memory_space<vmem>>, vector<1x32xf32>
    %2 = vector.broadcast %1 : vector<1x32xf32> to vector<256x32xf32>
    %3 = arith.mulf %0, %2 : vector<256x32xf32>
    %c0_3 = arith.constant 0 : index
    %c0_4 = arith.constant 0 : index
    %4 = vector.load %arg3[%c0_3, %c0_4] : memref<1x32xf32, #tpu.memory_space<vmem>>, vector<1x32xf32>
    %5 = vector.broadcast %4 : vector<1x32xf32> to vector<256x32xf32>
    %6 = arith.addf %3, %5 : vector<256x32xf32>
    %cst = arith.constant 0.000000e+00 : f32
    %7 = vector.broadcast %cst : f32 to vector<256x32xf32>
    %8 = arith.maximumf %6, %7 : vector<256x32xf32>
    %9 = arith.truncf %8 : vector<256x32xf32> to vector<256x32xbf16>
    %c0_5 = arith.constant 0 : index
    %c0_6 = arith.constant 0 : index
    %10 = vector.load %arg4[%c0_5, %c0_6] : memref<32x128xbf16, #tpu.memory_space<vmem>>, vector<32x128xbf16>
    %cst_7 = arith.constant dense<0.000000e+00> : vector<256x128xf32>
    %11 = tpu.matmul %9, %10, %cst_7 {dimension_numbers = #tpu.dot_dimension_numbers<[1], [0], [0], [1], [0, 0, 1, 1], [], []>} : vector<256x32xbf16>, vector<32x128xbf16>, vector<256x128xf32> -> vector<256x128xf32>
    %c0_8 = arith.constant 0 : index
    %c0_9 = arith.constant 0 : index
    %12 = vector.load %arg5[%c0_8, %c0_9] : memref<256x128xf32, #tpu.memory_space<vmem>>, vector<256x128xf32>
    tpu.vector_store %arg5[%c0_8, %c0_9], %11 {strides = array<i32>} : memref<256x128xf32, #tpu.memory_space<vmem>>, vector<256x128xf32>,
    %cst_10 = arith.constant dense<0.000000e+00> : vector<128xf32>
    %13 = vector.multi_reduction <add>, %11, %cst_10 [0] : vector<256x128xf32> to vector<128xf32>
    %14 = vector.shape_cast %13 : vector<128xf32> to vector<1x128xf32>
    %15 = arith.mulf %11, %11 : vector<256x128xf32>
    %cst_11 = arith.constant dense<0.000000e+00> : vector<128xf32>
    %16 = vector.multi_reduction <add>, %15, %cst_11 [0] : vector<256x128xf32> to vector<128xf32>
    %17 = vector.shape_cast %16 : vector<128xf32> to vector<1x128xf32>
    %18 = tpu.concatenate %14, %17 in 0 : vector<1x128xf32>, vector<1x128xf32> -> vector<2x128xf32>
    %19 = vector.shape_cast %18 : vector<2x128xf32> to vector<1x2x128xf32>
    %c0_12 = arith.constant 0 : index
    %c0_13 = arith.constant 0 : index
    %c0_14 = arith.constant 0 : index
    %20 = vector.load %arg6[%c0_12, %c0_13, %c0_14] : memref<1x2x128xf32, #tpu.memory_space<vmem>>, vector<1x2x128xf32>
    tpu.vector_store %arg6[%c0_12, %c0_13, %c0_14], %19 {strides = array<i32>} : memref<1x2x128xf32, #tpu.memory_space<vmem>>, vector<1x2x128xf32>,
    return
  }
  func.func @transform_0(%arg0: i32) -> (i32, i32) {
    %c0_i32 = arith.constant 0 : i32
    %c0_i32_0 = arith.constant 0 : i32
    return %arg0, %c0_i32 : i32, i32
  }
  func.func @transform_1(%arg0: i32) -> (i32, i32) {
    %c0_i32 = arith.constant 0 : i32
    %c0_i32_0 = arith.constant 0 : i32
    %c0_i32_1 = arith.constant 0 : i32
    return %c0_i32, %c0_i32_0 : i32, i32
  }
  func.func @transform_2(%arg0: i32) -> (i32, i32) {
    %c0_i32 = arith.constant 0 : i32
    %c0_i32_0 = arith.constant 0 : i32
    %c0_i32_1 = arith.constant 0 : i32
    return %c0_i32, %c0_i32_0 : i32, i32
  }
  func.func @transform_3(%arg0: i32) -> (i32, i32) {
    %c0_i32 = arith.constant 0 : i32
    %c0_i32_0 = arith.constant 0 : i32
    %c0_i32_1 = arith.constant 0 : i32
    return %c0_i32, %c0_i32_0 : i32, i32
  }
  func.func @transform_4(%arg0: i32) -> (i32, i32) {
    %c0_i32 = arith.constant 0 : i32
    %c0_i32_0 = arith.constant 0 : i32
    return %arg0, %c0_i32 : i32, i32
  }
  func.func @transform_5(%arg0: i32) -> (i32, i32, i32) {
    %c0_i32 = arith.constant 0 : i32
    %c0_i32_0 = arith.constant 0 : i32
    %c0_i32_1 = arith.constant 0 : i32
    return %arg0, %c0_i32, %c0_i32_0 : i32, i32, i32
  }
}

module attributes {stable_mosaic.version = 11 : i64} {
  func.func @_bn_residual_relu_kernel(%arg0: i32, %arg1: memref<256x128xf32, #tpu.memory_space<vmem>>, %arg2: memref<256x128xf32, #tpu.memory_space<vmem>>, %arg3: memref<1x128xf32, #tpu.memory_space<vmem>>, %arg4: memref<1x128xf32, #tpu.memory_space<vmem>>, %arg5: memref<256x128xf32, #tpu.memory_space<vmem>>) attributes {dimension_semantics = [#tpu.dimension_semantics<parallel>], iteration_bounds = array<i64: 2>, scalar_prefetch = 0 : i64, scratch_operands = 0 : i64, tpu.core_type = #tpu.core_type<tc>, window_params = [{transform_indices = @transform_0, window_bounds = array<i64: 256, 128>}, {transform_indices = @transform_1, window_bounds = array<i64: 256, 128>}, {pipeline_mode = #tpu.pipeline_mode<synchronous>, transform_indices = @transform_2, window_bounds = array<i64: 1, 128>}, {pipeline_mode = #tpu.pipeline_mode<synchronous>, transform_indices = @transform_3, window_bounds = array<i64: 1, 128>}, {transform_indices = @transform_4, window_bounds = array<i64: 256, 128>}]} {
    %c0 = arith.constant 0 : index
    %c0_0 = arith.constant 0 : index
    %0 = vector.load %arg1[%c0, %c0_0] : memref<256x128xf32, #tpu.memory_space<vmem>>, vector<256x128xf32>
    %c0_1 = arith.constant 0 : index
    %c0_2 = arith.constant 0 : index
    %1 = vector.load %arg3[%c0_1, %c0_2] : memref<1x128xf32, #tpu.memory_space<vmem>>, vector<1x128xf32>
    %2 = vector.broadcast %1 : vector<1x128xf32> to vector<256x128xf32>
    %3 = arith.mulf %0, %2 : vector<256x128xf32>
    %c0_3 = arith.constant 0 : index
    %c0_4 = arith.constant 0 : index
    %4 = vector.load %arg4[%c0_3, %c0_4] : memref<1x128xf32, #tpu.memory_space<vmem>>, vector<1x128xf32>
    %5 = vector.broadcast %4 : vector<1x128xf32> to vector<256x128xf32>
    %6 = arith.addf %3, %5 : vector<256x128xf32>
    %c0_5 = arith.constant 0 : index
    %c0_6 = arith.constant 0 : index
    %7 = vector.load %arg2[%c0_5, %c0_6] : memref<256x128xf32, #tpu.memory_space<vmem>>, vector<256x128xf32>
    %8 = arith.addf %6, %7 : vector<256x128xf32>
    %cst = arith.constant 0.000000e+00 : f32
    %9 = vector.broadcast %cst : f32 to vector<256x128xf32>
    %10 = arith.maximumf %8, %9 : vector<256x128xf32>
    %c0_7 = arith.constant 0 : index
    %c0_8 = arith.constant 0 : index
    %11 = vector.load %arg5[%c0_7, %c0_8] : memref<256x128xf32, #tpu.memory_space<vmem>>, vector<256x128xf32>
    tpu.vector_store %arg5[%c0_7, %c0_8], %10 {strides = array<i32>} : memref<256x128xf32, #tpu.memory_space<vmem>>, vector<256x128xf32>,
    return
  }
  func.func @transform_0(%arg0: i32) -> (i32, i32) {
    %c0_i32 = arith.constant 0 : i32
    %c0_i32_0 = arith.constant 0 : i32
    return %arg0, %c0_i32 : i32, i32
  }
  func.func @transform_1(%arg0: i32) -> (i32, i32) {
    %c0_i32 = arith.constant 0 : i32
    %c0_i32_0 = arith.constant 0 : i32
    return %arg0, %c0_i32 : i32, i32
  }
  func.func @transform_2(%arg0: i32) -> (i32, i32) {
    %c0_i32 = arith.constant 0 : i32
    %c0_i32_0 = arith.constant 0 : i32
    %c0_i32_1 = arith.constant 0 : i32
    return %c0_i32, %c0_i32_0 : i32, i32
  }
  func.func @transform_3(%arg0: i32) -> (i32, i32) {
    %c0_i32 = arith.constant 0 : i32
    %c0_i32_0 = arith.constant 0 : i32
    %c0_i32_1 = arith.constant 0 : i32
    return %c0_i32, %c0_i32_0 : i32, i32
  }
  func.func @transform_4(%arg0: i32) -> (i32, i32) {
    %c0_i32 = arith.constant 0 : i32
    %c0_i32_0 = arith.constant 0 : i32
    return %arg0, %c0_i32 : i32, i32
  }
}

</mosaic_0001>

<llo_original>
// kernel: bottleneck_forward.7
$region0: #{bottleneck_forward.7}
  #allocation0 [shape = 'u32[]', space=smem, size = 0x4, offset = 0x4, fixed_abs, tag = 'smem constant byte address 0x4 - core index']
  #allocation1 [shape = 'u32[144,128]{1,0:T(1,128)}', space=vmem, size = 0x12000, scoped, tag = 'internal scratch']
  %s0 = inlined_call_operand.vmem [shape: f32[512,128], index: 0, kind: input, shape index: {}]
  %s1 = inlined_call_operand.vmem [shape: f32[512,128], index: 1, kind: input, shape index: {}]
  %s2 = inlined_call_operand.vmem [shape: f32[1,128], index: 2, kind: input, shape index: {}]
  %s3 = inlined_call_operand.vmem [shape: f32[1,128], index: 3, kind: input, shape index: {}]
  %s4 = inlined_call_operand.hbm [shape: f32[512,128], index: 4, kind: output, shape index: {}]
  %s5 = sld [smem:[#allocation0]]
  $region49: #{bottleneck_forward.7} parent=0
    _
  %s7 = ssub.s32 1, %s5
  %s8 = scalar_select 0, %s7, %s5
  $region1: #{bottleneck_forward.7} parent=0
    #allocation2 [shape = 'u8[262144]{0}', space=vmem, size = 0x40000, scoped, tag = 'output window, operand 0']
    #allocation3 [shape = 's32[2]{0}', space=sflag, size = 0x8, scoped, tag = 'scoped memory for bottleneck_forward.7']
    %9 = vsyncpa [#allocation3], 0
    %s10 = scalar_lea.sflag [#allocation3], 1
    %11 = vsyncpa %s10, 0
    loop: start=0, step=1, limit=4
    $region2: #{bottleneck_forward.7} parent=1 // loop_pre_header
      _
    $region3: #{bottleneck_forward.7} parent=1 // loop_header
      %s13 = sphi 0, %s17
      %p14 = scmp.ge.s32.totalorder %s13, 4
      %s23 = sphi 0, %s25
      %s26 = sphi 0, %s23
      %s27 = sphi 0, %s26
      %s43 = sphi 0, %s27
      %s49 = sphi 0, %s51
      %s52 = sphi 0, %s49
      %s53 = sphi 0, %s52
      %s69 = sphi 0, %s53
      %s73 = sphi 0, %s73
      %s75 = sphi 0, %s73
      %s76 = sphi 0, %s75
      %s90 = sphi 0, %s76
      %s94 = sphi 0, %s94
      %s96 = sphi 0, %s94
      %s97 = sphi 0, %s96
      %s111 = sphi 0, %s97
      %s117 = sphi 0, %s119
      %s120 = sphi 0, %s117
      %s121 = sphi 0, %s120
      %s137 = sphi 0, %s121
    $region4: #{bottleneck_forward.7} parent=1 // loop_header_branch
      %16 = sbr.rel (%p14) target = $region8
    $region5: #{bottleneck_forward.7} parent=1 // loop_body
      %s18 = ssub.s32 %s13, 1
      %s19 = ssub.s32 %s13, 2
      %s20 = sadd.s32 %s13, 1
      %s21 = ssub.s32 %s13, %s20
      %p22 = scmp.eq.s32.totalorder %s21, 0
      %s24 = sadd.s32 %s23, 1
      %s25 = scalar_select %p22, %s23, %s24
      %p28 = pneg %p22
      %p29 = scmp.eq.s32.totalorder %s13, 1
      %p30 = por %p28, %p29
      %p31 = scmp.ne.s32.totalorder %s23, %s26
      %p32 = scmp.eq.s32.totalorder %s13, 0
      %p33 = por %p31, %p32
      %p34 = scmp.ne.s32.totalorder %s23, %s26
      %p35 = scmp.eq.s32.totalorder %s18, 1
      %p36 = por %p34, %p35
      %p37 = scmp.ne.s32.totalorder %s26, %s27
      %p38 = scmp.eq.s32.totalorder %s18, 0
      %p39 = por %p37, %p38
      %p40 = scmp.ne.s32.totalorder %s26, %s27
      %p41 = scmp.eq.s32.totalorder %s19, 1
      %p42 = por %p40, %p41
      %p44 = scmp.ne.s32.totalorder %s27, %s43
      %p45 = scmp.eq.s32.totalorder %s19, 0
      %p46 = por %p44, %p45
      %s47 = ssub.s32 %s13, %s20
      %p48 = scmp.eq.s32.totalorder %s47, 0
      %s50 = sadd.s32 %s49, 1
      %s51 = scalar_select %p48, %s49, %s50
      %p54 = pneg %p48
      %p55 = scmp.eq.s32.totalorder %s13, 1
      %p56 = por %p54, %p55
      %p57 = scmp.ne.s32.totalorder %s49, %s52
      %p58 = scmp.eq.s32.totalorder %s13, 0
      %p59 = por %p57, %p58
      %p60 = scmp.ne.s32.totalorder %s49, %s52
      %p61 = scmp.eq.s32.totalorder %s18, 1
      %p62 = por %p60, %p61
      %p63 = scmp.ne.s32.totalorder %s52, %s53
      %p64 = scmp.eq.s32.totalorder %s18, 0
      %p65 = por %p63, %p64
      %p66 = scmp.ne.s32.totalorder %s52, %s53
      %p67 = scmp.eq.s32.totalorder %s19, 1
      %p68 = por %p66, %p67
      %p70 = scmp.ne.s32.totalorder %s53, %s69
      %p71 = scmp.eq.s32.totalorder %s19, 0
      %p72 = por %p70, %p71
      %s74 = sadd.s32 %s73, 1
      %p77 = scmp.eq.s32.totalorder %s13, 1
      %p78 = scmp.ne.s32.totalorder %s73, %s75
      %p79 = scmp.eq.s32.totalorder %s13, 0
      %p80 = por %p78, %p79
      %p81 = scmp.ne.s32.totalorder %s73, %s75
      %p82 = scmp.eq.s32.totalorder %s18, 1
      %p83 = por %p81, %p82
      %p84 = scmp.ne.s32.totalorder %s75, %s76
      %p85 = scmp.eq.s32.totalorder %s18, 0
      %p86 = por %p84, %p85
      %p87 = scmp.ne.s32.totalorder %s75, %s76
      %p88 = scmp.eq.s32.totalorder %s19, 1
      %p89 = por %p87, %p88
      %p91 = scmp.ne.s32.totalorder %s76, %s90
      %p92 = scmp.eq.s32.totalorder %s19, 0
      %p93 = por %p91, %p92
      %s95 = sadd.s32 %s94, 1
      %p98 = scmp.eq.s32.totalorder %s13, 1
      %p99 = scmp.ne.s32.totalorder %s94, %s96
      %p100 = scmp.eq.s32.totalorder %s13, 0
      %p101 = por %p99, %p100
      %p102 = scmp.ne.s32.totalorder %s94, %s96
      %p103 = scmp.eq.s32.totalorder %s18, 1
      %p104 = por %p102, %p103
      %p105 = scmp.ne.s32.totalorder %s96, %s97
      %p106 = scmp.eq.s32.totalorder %s18, 0
      %p107 = por %p105, %p106
      %p108 = scmp.ne.s32.totalorder %s96, %s97
      %p109 = scmp.eq.s32.totalorder %s19, 1
      %p110 = por %p108, %p109
      %p112 = scmp.ne.s32.totalorder %s97, %s111
      %p113 = scmp.eq.s32.totalorder %s19, 0
      %p114 = por %p112, %p113
      %s115 = ssub.s32 %s13, %s20
      %p116 = scmp.eq.s32.totalorder %s115, 0
      %s118 = sadd.s32 %s117, 1
      %s119 = scalar_select %p116, %s117, %s118
      %p122 = pneg %p116
      %p123 = scmp.eq.s32.totalorder %s13, 1
      %p124 = por %p122, %p123
      %p125 = scmp.ne.s32.totalorder %s117, %s120
      %p126 = scmp.eq.s32.totalorder %s13, 0
      %p127 = por %p125, %p126
      %p128 = scmp.ne.s32.totalorder %s117, %s120
      %p129 = scmp.eq.s32.totalorder %s18, 1
      %p130 = por %p128, %p129
      %p131 = scmp.ne.s32.totalorder %s120, %s121
      %p132 = scmp.eq.s32.totalorder %s18, 0
      %p133 = por %p131, %p132
      %p134 = scmp.ne.s32.totalorder %s120, %s121
      %p135 = scmp.eq.s32.totalorder %s19, 1
      %p136 = por %p134, %p135
      %p138 = scmp.ne.s32.totalorder %s121, %s137
      %p139 = scmp.eq.s32.totalorder %s19, 0
      %p140 = por %p138, %p139
      %p141 = scmp.le.s32.totalorder 1, %s13
      %p142 = scmp.lt.s32.totalorder %s13, 3
      %p143 = pnand %p141, %p142
      %p144 = pneg %p143
      // Predicated region
      $region9: #{bottleneck_forward.7} parent=5 // pred_check
        _
      $region10: #{bottleneck_forward.7} parent=5 // pred_check_branch
        %146 = sbr.rel (%p143) target = $region12
      $region11: #{bottleneck_forward.7} parent=5 // pred_region
        %s147 = ssub.s32 %s13, 1
        // Predicated region
        $region13: #{bottleneck_forward.7} parent=11 // pred_check
          %p148 = pneg %p86
        $region14: #{bottleneck_forward.7} parent=11 // pred_check_branch
          %150 = sbr.rel (%p148) target = $region16
        $region15: #{bottleneck_forward.7} parent=11 // pred_region
          _
        $region16: #{bottleneck_forward.7} parent=11 // pred_fallthru
          _
        // Predicated region
        $region17: #{bottleneck_forward.7} parent=11 // pred_check
          %p151 = pneg %p107
        $region18: #{bottleneck_forward.7} parent=11 // pred_check_branch
          %153 = sbr.rel (%p151) target = $region20
        $region19: #{bottleneck_forward.7} parent=11 // pred_region
          _
        $region20: #{bottleneck_forward.7} parent=11 // pred_fallthru
          _
      $region12: #{bottleneck_forward.7} parent=5 // pred_fallthru
        _
      %p154 = scmp.lt.s32.totalorder %s13, 2
      // Predicated region
      $region21: #{bottleneck_forward.7} parent=5 // pred_check
        %p155 = pneg %p154
      $region22: #{bottleneck_forward.7} parent=5 // pred_check_branch
        %157 = sbr.rel (%p155) target = $region24
      $region23: #{bottleneck_forward.7} parent=5 // pred_region
        // Predicated region
        $region25: #{bottleneck_forward.7} parent=23 // pred_check
          %p158 = pneg %p33
        $region26: #{bottleneck_forward.7} parent=23 // pred_check_branch
          %160 = sbr.rel (%p158) target = $region28
        $region27: #{bottleneck_forward.7} parent=23 // pred_region
          %s161 = smul.u32 32, %s13
          %p162 = scmp.lt.s32.totalorder %s161, 63
          %s163 = scalar_select %p162, %s161, 63
          %s164 = smul.addr %s163, 8
          %s165 = scalar_lea.vmem %s0, %s164
          %s166 = smul.u32 32, %s13
        $region28: #{bottleneck_forward.7} parent=23 // pred_fallthru
          _
        // Predicated region
        $region29: #{bottleneck_forward.7} parent=23 // pred_check
          %p167 = pneg %p59
        $region30: #{bottleneck_forward.7} parent=23 // pred_check_branch
          %169 = sbr.rel (%p167) target = $region32
        $region31: #{bottleneck_forward.7} parent=23 // pred_region
          %s170 = smul.u32 32, %s13
          %p171 = scmp.lt.s32.totalorder %s170, 63
          %s172 = scalar_select %p171, %s170, 63
          %s173 = smul.addr %s172, 8
          %s174 = scalar_lea.vmem %s1, %s173
          %s175 = smul.u32 32, %s13
        $region32: #{bottleneck_forward.7} parent=23 // pred_fallthru
          _
      $region24: #{bottleneck_forward.7} parent=5 // pred_fallthru
        _
      %p176 = scmp.le.s32.totalorder 1, %s13
      %p177 = scmp.lt.s32.totalorder %s13, 3
      %p178 = pnand %p176, %p177
      %p179 = pneg %p178
      // Predicated region
      $region33: #{bottleneck_forward.7} parent=5 // pred_check
        _
      $region34: #{bottleneck_forward.7} parent=5 // pred_check_branch
        %181 = sbr.rel (%p178) target = $region36
      $region35: #{bottleneck_forward.7} parent=5 // pred_region
        %s182 = ssub.s32 %s13, 1
        %s183 = smul.u32 32, %s18
        %p184 = scmp.lt.s32.totalorder %s183, 63
        %s185 = scalar_select %p184, %s183, 63
        %s186 = smul.addr %s185, 8
        %s187 = scalar_lea.vmem %s0, %s186
        %p188 = pneg %p39
        %p189 = pneg %p36
        %s190 = smul.u32 32, %s18
        %p191 = scmp.lt.s32.totalorder %s190, 63
        %s192 = scalar_select %p191, %s190, 63
        %s193 = smul.addr %s192, 8
        %s194 = scalar_lea.vmem %s1, %s193
        %p195 = pneg %p65
        %p196 = pneg %p62
        %p197 = pneg %p86
        %p198 = pneg %p83
        %p199 = pneg %p107
        %p200 = pneg %p104
        %p201 = pneg %p133
        %p202 = pneg %p130
        %s203 = sand.u32 %s120, 1
        %s204 = scalar_lea.sflag [#allocation3], %s203
        %s205 = sand.u32 %s120, 1
        %s206 = smul.addr %s205, 256
        %s207 = scalar_lea.vmem [#allocation2], %s206
        %s208 = smul.u32 32, %s18
        %p209 = scmp.lt.s32.totalorder %s208, 63
        %s210 = scalar_select %p209, %s208, 63
        %s211 = smul.addr %s210, 8
        %s212 = scalar_lea.vmem %s0, %s211
        %s213 = smul.u32 32, %s18
        %s214 = smul.u32 32, %s18
        %p215 = scmp.lt.s32.totalorder %s214, 63
        %s216 = scalar_select %p215, %s214, 63
        %s217 = smul.addr %s216, 8
        %s218 = scalar_lea.vmem %s1, %s217
        %s219 = smul.u32 32, %s18
        %s220 = smul.u32 32, %s18
        %v221 = vld [vmem:[%s212] sm:$0xff]
        %v222 = vld [vmem:[%s212 + $0x8] sm:$0xff]
        %v223 = vld [vmem:[%s212 + $0x10] sm:$0xff]
        %v224 = vld [vmem:[%s212 + $0x18] sm:$0xff]
        %v225 = vld [vmem:[%s212 + $0x20] sm:$0xff]
        %v226 = vld [vmem:[%s212 + $0x28] sm:$0xff]
        %v227 = vld [vmem:[%s212 + $0x30] sm:$0xff]
        %v228 = vld [vmem:[%s212 + $0x38] sm:$0xff]
        %v229 = vld [vmem:[%s212 + $0x40] sm:$0xff]
        %v230 = vld [vmem:[%s212 + $0x48] sm:$0xff]
        %v231 = vld [vmem:[%s212 + $0x50] sm:$0xff]
        %v232 = vld [vmem:[%s212 + $0x58] sm:$0xff]
        %v233 = vld [vmem:[%s212 + $0x60] sm:$0xff]
        %v234 = vld [vmem:[%s212 + $0x68] sm:$0xff]
        %v235 = vld [vmem:[%s212 + $0x70] sm:$0xff]
        %v236 = vld [vmem:[%s212 + $0x78] sm:$0xff]
        %v237 = vld [vmem:[%s212 + $0x80] sm:$0xff]
        %v238 = vld [vmem:[%s212 + $0x88] sm:$0xff]
        %v239 = vld [vmem:[%s212 + $0x90] sm:$0xff]
        %v240 = vld [vmem:[%s212 + $0x98] sm:$0xff]
        %v241 = vld [vmem:[%s212 + $0xa0] sm:$0xff]
        %v242 = vld [vmem:[%s212 + $0xa8] sm:$0xff]
        %v243 = vld [vmem:[%s212 + $0xb0] sm:$0xff]
        %v244 = vld [vmem:[%s212 + $0xb8] sm:$0xff]
        %v245 = vld [vmem:[%s212 + $0xc0] sm:$0xff]
        %v246 = vld [vmem:[%s212 + $0xc8] sm:$0xff]
        %v247 = vld [vmem:[%s212 + $0xd0] sm:$0xff]
        %v248 = vld [vmem:[%s212 + $0xd8] sm:$0xff]
        %v249 = vld [vmem:[%s212 + $0xe0] sm:$0xff]
        %v250 = vld [vmem:[%s212 + $0xe8] sm:$0xff]
        %v251 = vld [vmem:[%s212 + $0xf0] sm:$0xff]
        %v252 = vld [vmem:[%s212 + $0xf8] sm:$0xff]
        %v253 = vld [vmem:[%s2] sm:$0x1]
        %v255 = vlaneseq
        %v256 = vshrl.u32 %v255, 7
        %v257 = vsub.s32 0, %v256
        %v258 = vrot.slane %v253, %v257
        %v260 = vmul.f32 %v221, %v258
        %v261 = vmul.f32 %v222, %v258
        %v262 = vmul.f32 %v223, %v258
        %v263 = vmul.f32 %v224, %v258
        %v264 = vmul.f32 %v225, %v258
        %v265 = vmul.f32 %v226, %v258
        %v266 = vmul.f32 %v227, %v258
        %v267 = vmul.f32 %v228, %v258
        %v268 = vmul.f32 %v229, %v258
        %v269 = vmul.f32 %v230, %v258
        %v270 = vmul.f32 %v231, %v258
        %v271 = vmul.f32 %v232, %v258
        %v272 = vmul.f32 %v233, %v258
        %v273 = vmul.f32 %v234, %v258
        %v274 = vmul.f32 %v235, %v258
        %v275 = vmul.f32 %v236, %v258
        %v276 = vmul.f32 %v237, %v258
        %v277 = vmul.f32 %v238, %v258
        %v278 = vmul.f32 %v239, %v258
        %v279 = vmul.f32 %v240, %v258
        %v280 = vmul.f32 %v241, %v258
        %v281 = vmul.f32 %v242, %v258
        %v282 = vmul.f32 %v243, %v258
        %v283 = vmul.f32 %v244, %v258
        %v284 = vmul.f32 %v245, %v258
        %v285 = vmul.f32 %v246, %v258
        %v286 = vmul.f32 %v247, %v258
        %v287 = vmul.f32 %v248, %v258
        %v288 = vmul.f32 %v249, %v258
        %v289 = vmul.f32 %v250, %v258
        %v290 = vmul.f32 %v251, %v258
        %v291 = vmul.f32 %v252, %v258
        %v292 = vld [vmem:[%s3] sm:$0x1]
        %v294 = vlaneseq
        %v295 = vshrl.u32 %v294, 7
        %v296 = vsub.s32 0, %v295
        %v297 = vrot.slane %v292, %v296
        %v299 = vadd.f32 %v260, %v297
        %v300 = vadd.f32 %v261, %v297
        %v301 = vadd.f32 %v262, %v297
        %v302 = vadd.f32 %v263, %v297
        %v303 = vadd.f32 %v264, %v297
        %v304 = vadd.f32 %v265, %v297
        %v305 = vadd.f32 %v266, %v297
        %v306 = vadd.f32 %v267, %v297
        %v307 = vadd.f32 %v268, %v297
        %v308 = vadd.f32 %v269, %v297
        %v309 = vadd.f32 %v270, %v297
        %v310 = vadd.f32 %v271, %v297
        %v311 = vadd.f32 %v272, %v297
        %v312 = vadd.f32 %v273, %v297
        %v313 = vadd.f32 %v274, %v297
        %v314 = vadd.f32 %v275, %v297
        %v315 = vadd.f32 %v276, %v297
        %v316 = vadd.f32 %v277, %v297
        %v317 = vadd.f32 %v278, %v297
        %v318 = vadd.f32 %v279, %v297
        %v319 = vadd.f32 %v280, %v297
        %v320 = vadd.f32 %v281, %v297
        %v321 = vadd.f32 %v282, %v297
        %v322 = vadd.f32 %v283, %v297
        %v323 = vadd.f32 %v284, %v297
        %v324 = vadd.f32 %v285, %v297
        %v325 = vadd.f32 %v286, %v297
        %v326 = vadd.f32 %v287, %v297
        %v327 = vadd.f32 %v288, %v297
        %v328 = vadd.f32 %v289, %v297
        %v329 = vadd.f32 %v290, %v297
        %v330 = vadd.f32 %v291, %v297
        %v331 = vld [vmem:[%s218] sm:$0xff]
        %v332 = vld [vmem:[%s218 + $0x8] sm:$0xff]
        %v333 = vld [vmem:[%s218 + $0x10] sm:$0xff]
        %v334 = vld [vmem:[%s218 + $0x18] sm:$0xff]
        %v335 = vld [vmem:[%s218 + $0x20] sm:$0xff]
        %v336 = vld [vmem:[%s218 + $0x28] sm:$0xff]
        %v337 = vld [vmem:[%s218 + $0x30] sm:$0xff]
        %v338 = vld [vmem:[%s218 + $0x38] sm:$0xff]
        %v339 = vld [vmem:[%s218 + $0x40] sm:$0xff]
        %v340 = vld [vmem:[%s218 + $0x48] sm:$0xff]
        %v341 = vld [vmem:[%s218 + $0x50] sm:$0xff]
        %v342 = vld [vmem:[%s218 + $0x58] sm:$0xff]
        %v343 = vld [vmem:[%s218 + $0x60] sm:$0xff]
        %v344 = vld [vmem:[%s218 + $0x68] sm:$0xff]
        %v345 = vld [vmem:[%s218 + $0x70] sm:$0xff]
        %v346 = vld [vmem:[%s218 + $0x78] sm:$0xff]
        %v347 = vld [vmem:[%s218 + $0x80] sm:$0xff]
        %v348 = vld [vmem:[%s218 + $0x88] sm:$0xff]
        %v349 = vld [vmem:[%s218 + $0x90] sm:$0xff]
        %v350 = vld [vmem:[%s218 + $0x98] sm:$0xff]
        %v351 = vld [vmem:[%s218 + $0xa0] sm:$0xff]
        %v352 = vld [vmem:[%s218 + $0xa8] sm:$0xff]
        %v353 = vld [vmem:[%s218 + $0xb0] sm:$0xff]
        %v354 = vld [vmem:[%s218 + $0xb8] sm:$0xff]
        %v355 = vld [vmem:[%s218 + $0xc0] sm:$0xff]
        %v356 = vld [vmem:[%s218 + $0xc8] sm:$0xff]
        %v357 = vld [vmem:[%s218 + $0xd0] sm:$0xff]
        %v358 = vld [vmem:[%s218 + $0xd8] sm:$0xff]
        %v359 = vld [vmem:[%s218 + $0xe0] sm:$0xff]
        %v360 = vld [vmem:[%s218 + $0xe8] sm:$0xff]
        %v361 = vld [vmem:[%s218 + $0xf0] sm:$0xff]
        %v362 = vld [vmem:[%s218 + $0xf8] sm:$0xff]
        %v363 = vadd.f32 %v299, %v331
        %v364 = vadd.f32 %v300, %v332
        %v365 = vadd.f32 %v301, %v333
        %v366 = vadd.f32 %v302, %v334
        %v367 = vadd.f32 %v303, %v335
        %v368 = vadd.f32 %v304, %v336
        %v369 = vadd.f32 %v305, %v337
        %v370 = vadd.f32 %v306, %v338
        %v371 = vadd.f32 %v307, %v339
        %v372 = vadd.f32 %v308, %v340
        %v373 = vadd.f32 %v309, %v341
        %v374 = vadd.f32 %v310, %v342
        %v375 = vadd.f32 %v311, %v343
        %v376 = vadd.f32 %v312, %v344
        %v377 = vadd.f32 %v313, %v345
        %v378 = vadd.f32 %v314, %v346
        %v379 = vadd.f32 %v315, %v347
        %v380 = vadd.f32 %v316, %v348
        %v381 = vadd.f32 %v317, %v349
        %v382 = vadd.f32 %v318, %v350
        %v383 = vadd.f32 %v319, %v351
        %v384 = vadd.f32 %v320, %v352
        %v385 = vadd.f32 %v321, %v353
        %v386 = vadd.f32 %v322, %v354
        %v387 = vadd.f32 %v323, %v355
        %v388 = vadd.f32 %v324, %v356
        %v389 = vadd.f32 %v325, %v357
        %v390 = vadd.f32 %v326, %v358
        %v391 = vadd.f32 %v327, %v359
        %v392 = vadd.f32 %v328, %v360
        %v393 = vadd.f32 %v329, %v361
        %v394 = vadd.f32 %v330, %v362
        %v395 = vmax.f32 %v363, 0.0
        %v396 = vmax.f32 %v364, 0.0
        %v397 = vmax.f32 %v365, 0.0
        %v398 = vmax.f32 %v366, 0.0
        %v399 = vmax.f32 %v367, 0.0
        %v400 = vmax.f32 %v368, 0.0
        %v401 = vmax.f32 %v369, 0.0
        %v402 = vmax.f32 %v370, 0.0
        %v403 = vmax.f32 %v371, 0.0
        %v404 = vmax.f32 %v372, 0.0
        %v405 = vmax.f32 %v373, 0.0
        %v406 = vmax.f32 %v374, 0.0
        %v407 = vmax.f32 %v375, 0.0
        %v408 = vmax.f32 %v376, 0.0
        %v409 = vmax.f32 %v377, 0.0
        %v410 = vmax.f32 %v378, 0.0
        %v411 = vmax.f32 %v379, 0.0
        %v412 = vmax.f32 %v380, 0.0
        %v413 = vmax.f32 %v381, 0.0
        %v414 = vmax.f32 %v382, 0.0
        %v415 = vmax.f32 %v383, 0.0
        %v416 = vmax.f32 %v384, 0.0
        %v417 = vmax.f32 %v385, 0.0
        %v418 = vmax.f32 %v386, 0.0
        %v419 = vmax.f32 %v387, 0.0
        %v420 = vmax.f32 %v388, 0.0
        %v421 = vmax.f32 %v389, 0.0
        %v422 = vmax.f32 %v390, 0.0
        %v423 = vmax.f32 %v391, 0.0
        %v424 = vmax.f32 %v392, 0.0
        %v425 = vmax.f32 %v393, 0.0
        %v426 = vmax.f32 %v394, 0.0
        %427 = vst [vmem:[%s207] sm:$0xff] %v395
        %428 = vst [vmem:[%s207 + $0x8] sm:$0xff] %v396
        %429 = vst [vmem:[%s207 + $0x10] sm:$0xff] %v397
        %430 = vst [vmem:[%s207 + $0x18] sm:$0xff] %v398
        %431 = vst [vmem:[%s207 + $0x20] sm:$0xff] %v399
        %432 = vst [vmem:[%s207 + $0x28] sm:$0xff] %v400
        %433 = vst [vmem:[%s207 + $0x30] sm:$0xff] %v401
        %434 = vst [vmem:[%s207 + $0x38] sm:$0xff] %v402
        %435 = vst [vmem:[%s207 + $0x40] sm:$0xff] %v403
        %436 = vst [vmem:[%s207 + $0x48] sm:$0xff] %v404
        %437 = vst [vmem:[%s207 + $0x50] sm:$0xff] %v405
        %438 = vst [vmem:[%s207 + $0x58] sm:$0xff] %v406
        %439 = vst [vmem:[%s207 + $0x60] sm:$0xff] %v407
        %440 = vst [vmem:[%s207 + $0x68] sm:$0xff] %v408
        %441 = vst [vmem:[%s207 + $0x70] sm:$0xff] %v409
        %442 = vst [vmem:[%s207 + $0x78] sm:$0xff] %v410
        %443 = vst [vmem:[%s207 + $0x80] sm:$0xff] %v411
        %444 = vst [vmem:[%s207 + $0x88] sm:$0xff] %v412
        %445 = vst [vmem:[%s207 + $0x90] sm:$0xff] %v413
        %446 = vst [vmem:[%s207 + $0x98] sm:$0xff] %v414
        %447 = vst [vmem:[%s207 + $0xa0] sm:$0xff] %v415
        %448 = vst [vmem:[%s207 + $0xa8] sm:$0xff] %v416
        %449 = vst [vmem:[%s207 + $0xb0] sm:$0xff] %v417
        %450 = vst [vmem:[%s207 + $0xb8] sm:$0xff] %v418
        %451 = vst [vmem:[%s207 + $0xc0] sm:$0xff] %v419
        %452 = vst [vmem:[%s207 + $0xc8] sm:$0xff] %v420
        %453 = vst [vmem:[%s207 + $0xd0] sm:$0xff] %v421
        %454 = vst [vmem:[%s207 + $0xd8] sm:$0xff] %v422
        %455 = vst [vmem:[%s207 + $0xe0] sm:$0xff] %v423
        %456 = vst [vmem:[%s207 + $0xe8] sm:$0xff] %v424
        %457 = vst [vmem:[%s207 + $0xf0] sm:$0xff] %v425
        %458 = vst [vmem:[%s207 + $0xf8] sm:$0xff] %v426
        %s459 = sand.u32 %s120, 1
        %s460 = scalar_lea.sflag [#allocation3], %s459
        %s461 = sand.u32 %s120, 1
        %s462 = smul.addr %s461, 256
        %s463 = scalar_lea.vmem [#allocation2], %s462
        // Predicated region
        $region37: #{bottleneck_forward.7} parent=35 // pred_check
          %p464 = pneg %p130
        $region38: #{bottleneck_forward.7} parent=35 // pred_check_branch
          %466 = sbr.rel (%p464) target = $region40
        $region39: #{bottleneck_forward.7} parent=35 // pred_region
          %s467 = smul.u32 32, %s18
          %s469 = ssub.s32 4096, 4096
          %470 = vsyncadd %s460, %s469
          %s471 = smul.addr %s467, 128
          %s472 = scalar_lea.hbm %s4, %s471
          %s473 = sshll.u32 %s463, 4
          %s474 = int_to_ptr.vmem [resolvable:$true] %s473
          %479 = dma.vmem_to_hbm [thread:$0]  %s474, 4096, %s472, %s460, 128, 128, 8
        $region40: #{bottleneck_forward.7} parent=35 // pred_fallthru
          _
      $region36: #{bottleneck_forward.7} parent=5 // pred_fallthru
        _
      %p480 = scmp.le.s32.totalorder 2, %s13
      // Predicated region
      $region41: #{bottleneck_forward.7} parent=5 // pred_check
        %p481 = pneg %p480
      $region42: #{bottleneck_forward.7} parent=5 // pred_check_branch
        %483 = sbr.rel (%p481) target = $region44
      $region43: #{bottleneck_forward.7} parent=5 // pred_region
        %s484 = ssub.s32 %s13, 2
        // Predicated region
        $region45: #{bottleneck_forward.7} parent=43 // pred_check
          %p485 = pneg %p136
        $region46: #{bottleneck_forward.7} parent=43 // pred_check_branch
          %487 = sbr.rel (%p485) target = $region48
        $region47: #{bottleneck_forward.7} parent=43 // pred_region
          %s488 = sand.u32 %s121, 1
          %s489 = scalar_lea.sflag [#allocation3], %s488
          %s490 = sand.u32 %s121, 1
          %s491 = smul.addr %s490, 256
          %s492 = scalar_lea.vmem [#allocation2], %s491
          %493 = dma.done %s489, 4096
        $region48: #{bottleneck_forward.7} parent=43 // pred_fallthru
          _
      $region44: #{bottleneck_forward.7} parent=5 // pred_fallthru
        _
    $region6: #{bottleneck_forward.7} parent=1 // loop_footer
      %s17 = sadd.s32 1, %s13
    $region7: #{bottleneck_forward.7} parent=1 // loop_footer_branch
      %12 = sbr.rel target = $region3
    $region8: #{bottleneck_forward.7} parent=1 // loop_exit
      _
    %494 = vsyncpa [#allocation3], 1
    %s495 = scalar_lea.sflag [#allocation3], 1
    %496 = vsyncpa %s495, 1

// kernel: bottleneck_forward.4
$region0: #{bottleneck_forward.4}
  #allocation0 [shape = 'u32[]', space=smem, size = 0x4, offset = 0x4, fixed_abs, tag = 'smem constant byte address 0x4 - core index']
  #allocation1 [shape = 'u32[144,128]{1,0:T(1,128)}', space=vmem, size = 0x12000, scoped, tag = 'internal scratch']
  %s0 = inlined_call_operand.hbm [shape: f32[512,128], index: 0, kind: input, shape index: {}]
  %s1 = inlined_call_operand.vmem [shape: bf16[128,32], index: 1, kind: input, shape index: {}]
  %s2 = inlined_call_operand.vmem [shape: f32[512,32], index: 2, kind: output, shape index: {0}]
  %s3 = inlined_call_operand.vmem [shape: f32[2,2,32], index: 3, kind: output, shape index: {1}]
  %4 = xla_tuple %s2, %s3
  %s5 = sld [smem:[#allocation0]]
  $region53: #{bottleneck_forward.4} parent=0
    _
  %s7 = ssub.s32 1, %s5
  %s8 = scalar_select 0, %s7, %s5
  $region1: #{bottleneck_forward.4} parent=0
    #allocation2 [shape = 'u8[262144]{0}', space=vmem, size = 0x40000, scoped, tag = 'input window, operand 0']
    #allocation3 [shape = 's32[2]{0}', space=sflag, size = 0x8, scoped, tag = 'scoped memory for bottleneck_forward.4']
    %9 = vsyncpa [#allocation3], 0
    %s10 = scalar_lea.sflag [#allocation3], 1
    %11 = vsyncpa %s10, 0
    loop: start=0, step=1, limit=4
    $region2: #{bottleneck_forward.4} parent=1 // loop_pre_header
      _
    $region3: #{bottleneck_forward.4} parent=1 // loop_header
      %s13 = sphi 0, %s17
      %p14 = scmp.ge.s32.totalorder %s13, 4
      %s23 = sphi 0, %s25
      %s26 = sphi 0, %s23
      %s27 = sphi 0, %s26
      %s43 = sphi 0, %s27
      %s47 = sphi 0, %s47
      %s49 = sphi 0, %s47
      %s50 = sphi 0, %s49
      %s64 = sphi 0, %s50
      %s70 = sphi 0, %s72
      %s73 = sphi 0, %s70
      %s74 = sphi 0, %s73
      %s90 = sphi 0, %s74
      %s96 = sphi 0, %s98
      %s99 = sphi 0, %s96
      %s100 = sphi 0, %s99
      %s116 = sphi 0, %s100
    $region4: #{bottleneck_forward.4} parent=1 // loop_header_branch
      %16 = sbr.rel (%p14) target = $region8
    $region5: #{bottleneck_forward.4} parent=1 // loop_body
      %s18 = ssub.s32 %s13, 1
      %s19 = ssub.s32 %s13, 2
      %s20 = sadd.s32 %s13, 1
      %s21 = ssub.s32 %s13, %s20
      %p22 = scmp.eq.s32.totalorder %s21, 0
      %s24 = sadd.s32 %s23, 1
      %s25 = scalar_select %p22, %s23, %s24
      %p28 = pneg %p22
      %p29 = scmp.eq.s32.totalorder %s13, 1
      %p30 = por %p28, %p29
      %p31 = scmp.ne.s32.totalorder %s23, %s26
      %p32 = scmp.eq.s32.totalorder %s13, 0
      %p33 = por %p31, %p32
      %p34 = scmp.ne.s32.totalorder %s23, %s26
      %p35 = scmp.eq.s32.totalorder %s18, 1
      %p36 = por %p34, %p35
      %p37 = scmp.ne.s32.totalorder %s26, %s27
      %p38 = scmp.eq.s32.totalorder %s18, 0
      %p39 = por %p37, %p38
      %p40 = scmp.ne.s32.totalorder %s26, %s27
      %p41 = scmp.eq.s32.totalorder %s19, 1
      %p42 = por %p40, %p41
      %p44 = scmp.ne.s32.totalorder %s27, %s43
      %p45 = scmp.eq.s32.totalorder %s19, 0
      %p46 = por %p44, %p45
      %s48 = sadd.s32 %s47, 1
      %p51 = scmp.eq.s32.totalorder %s13, 1
      %p52 = scmp.ne.s32.totalorder %s47, %s49
      %p53 = scmp.eq.s32.totalorder %s13, 0
      %p54 = por %p52, %p53
      %p55 = scmp.ne.s32.totalorder %s47, %s49
      %p56 = scmp.eq.s32.totalorder %s18, 1
      %p57 = por %p55, %p56
      %p58 = scmp.ne.s32.totalorder %s49, %s50
      %p59 = scmp.eq.s32.totalorder %s18, 0
      %p60 = por %p58, %p59
      %p61 = scmp.ne.s32.totalorder %s49, %s50
      %p62 = scmp.eq.s32.totalorder %s19, 1
      %p63 = por %p61, %p62
      %p65 = scmp.ne.s32.totalorder %s50, %s64
      %p66 = scmp.eq.s32.totalorder %s19, 0
      %p67 = por %p65, %p66
      %s68 = ssub.s32 %s13, %s20
      %p69 = scmp.eq.s32.totalorder %s68, 0
      %s71 = sadd.s32 %s70, 1
      %s72 = scalar_select %p69, %s70, %s71
      %p75 = pneg %p69
      %p76 = scmp.eq.s32.totalorder %s13, 1
      %p77 = por %p75, %p76
      %p78 = scmp.ne.s32.totalorder %s70, %s73
      %p79 = scmp.eq.s32.totalorder %s13, 0
      %p80 = por %p78, %p79
      %p81 = scmp.ne.s32.totalorder %s70, %s73
      %p82 = scmp.eq.s32.totalorder %s18, 1
      %p83 = por %p81, %p82
      %p84 = scmp.ne.s32.totalorder %s73, %s74
      %p85 = scmp.eq.s32.totalorder %s18, 0
      %p86 = por %p84, %p85
      %p87 = scmp.ne.s32.totalorder %s73, %s74
      %p88 = scmp.eq.s32.totalorder %s19, 1
      %p89 = por %p87, %p88
      %p91 = scmp.ne.s32.totalorder %s74, %s90
      %p92 = scmp.eq.s32.totalorder %s19, 0
      %p93 = por %p91, %p92
      %s94 = ssub.s32 %s13, %s20
      %p95 = scmp.eq.s32.totalorder %s94, 0
      %s97 = sadd.s32 %s96, 1
      %s98 = scalar_select %p95, %s96, %s97
      %p101 = pneg %p95
      %p102 = scmp.eq.s32.totalorder %s13, 1
      %p103 = por %p101, %p102
      %p104 = scmp.ne.s32.totalorder %s96, %s99
      %p105 = scmp.eq.s32.totalorder %s13, 0
      %p106 = por %p104, %p105
      %p107 = scmp.ne.s32.totalorder %s96, %s99
      %p108 = scmp.eq.s32.totalorder %s18, 1
      %p109 = por %p107, %p108
      %p110 = scmp.ne.s32.totalorder %s99, %s100
      %p111 = scmp.eq.s32.totalorder %s18, 0
      %p112 = por %p110, %p111
      %p113 = scmp.ne.s32.totalorder %s99, %s100
      %p114 = scmp.eq.s32.totalorder %s19, 1
      %p115 = por %p113, %p114
      %p117 = scmp.ne.s32.totalorder %s100, %s116
      %p118 = scmp.eq.s32.totalorder %s19, 0
      %p119 = por %p117, %p118
      %p120 = scmp.le.s32.totalorder 1, %s13
      %p121 = scmp.lt.s32.totalorder %s13, 3
      %p122 = pnand %p120, %p121
      %p123 = pneg %p122
      // Predicated region
      $region9: #{bottleneck_forward.4} parent=5 // pred_check
        _
      $region10: #{bottleneck_forward.4} parent=5 // pred_check_branch
        %125 = sbr.rel (%p122) target = $region12
      $region11: #{bottleneck_forward.4} parent=5 // pred_region
        %s126 = ssub.s32 %s13, 1
        // Predicated region
        $region13: #{bottleneck_forward.4} parent=11 // pred_check
          %p127 = pneg %p60
        $region14: #{bottleneck_forward.4} parent=11 // pred_check_branch
          %129 = sbr.rel (%p127) target = $region16
        $region15: #{bottleneck_forward.4} parent=11 // pred_region
          _
        $region16: #{bottleneck_forward.4} parent=11 // pred_fallthru
          _
      $region12: #{bottleneck_forward.4} parent=5 // pred_fallthru
        _
      %p130 = scmp.lt.s32.totalorder %s13, 2
      // Predicated region
      $region17: #{bottleneck_forward.4} parent=5 // pred_check
        %p131 = pneg %p130
      $region18: #{bottleneck_forward.4} parent=5 // pred_check_branch
        %133 = sbr.rel (%p131) target = $region20
      $region19: #{bottleneck_forward.4} parent=5 // pred_region
        // Predicated region
        $region21: #{bottleneck_forward.4} parent=19 // pred_check
          %p134 = pneg %p33
        $region22: #{bottleneck_forward.4} parent=19 // pred_check_branch
          %136 = sbr.rel (%p134) target = $region24
        $region23: #{bottleneck_forward.4} parent=19 // pred_region
          %s137 = sand.u32 %s23, 1
          %s138 = scalar_lea.sflag [#allocation3], %s137
          %s139 = sand.u32 %s23, 1
          %s140 = smul.addr %s139, 256
          %s141 = scalar_lea.vmem [#allocation2], %s140
          %s142 = smul.u32 32, %s13
          %s144 = ssub.s32 4096, 4096
          %145 = vsyncadd %s138, %s144
          %s146 = smul.addr %s142, 128
          %s147 = scalar_lea.hbm %s0, %s146
          %s148 = sshll.u32 %s141, 4
          %s149 = int_to_ptr.vmem [resolvable:$true] %s148
          %154 = dma.hbm_to_vmem [thread:$0]  %s147, 4096, %s149, %s138, 128, 128, 8
        $region24: #{bottleneck_forward.4} parent=19 // pred_fallthru
          _
      $region20: #{bottleneck_forward.4} parent=5 // pred_fallthru
        _
      %p155 = scmp.le.s32.totalorder 1, %s13
      %p156 = scmp.lt.s32.totalorder %s13, 3
      %p157 = pnand %p155, %p156
      %p158 = pneg %p157
      // Predicated region
      $region25: #{bottleneck_forward.4} parent=5 // pred_check
        _
      $region26: #{bottleneck_forward.4} parent=5 // pred_check_branch
        %160 = sbr.rel (%p157) target = $region28
      $region27: #{bottleneck_forward.4} parent=5 // pred_region
        %s161 = ssub.s32 %s13, 1
        %s162 = sand.u32 %s26, 1
        %s163 = scalar_lea.sflag [#allocation3], %s162
        %s164 = sand.u32 %s26, 1
        %s165 = smul.addr %s164, 256
        %s166 = scalar_lea.vmem [#allocation2], %s165
        // Predicated region
        $region29: #{bottleneck_forward.4} parent=27 // pred_check
          %p167 = pneg %p39
        $region30: #{bottleneck_forward.4} parent=27 // pred_check_branch
          %169 = sbr.rel (%p167) target = $region32
        $region31: #{bottleneck_forward.4} parent=27 // pred_region
          %170 = dma.done %s163, 4096
        $region32: #{bottleneck_forward.4} parent=27 // pred_fallthru
          _
        %s171 = sand.u32 %s26, 1
        %s172 = scalar_lea.sflag [#allocation3], %s171
        %s173 = sand.u32 %s26, 1
        %s174 = smul.addr %s173, 256
        %s175 = scalar_lea.vmem [#allocation2], %s174
        %p176 = pneg %p39
        %p177 = pneg %p36
        %p178 = pneg %p60
        %p179 = pneg %p57
        %p180 = pneg %p86
        %p181 = pneg %p83
        %s182 = smul.u32 32, %s18
        %p183 = scmp.lt.s32.totalorder %s182, 63
        %s184 = scalar_select %p183, %s182, 63
        %s185 = smul.addr %s184, 8
        %s186 = scalar_lea.vmem %s2, %s185
        %p187 = pneg %p112
        %p188 = pneg %p109
        %p189 = scmp.lt.s32.totalorder %s18, 1
        %s190 = scalar_select %p189, %s18, 1
        %s191 = smul.addr %s190, 2
        %s192 = scalar_lea.vmem %s3, %s191
        %s193 = smul.u32 32, %s18
        %s194 = smul.u32 32, %s18
        %p195 = scmp.lt.s32.totalorder %s194, 63
        %s196 = scalar_select %p195, %s194, 63
        %s197 = smul.addr %s196, 8
        %s198 = scalar_lea.vmem %s2, %s197
        %s199 = smul.u32 32, %s18
        %p200 = scmp.lt.s32.totalorder %s18, 1
        %s201 = scalar_select %p200, %s18, 1
        %s202 = smul.addr %s201, 2
        %s203 = scalar_lea.vmem %s3, %s202
        %v205 = vld [vmem:[%s166] sm:$0xff]
        %v206 = vld [vmem:[%s166 + $0x8] sm:$0xff]
        %v207 = vld [vmem:[%s166 + $0x10] sm:$0xff]
        %v208 = vld [vmem:[%s166 + $0x18] sm:$0xff]
        %v209 = vld [vmem:[%s166 + $0x20] sm:$0xff]
        %v210 = vld [vmem:[%s166 + $0x28] sm:$0xff]
        %v211 = vld [vmem:[%s166 + $0x30] sm:$0xff]
        %v212 = vld [vmem:[%s166 + $0x38] sm:$0xff]
        %v213 = vld [vmem:[%s166 + $0x40] sm:$0xff]
        %v214 = vld [vmem:[%s166 + $0x48] sm:$0xff]
        %v215 = vld [vmem:[%s166 + $0x50] sm:$0xff]
        %v216 = vld [vmem:[%s166 + $0x58] sm:$0xff]
        %v217 = vld [vmem:[%s166 + $0x60] sm:$0xff]
        %v218 = vld [vmem:[%s166 + $0x68] sm:$0xff]
        %v219 = vld [vmem:[%s166 + $0x70] sm:$0xff]
        %v220 = vld [vmem:[%s166 + $0x78] sm:$0xff]
        %v221 = vld [vmem:[%s166 + $0x80] sm:$0xff]
        %v222 = vld [vmem:[%s166 + $0x88] sm:$0xff]
        %v223 = vld [vmem:[%s166 + $0x90] sm:$0xff]
        %v224 = vld [vmem:[%s166 + $0x98] sm:$0xff]
        %v225 = vld [vmem:[%s166 + $0xa0] sm:$0xff]
        %v226 = vld [vmem:[%s166 + $0xa8] sm:$0xff]
        %v227 = vld [vmem:[%s166 + $0xb0] sm:$0xff]
        %v228 = vld [vmem:[%s166 + $0xb8] sm:$0xff]
        %v229 = vld [vmem:[%s166 + $0xc0] sm:$0xff]
        %v230 = vld [vmem:[%s166 + $0xc8] sm:$0xff]
        %v231 = vld [vmem:[%s166 + $0xd0] sm:$0xff]
        %v232 = vld [vmem:[%s166 + $0xd8] sm:$0xff]
        %v233 = vld [vmem:[%s166 + $0xe0] sm:$0xff]
        %v234 = vld [vmem:[%s166 + $0xe8] sm:$0xff]
        %v235 = vld [vmem:[%s166 + $0xf0] sm:$0xff]
        %v236 = vld [vmem:[%s166 + $0xf8] sm:$0xff]
        %v237 = vpack.c.bf16 %v206, %v205
        %v238 = vpack.c.bf16 %v208, %v207
        %v239 = vpack.c.bf16 %v210, %v209
        %v240 = vpack.c.bf16 %v212, %v211
        %v241 = vpack.c.bf16 %v214, %v213
        %v242 = vpack.c.bf16 %v216, %v215
        %v243 = vpack.c.bf16 %v218, %v217
        %v244 = vpack.c.bf16 %v220, %v219
        %v245 = vpack.c.bf16 %v222, %v221
        %v246 = vpack.c.bf16 %v224, %v223
        %v247 = vpack.c.bf16 %v226, %v225
        %v248 = vpack.c.bf16 %v228, %v227
        %v249 = vpack.c.bf16 %v230, %v229
        %v250 = vpack.c.bf16 %v232, %v231
        %v251 = vpack.c.bf16 %v234, %v233
        %v252 = vpack.c.bf16 %v236, %v235
        %v253 = vld [vmem:[%s1] sm:$0xf]
        %v254 = vld [vmem:[%s1 + $0x4] sm:$0xf]
        %v255 = vld [vmem:[%s1 + $0x8] sm:$0xf]
        %v256 = vld [vmem:[%s1 + $0xc] sm:$0xf]
        %v257 = vld [vmem:[%s1 + $0x10] sm:$0xf]
        %v258 = vld [vmem:[%s1 + $0x14] sm:$0xf]
        %v259 = vld [vmem:[%s1 + $0x18] sm:$0xf]
        %v260 = vld [vmem:[%s1 + $0x1c] sm:$0xf]
        %v261 = vld [vmem:[%s1 + $0x20] sm:$0xf]
        %v262 = vld [vmem:[%s1 + $0x24] sm:$0xf]
        %v263 = vld [vmem:[%s1 + $0x28] sm:$0xf]
        %v264 = vld [vmem:[%s1 + $0x2c] sm:$0xf]
        %v265 = vld [vmem:[%s1 + $0x30] sm:$0xf]
        %v266 = vld [vmem:[%s1 + $0x34] sm:$0xf]
        %v267 = vld [vmem:[%s1 + $0x38] sm:$0xf]
        %v268 = vld [vmem:[%s1 + $0x3c] sm:$0xf]
        %v285 = vunpack.c.l.b16 %v253
        %v286 = vunpack.c.l.b16 %v254
        %v287 = vunpack.c.l.b16 %v255
        %v288 = vunpack.c.l.b16 %v256
        %v289 = vunpack.c.l.b16 %v257
        %v290 = vunpack.c.l.b16 %v258
        %v291 = vunpack.c.l.b16 %v259
        %v292 = vunpack.c.l.b16 %v260
        %v293 = vunpack.c.l.b16 %v261
        %v294 = vunpack.c.l.b16 %v262
        %v295 = vunpack.c.l.b16 %v263
        %v296 = vunpack.c.l.b16 %v264
        %v297 = vunpack.c.l.b16 %v265
        %v298 = vunpack.c.l.b16 %v266
        %v299 = vunpack.c.l.b16 %v267
        %v300 = vunpack.c.l.b16 %v268
        %v301 = vpack.c.b16 %v286, %v285
        %v302 = vpack.c.b16 %v288, %v287
        %v303 = vpack.c.b16 %v290, %v289
        %v304 = vpack.c.b16 %v292, %v291
        %v305 = vpack.c.b16 %v294, %v293
        %v306 = vpack.c.b16 %v296, %v295
        %v307 = vpack.c.b16 %v298, %v297
        %v308 = vpack.c.b16 %v300, %v299
        %317 = vmatprep.subr.bf16.mxu0 0
        %318 = vmatpush1.bf16.msra.mxu0 %v301
        %319 = vmatprep.subr.bf16.mxu0 0
        %320 = vmatpush1.bf16.msra.mxu0 %v302
        %321 = vmatprep.subr.bf16.mxu0 0
        %322 = vmatpush1.bf16.msra.mxu0 %v303
        %323 = vmatprep.subr.bf16.mxu0 0
        %324 = vmatpush1.bf16.msra.mxu0 %v304
        %325 = vmatprep.subr.bf16.mxu0 0
        %326 = vmatpush1.bf16.msra.mxu0 %v305
        %327 = vmatprep.subr.bf16.mxu0 0
        %328 = vmatpush1.bf16.msra.mxu0 %v306
        %329 = vmatprep.subr.bf16.mxu0 0
        %330 = vmatpush1.bf16.msra.mxu0 %v307
        %331 = vmatprep.subr.bf16.mxu0 0
        %332 = vmatpush1.bf16.msra.mxu0 %v308
        %333 = vmatprep.subr.bf16.mxu0 0
        %334 = vmatpush1.bf16.msra.mxu0 0
        %335 = vmatprep.subr.bf16.mxu0 0
        %336 = vmatpush1.bf16.msra.mxu0 0
        %337 = vmatprep.subr.bf16.mxu0 0
        %338 = vmatpush1.bf16.msra.mxu0 0
        %339 = vmatprep.subr.bf16.mxu0 0
        %340 = vmatpush1.bf16.msra.mxu0 0
        %341 = vmatprep.subr.bf16.mxu0 0
        %342 = vmatpush1.bf16.msra.mxu0 0
        %343 = vmatprep.subr.bf16.mxu0 0
        %344 = vmatpush1.bf16.msra.mxu0 0
        %345 = vmatprep.subr.bf16.mxu0 0
        %346 = vmatpush1.bf16.msra.mxu0 0
        %347 = vmatprep.subr.bf16.mxu0 0
        %348 = vmatpush1.bf16.msra.mxu0 0
        %349 = vmatprep.mubr.bf16.mxu0 0
        %350 = vmatmul.mubr.bf16.gmra.mrb[0].mxu0 %v237
        %v351 = vpop.f32.mrb[0].mxu0
        %v352 = vadd.f32 0.0, %v351
        %v353 = vpop.f32.mrb[0].mxu0
        %v354 = vpop.f32.mrb[0].mxu0
        %v355 = vadd.f32 0.0, %v354
        %v356 = vpop.f32.mrb[0].mxu0
        %357 = vmatprep.mubr.bf16.mxu0 0
        %358 = vmatmul.mubr.bf16.gmra.mrb[0].mxu0 %v238
        %v359 = vpop.f32.mrb[0].mxu0
        %v360 = vadd.f32 0.0, %v359
        %v361 = vpop.f32.mrb[0].mxu0
        %v362 = vpop.f32.mrb[0].mxu0
        %v363 = vadd.f32 0.0, %v362
        %v364 = vpop.f32.mrb[0].mxu0
        %365 = vmatprep.mubr.bf16.mxu0 0
        %366 = vmatmul.mubr.bf16.gmra.mrb[0].mxu0 %v239
        %v367 = vpop.f32.mrb[0].mxu0
        %v368 = vadd.f32 0.0, %v367
        %v369 = vpop.f32.mrb[0].mxu0
        %v370 = vpop.f32.mrb[0].mxu0
        %v371 = vadd.f32 0.0, %v370
        %v372 = vpop.f32.mrb[0].mxu0
        %373 = vmatprep.mubr.bf16.mxu0 0
        %374 = vmatmul.mubr.bf16.gmra.mrb[0].mxu0 %v240
        %v375 = vpop.f32.mrb[0].mxu0
        %v376 = vadd.f32 0.0, %v375
        %v377 = vpop.f32.mrb[0].mxu0
        %v378 = vpop.f32.mrb[0].mxu0
        %v379 = vadd.f32 0.0, %v378
        %v380 = vpop.f32.mrb[0].mxu0
        %381 = vmatprep.mubr.bf16.mxu0 0
        %382 = vmatmul.mubr.bf16.gmra.mrb[0].mxu0 %v241
        %v383 = vpop.f32.mrb[0].mxu0
        %v384 = vadd.f32 0.0, %v383
        %v385 = vpop.f32.mrb[0].mxu0
        %v386 = vpop.f32.mrb[0].mxu0
        %v387 = vadd.f32 0.0, %v386
        %v388 = vpop.f32.mrb[0].mxu0
        %389 = vmatprep.mubr.bf16.mxu0 0
        %390 = vmatmul.mubr.bf16.gmra.mrb[0].mxu0 %v242
        %v391 = vpop.f32.mrb[0].mxu0
        %v392 = vadd.f32 0.0, %v391
        %v393 = vpop.f32.mrb[0].mxu0
        %v394 = vpop.f32.mrb[0].mxu0
        %v395 = vadd.f32 0.0, %v394
        %v396 = vpop.f32.mrb[0].mxu0
        %397 = vmatprep.mubr.bf16.mxu0 0
        %398 = vmatmul.mubr.bf16.gmra.mrb[0].mxu0 %v243
        %v399 = vpop.f32.mrb[0].mxu0
        %v400 = vadd.f32 0.0, %v399
        %v401 = vpop.f32.mrb[0].mxu0
        %v402 = vpop.f32.mrb[0].mxu0
        %v403 = vadd.f32 0.0, %v402
        %v404 = vpop.f32.mrb[0].mxu0
        %405 = vmatprep.mubr.bf16.mxu0 0
        %406 = vmatmul.mubr.bf16.gmra.mrb[0].mxu0 %v244
        %v407 = vpop.f32.mrb[0].mxu0
        %v408 = vadd.f32 0.0, %v407
        %v409 = vpop.f32.mrb[0].mxu0
        %v410 = vpop.f32.mrb[0].mxu0
        %v411 = vadd.f32 0.0, %v410
        %v412 = vpop.f32.mrb[0].mxu0
        %413 = vmatprep.mubr.bf16.mxu0 0
        %414 = vmatmul.mubr.bf16.gmra.mrb[0].mxu0 %v245
        %v415 = vpop.f32.mrb[0].mxu0
        %v416 = vadd.f32 0.0, %v415
        %v417 = vpop.f32.mrb[0].mxu0
        %v418 = vpop.f32.mrb[0].mxu0
        %v419 = vadd.f32 0.0, %v418
        %v420 = vpop.f32.mrb[0].mxu0
        %421 = vmatprep.mubr.bf16.mxu0 0
        %422 = vmatmul.mubr.bf16.gmra.mrb[0].mxu0 %v246
        %v423 = vpop.f32.mrb[0].mxu0
        %v424 = vadd.f32 0.0, %v423
        %v425 = vpop.f32.mrb[0].mxu0
        %v426 = vpop.f32.mrb[0].mxu0
        %v427 = vadd.f32 0.0, %v426
        %v428 = vpop.f32.mrb[0].mxu0
        %429 = vmatprep.mubr.bf16.mxu0 0
        %430 = vmatmul.mubr.bf16.gmra.mrb[0].mxu0 %v247
        %v431 = vpop.f32.mrb[0].mxu0
        %v432 = vadd.f32 0.0, %v431
        %v433 = vpop.f32.mrb[0].mxu0
        %v434 = vpop.f32.mrb[0].mxu0
        %v435 = vadd.f32 0.0, %v434
        %v436 = vpop.f32.mrb[0].mxu0
        %437 = vmatprep.mubr.bf16.mxu0 0
        %438 = vmatmul.mubr.bf16.gmra.mrb[0].mxu0 %v248
        %v439 = vpop.f32.mrb[0].mxu0
        %v440 = vadd.f32 0.0, %v439
        %v441 = vpop.f32.mrb[0].mxu0
        %v442 = vpop.f32.mrb[0].mxu0
        %v443 = vadd.f32 0.0, %v442
        %v444 = vpop.f32.mrb[0].mxu0
        %445 = vmatprep.mubr.bf16.mxu0 0
        %446 = vmatmul.mubr.bf16.gmra.mrb[0].mxu0 %v249
        %v447 = vpop.f32.mrb[0].mxu0
        %v448 = vadd.f32 0.0, %v447
        %v449 = vpop.f32.mrb[0].mxu0
        %v450 = vpop.f32.mrb[0].mxu0
        %v451 = vadd.f32 0.0, %v450
        %v452 = vpop.f32.mrb[0].mxu0
        %453 = vmatprep.mubr.bf16.mxu0 0
        %454 = vmatmul.mubr.bf16.gmra.mrb[0].mxu0 %v250
        %v455 = vpop.f32.mrb[0].mxu0
        %v456 = vadd.f32 0.0, %v455
        %v457 = vpop.f32.mrb[0].mxu0
        %v458 = vpop.f32.mrb[0].mxu0
        %v459 = vadd.f32 0.0, %v458
        %v460 = vpop.f32.mrb[0].mxu0
        %461 = vmatprep.mubr.bf16.mxu0 0
        %462 = vmatmul.mubr.bf16.gmra.mrb[0].mxu0 %v251
        %v463 = vpop.f32.mrb[0].mxu0
        %v464 = vadd.f32 0.0, %v463
        %v465 = vpop.f32.mrb[0].mxu0
        %v466 = vpop.f32.mrb[0].mxu0
        %v467 = vadd.f32 0.0, %v466
        %v468 = vpop.f32.mrb[0].mxu0
        %469 = vmatprep.mubr.bf16.mxu0 0
        %470 = vmatmul.mubr.bf16.gmra.mrb[0].mxu0 %v252
        %v471 = vpop.f32.mrb[0].mxu0
        %v472 = vadd.f32 0.0, %v471
        %v473 = vpop.f32.mrb[0].mxu0
        %v474 = vpop.f32.mrb[0].mxu0
        %v475 = vadd.f32 0.0, %v474
        %v476 = vpop.f32.mrb[0].mxu0
        %477 = vdwg.mxu0
        %vm478 = vcmask 261120
        %479 = vst.msk [vmem:[%s198] sm:$0xff] %vm478, %v352
        %480 = vst.msk [vmem:[%s198 + $0x8] sm:$0xff] %vm478, %v355
        %481 = vst.msk [vmem:[%s198 + $0x10] sm:$0xff] %vm478, %v360
        %482 = vst.msk [vmem:[%s198 + $0x18] sm:$0xff] %vm478, %v363
        %483 = vst.msk [vmem:[%s198 + $0x20] sm:$0xff] %vm478, %v368
        %484 = vst.msk [vmem:[%s198 + $0x28] sm:$0xff] %vm478, %v371
        %485 = vst.msk [vmem:[%s198 + $0x30] sm:$0xff] %vm478, %v376
        %486 = vst.msk [vmem:[%s198 + $0x38] sm:$0xff] %vm478, %v379
        %487 = vst.msk [vmem:[%s198 + $0x40] sm:$0xff] %vm478, %v384
        %488 = vst.msk [vmem:[%s198 + $0x48] sm:$0xff] %vm478, %v387
        %489 = vst.msk [vmem:[%s198 + $0x50] sm:$0xff] %vm478, %v392
        %490 = vst.msk [vmem:[%s198 + $0x58] sm:$0xff] %vm478, %v395
        %491 = vst.msk [vmem:[%s198 + $0x60] sm:$0xff] %vm478, %v400
        %492 = vst.msk [vmem:[%s198 + $0x68] sm:$0xff] %vm478, %v403
        %493 = vst.msk [vmem:[%s198 + $0x70] sm:$0xff] %vm478, %v408
        %494 = vst.msk [vmem:[%s198 + $0x78] sm:$0xff] %vm478, %v411
        %495 = vst.msk [vmem:[%s198 + $0x80] sm:$0xff] %vm478, %v416
        %496 = vst.msk [vmem:[%s198 + $0x88] sm:$0xff] %vm478, %v419
        %497 = vst.msk [vmem:[%s198 + $0x90] sm:$0xff] %vm478, %v424
        %498 = vst.msk [vmem:[%s198 + $0x98] sm:$0xff] %vm478, %v427
        %499 = vst.msk [vmem:[%s198 + $0xa0] sm:$0xff] %vm478, %v432
        %500 = vst.msk [vmem:[%s198 + $0xa8] sm:$0xff] %vm478, %v435
        %501 = vst.msk [vmem:[%s198 + $0xb0] sm:$0xff] %vm478, %v440
        %502 = vst.msk [vmem:[%s198 + $0xb8] sm:$0xff] %vm478, %v443
        %503 = vst.msk [vmem:[%s198 + $0xc0] sm:$0xff] %vm478, %v448
        %504 = vst.msk [vmem:[%s198 + $0xc8] sm:$0xff] %vm478, %v451
        %505 = vst.msk [vmem:[%s198 + $0xd0] sm:$0xff] %vm478, %v456
        %506 = vst.msk [vmem:[%s198 + $0xd8] sm:$0xff] %vm478, %v459
        %507 = vst.msk [vmem:[%s198 + $0xe0] sm:$0xff] %vm478, %v464
        %508 = vst.msk [vmem:[%s198 + $0xe8] sm:$0xff] %vm478, %v467
        %509 = vst.msk [vmem:[%s198 + $0xf0] sm:$0xff] %vm478, %v472
        %510 = vst.msk [vmem:[%s198 + $0xf8] sm:$0xff] %vm478, %v475
        %v511 = vsel %vm478, %v352, 0.0
        %v512 = vsel %vm478, %v355, 0.0
        %v513 = vadd.f32 %v511, %v512
        %v514 = vsel %vm478, %v360, 0.0
        %v515 = vadd.f32 %v513, %v514
        %v516 = vsel %vm478, %v363, 0.0
        %v517 = vadd.f32 %v515, %v516
        %v518 = vsel %vm478, %v368, 0.0
        %v519 = vadd.f32 %v517, %v518
        %v520 = vsel %vm478, %v371, 0.0
        %v521 = vadd.f32 %v519, %v520
        %v522 = vsel %vm478, %v376, 0.0
        %v523 = vadd.f32 %v521, %v522
        %v524 = vsel %vm478, %v379, 0.0
        %v525 = vadd.f32 %v523, %v524
        %v526 = vsel %vm478, %v384, 0.0
        %v527 = vadd.f32 %v525, %v526
        %v528 = vsel %vm478, %v387, 0.0
        %v529 = vadd.f32 %v527, %v528
        %v530 = vsel %vm478, %v392, 0.0
        %v531 = vadd.f32 %v529, %v530
        %v532 = vsel %vm478, %v395, 0.0
        %v533 = vadd.f32 %v531, %v532
        %v534 = vsel %vm478, %v400, 0.0
        %v535 = vadd.f32 %v533, %v534
        %v536 = vsel %vm478, %v403, 0.0
        %v537 = vadd.f32 %v535, %v536
        %v538 = vsel %vm478, %v408, 0.0
        %v539 = vadd.f32 %v537, %v538
        %v540 = vsel %vm478, %v411, 0.0
        %v541 = vadd.f32 %v539, %v540
        %v542 = vsel %vm478, %v416, 0.0
        %v543 = vadd.f32 %v541, %v542
        %v544 = vsel %vm478, %v419, 0.0
        %v545 = vadd.f32 %v543, %v544
        %v546 = vsel %vm478, %v424, 0.0
        %v547 = vadd.f32 %v545, %v546
        %v548 = vsel %vm478, %v427, 0.0
        %v549 = vadd.f32 %v547, %v548
        %v550 = vsel %vm478, %v432, 0.0
        %v551 = vadd.f32 %v549, %v550
        %v552 = vsel %vm478, %v435, 0.0
        %v553 = vadd.f32 %v551, %v552
        %v554 = vsel %vm478, %v440, 0.0
        %v555 = vadd.f32 %v553, %v554
        %v556 = vsel %vm478, %v443, 0.0
        %v557 = vadd.f32 %v555, %v556
        %v558 = vsel %vm478, %v448, 0.0
        %v559 = vadd.f32 %v557, %v558
        %v560 = vsel %vm478, %v451, 0.0
        %v561 = vadd.f32 %v559, %v560
        %v562 = vsel %vm478, %v456, 0.0
        %v563 = vadd.f32 %v561, %v562
        %v564 = vsel %vm478, %v459, 0.0
        %v565 = vadd.f32 %v563, %v564
        %v566 = vsel %vm478, %v464, 0.0
        %v567 = vadd.f32 %v565, %v566
        %v568 = vsel %vm478, %v467, 0.0
        %v569 = vadd.f32 %v567, %v568
        %v570 = vsel %vm478, %v472, 0.0
        %v571 = vadd.f32 %v569, %v570
        %v572 = vsel %vm478, %v475, 0.0
        %v573 = vadd.f32 %v571, %v572
        %v574 = vrot.slane %v573, 4
        %v575 = vadd.f32 %v573, %v574
        %v576 = vrot.slane %v575, 2
        %v577 = vadd.f32 %v575, %v576
        %v578 = vrot.slane %v577, 1
        %v579 = vadd.f32 %v577, %v578
        %v580 = vmul.f32 %v352, %v352
        %v581 = vmul.f32 %v355, %v355
        %v582 = vmul.f32 %v360, %v360
        %v583 = vmul.f32 %v363, %v363
        %v584 = vmul.f32 %v368, %v368
        %v585 = vmul.f32 %v371, %v371
        %v586 = vmul.f32 %v376, %v376
        %v587 = vmul.f32 %v379, %v379
        %v588 = vmul.f32 %v384, %v384
        %v589 = vmul.f32 %v387, %v387
        %v590 = vmul.f32 %v392, %v392
        %v591 = vmul.f32 %v395, %v395
        %v592 = vmul.f32 %v400, %v400
        %v593 = vmul.f32 %v403, %v403
        %v594 = vmul.f32 %v408, %v408
        %v595 = vmul.f32 %v411, %v411
        %v596 = vmul.f32 %v416, %v416
        %v597 = vmul.f32 %v419, %v419
        %v598 = vmul.f32 %v424, %v424
        %v599 = vmul.f32 %v427, %v427
        %v600 = vmul.f32 %v432, %v432
        %v601 = vmul.f32 %v435, %v435
        %v602 = vmul.f32 %v440, %v440
        %v603 = vmul.f32 %v443, %v443
        %v604 = vmul.f32 %v448, %v448
        %v605 = vmul.f32 %v451, %v451
        %v606 = vmul.f32 %v456, %v456
        %v607 = vmul.f32 %v459, %v459
        %v608 = vmul.f32 %v464, %v464
        %v609 = vmul.f32 %v467, %v467
        %v610 = vmul.f32 %v472, %v472
        %v611 = vmul.f32 %v475, %v475
        %v612 = vsel %vm478, %v580, 0.0
        %v613 = vsel %vm478, %v581, 0.0
        %v614 = vadd.f32 %v612, %v613
        %v615 = vsel %vm478, %v582, 0.0
        %v616 = vadd.f32 %v614, %v615
        %v617 = vsel %vm478, %v583, 0.0
        %v618 = vadd.f32 %v616, %v617
        %v619 = vsel %vm478, %v584, 0.0
        %v620 = vadd.f32 %v618, %v619
        %v621 = vsel %vm478, %v585, 0.0
        %v622 = vadd.f32 %v620, %v621
        %v623 = vsel %vm478, %v586, 0.0
        %v624 = vadd.f32 %v622, %v623
        %v625 = vsel %vm478, %v587, 0.0
        %v626 = vadd.f32 %v624, %v625
        %v627 = vsel %vm478, %v588, 0.0
        %v628 = vadd.f32 %v626, %v627
        %v629 = vsel %vm478, %v589, 0.0
        %v630 = vadd.f32 %v628, %v629
        %v631 = vsel %vm478, %v590, 0.0
        %v632 = vadd.f32 %v630, %v631
        %v633 = vsel %vm478, %v591, 0.0
        %v634 = vadd.f32 %v632, %v633
        %v635 = vsel %vm478, %v592, 0.0
        %v636 = vadd.f32 %v634, %v635
        %v637 = vsel %vm478, %v593, 0.0
        %v638 = vadd.f32 %v636, %v637
        %v639 = vsel %vm478, %v594, 0.0
        %v640 = vadd.f32 %v638, %v639
        %v641 = vsel %vm478, %v595, 0.0
        %v642 = vadd.f32 %v640, %v641
        %v643 = vsel %vm478, %v596, 0.0
        %v644 = vadd.f32 %v642, %v643
        %v645 = vsel %vm478, %v597, 0.0
        %v646 = vadd.f32 %v644, %v645
        %v647 = vsel %vm478, %v598, 0.0
        %v648 = vadd.f32 %v646, %v647
        %v649 = vsel %vm478, %v599, 0.0
        %v650 = vadd.f32 %v648, %v649
        %v651 = vsel %vm478, %v600, 0.0
        %v652 = vadd.f32 %v650, %v651
        %v653 = vsel %vm478, %v601, 0.0
        %v654 = vadd.f32 %v652, %v653
        %v655 = vsel %vm478, %v602, 0.0
        %v656 = vadd.f32 %v654, %v655
        %v657 = vsel %vm478, %v603, 0.0
        %v658 = vadd.f32 %v656, %v657
        %v659 = vsel %vm478, %v604, 0.0
        %v660 = vadd.f32 %v658, %v659
        %v661 = vsel %vm478, %v605, 0.0
        %v662 = vadd.f32 %v660, %v661
        %v663 = vsel %vm478, %v606, 0.0
        %v664 = vadd.f32 %v662, %v663
        %v665 = vsel %vm478, %v607, 0.0
        %v666 = vadd.f32 %v664, %v665
        %v667 = vsel %vm478, %v608, 0.0
        %v668 = vadd.f32 %v666, %v667
        %v669 = vsel %vm478, %v609, 0.0
        %v670 = vadd.f32 %v668, %v669
        %v671 = vsel %vm478, %v610, 0.0
        %v672 = vadd.f32 %v670, %v671
        %v673 = vsel %vm478, %v611, 0.0
        %v674 = vadd.f32 %v672, %v673
        %v675 = vrot.slane %v674, 4
        %v676 = vadd.f32 %v674, %v675
        %v677 = vrot.slane %v676, 2
        %v678 = vadd.f32 %v676, %v677
        %v679 = vrot.slane %v678, 1
        %v680 = vadd.f32 %v678, %v679
        %vm681 = vcmask 1040384
        %v682 = vsel %vm681, %v579, %v680
        %vm683 = vcmask 254976
        %684 = vst.msk [vmem:[%s203] sm:$0x3] %vm683, %v682
        %s685 = smul.u32 32, %s18
        %p686 = scmp.lt.s32.totalorder %s685, 63
        %s687 = scalar_select %p686, %s685, 63
        %s688 = smul.addr %s687, 8
        %s689 = scalar_lea.vmem %s2, %s688
        %p690 = scmp.lt.s32.totalorder %s18, 1
        %s691 = scalar_select %p690, %s18, 1
        %s692 = smul.addr %s691, 2
        %s693 = scalar_lea.vmem %s3, %s692
        // Predicated region
        $region33: #{bottleneck_forward.4} parent=27 // pred_check
          %p694 = pneg %p83
        $region34: #{bottleneck_forward.4} parent=27 // pred_check_branch
          %696 = sbr.rel (%p694) target = $region36
        $region35: #{bottleneck_forward.4} parent=27 // pred_region
          %s697 = smul.u32 32, %s18
        $region36: #{bottleneck_forward.4} parent=27 // pred_fallthru
          _
        // Predicated region
        $region37: #{bottleneck_forward.4} parent=27 // pred_check
          %p698 = pneg %p109
        $region38: #{bottleneck_forward.4} parent=27 // pred_check_branch
          %700 = sbr.rel (%p698) target = $region40
        $region39: #{bottleneck_forward.4} parent=27 // pred_region
          _
        $region40: #{bottleneck_forward.4} parent=27 // pred_fallthru
          _
      $region28: #{bottleneck_forward.4} parent=5 // pred_fallthru
        _
      %p701 = scmp.le.s32.totalorder 2, %s13
      // Predicated region
      $region41: #{bottleneck_forward.4} parent=5 // pred_check
        %p702 = pneg %p701
      $region42: #{bottleneck_forward.4} parent=5 // pred_check_branch
        %704 = sbr.rel (%p702) target = $region44
      $region43: #{bottleneck_forward.4} parent=5 // pred_region
        %s705 = ssub.s32 %s13, 2
        // Predicated region
        $region45: #{bottleneck_forward.4} parent=43 // pred_check
          %p706 = pneg %p89
        $region46: #{bottleneck_forward.4} parent=43 // pred_check_branch
          %708 = sbr.rel (%p706) target = $region48
        $region47: #{bottleneck_forward.4} parent=43 // pred_region
          %s709 = smul.u32 32, %s19
          %p710 = scmp.lt.s32.totalorder %s709, 63
          %s711 = scalar_select %p710, %s709, 63
          %s712 = smul.addr %s711, 8
          %s713 = scalar_lea.vmem %s2, %s712
        $region48: #{bottleneck_forward.4} parent=43 // pred_fallthru
          _
        // Predicated region
        $region49: #{bottleneck_forward.4} parent=43 // pred_check
          %p714 = pneg %p115
        $region50: #{bottleneck_forward.4} parent=43 // pred_check_branch
          %716 = sbr.rel (%p714) target = $region52
        $region51: #{bottleneck_forward.4} parent=43 // pred_region
          %p717 = scmp.lt.s32.totalorder %s19, 1
          %s718 = scalar_select %p717, %s19, 1
          %s719 = smul.addr %s718, 2
          %s720 = scalar_lea.vmem %s3, %s719
        $region52: #{bottleneck_forward.4} parent=43 // pred_fallthru
          _
      $region44: #{bottleneck_forward.4} parent=5 // pred_fallthru
        _
    $region6: #{bottleneck_forward.4} parent=1 // loop_footer
      %s17 = sadd.s32 1, %s13
    $region7: #{bottleneck_forward.4} parent=1 // loop_footer_branch
      %12 = sbr.rel target = $region3
    $region8: #{bottleneck_forward.4} parent=1 // loop_exit
      _
    %721 = vsyncpa [#allocation3], 1
    %s722 = scalar_lea.sflag [#allocation3], 1
    %723 = vsyncpa %s722, 1

// kernel: bottleneck_forward.6
$region0: #{bottleneck_forward.6}
  #allocation0 [shape = 'u32[]', space=smem, size = 0x4, offset = 0x4, fixed_abs, tag = 'smem constant byte address 0x4 - core index']
  #allocation1 [shape = 'u32[144,128]{1,0:T(1,128)}', space=vmem, size = 0x12000, scoped, tag = 'internal scratch']
  %s0 = inlined_call_operand.vmem [shape: f32[512,32], index: 0, kind: input, shape index: {}]
  %s1 = inlined_call_operand.vmem [shape: f32[1,32], index: 1, kind: input, shape index: {}]
  %s2 = inlined_call_operand.vmem [shape: f32[1,32], index: 2, kind: input, shape index: {}]
  %s3 = inlined_call_operand.vmem [shape: bf16[32,128], index: 3, kind: input, shape index: {}]
  %s4 = inlined_call_operand.vmem [shape: f32[512,128], index: 4, kind: output, shape index: {0}]
  %s5 = inlined_call_operand.vmem [shape: f32[2,2,128], index: 5, kind: output, shape index: {1}]
  %6 = xla_tuple %s4, %s5
  %s7 = sld [smem:[#allocation0]]
  $region57: #{bottleneck_forward.6} parent=0
    _
  %s9 = ssub.s32 1, %s7
  %s10 = scalar_select 0, %s9, %s7
  loop: start=0, step=1, limit=4
  $region2: #{bottleneck_forward.6} parent=0 // loop_pre_header
    _
  $region3: #{bottleneck_forward.6} parent=0 // loop_header
    %s12 = sphi 0, %s16
    %p13 = scmp.ge.s32.totalorder %s12, 4
    %s22 = sphi 0, %s24
    %s25 = sphi 0, %s22
    %s26 = sphi 0, %s25
    %s42 = sphi 0, %s26
    %s46 = sphi 0, %s46
    %s48 = sphi 0, %s46
    %s49 = sphi 0, %s48
    %s63 = sphi 0, %s49
    %s67 = sphi 0, %s67
    %s69 = sphi 0, %s67
    %s70 = sphi 0, %s69
    %s84 = sphi 0, %s70
    %s88 = sphi 0, %s88
    %s90 = sphi 0, %s88
    %s91 = sphi 0, %s90
    %s105 = sphi 0, %s91
    %s111 = sphi 0, %s113
    %s114 = sphi 0, %s111
    %s115 = sphi 0, %s114
    %s131 = sphi 0, %s115
    %s137 = sphi 0, %s139
    %s140 = sphi 0, %s137
    %s141 = sphi 0, %s140
    %s157 = sphi 0, %s141
  $region4: #{bottleneck_forward.6} parent=0 // loop_header_branch
    %15 = sbr.rel (%p13) target = $region8
  $region5: #{bottleneck_forward.6} parent=0 // loop_body
    %s17 = ssub.s32 %s12, 1
    %s18 = ssub.s32 %s12, 2
    %s19 = sadd.s32 %s12, 1
    %s20 = ssub.s32 %s12, %s19
    %p21 = scmp.eq.s32.totalorder %s20, 0
    %s23 = sadd.s32 %s22, 1
    %s24 = scalar_select %p21, %s22, %s23
    %p27 = pneg %p21
    %p28 = scmp.eq.s32.totalorder %s12, 1
    %p29 = por %p27, %p28
    %p30 = scmp.ne.s32.totalorder %s22, %s25
    %p31 = scmp.eq.s32.totalorder %s12, 0
    %p32 = por %p30, %p31
    %p33 = scmp.ne.s32.totalorder %s22, %s25
    %p34 = scmp.eq.s32.totalorder %s17, 1
    %p35 = por %p33, %p34
    %p36 = scmp.ne.s32.totalorder %s25, %s26
    %p37 = scmp.eq.s32.totalorder %s17, 0
    %p38 = por %p36, %p37
    %p39 = scmp.ne.s32.totalorder %s25, %s26
    %p40 = scmp.eq.s32.totalorder %s18, 1
    %p41 = por %p39, %p40
    %p43 = scmp.ne.s32.totalorder %s26, %s42
    %p44 = scmp.eq.s32.totalorder %s18, 0
    %p45 = por %p43, %p44
    %s47 = sadd.s32 %s46, 1
    %p50 = scmp.eq.s32.totalorder %s12, 1
    %p51 = scmp.ne.s32.totalorder %s46, %s48
    %p52 = scmp.eq.s32.totalorder %s12, 0
    %p53 = por %p51, %p52
    %p54 = scmp.ne.s32.totalorder %s46, %s48
    %p55 = scmp.eq.s32.totalorder %s17, 1
    %p56 = por %p54, %p55
    %p57 = scmp.ne.s32.totalorder %s48, %s49
    %p58 = scmp.eq.s32.totalorder %s17, 0
    %p59 = por %p57, %p58
    %p60 = scmp.ne.s32.totalorder %s48, %s49
    %p61 = scmp.eq.s32.totalorder %s18, 1
    %p62 = por %p60, %p61
    %p64 = scmp.ne.s32.totalorder %s49, %s63
    %p65 = scmp.eq.s32.totalorder %s18, 0
    %p66 = por %p64, %p65
    %s68 = sadd.s32 %s67, 1
    %p71 = scmp.eq.s32.totalorder %s12, 1
    %p72 = scmp.ne.s32.totalorder %s67, %s69
    %p73 = scmp.eq.s32.totalorder %s12, 0
    %p74 = por %p72, %p73
    %p75 = scmp.ne.s32.totalorder %s67, %s69
    %p76 = scmp.eq.s32.totalorder %s17, 1
    %p77 = por %p75, %p76
    %p78 = scmp.ne.s32.totalorder %s69, %s70
    %p79 = scmp.eq.s32.totalorder %s17, 0
    %p80 = por %p78, %p79
    %p81 = scmp.ne.s32.totalorder %s69, %s70
    %p82 = scmp.eq.s32.totalorder %s18, 1
    %p83 = por %p81, %p82
    %p85 = scmp.ne.s32.totalorder %s70, %s84
    %p86 = scmp.eq.s32.totalorder %s18, 0
    %p87 = por %p85, %p86
    %s89 = sadd.s32 %s88, 1
    %p92 = scmp.eq.s32.totalorder %s12, 1
    %p93 = scmp.ne.s32.totalorder %s88, %s90
    %p94 = scmp.eq.s32.totalorder %s12, 0
    %p95 = por %p93, %p94
    %p96 = scmp.ne.s32.totalorder %s88, %s90
    %p97 = scmp.eq.s32.totalorder %s17, 1
    %p98 = por %p96, %p97
    %p99 = scmp.ne.s32.totalorder %s90, %s91
    %p100 = scmp.eq.s32.totalorder %s17, 0
    %p101 = por %p99, %p100
    %p102 = scmp.ne.s32.totalorder %s90, %s91
    %p103 = scmp.eq.s32.totalorder %s18, 1
    %p104 = por %p102, %p103
    %p106 = scmp.ne.s32.totalorder %s91, %s105
    %p107 = scmp.eq.s32.totalorder %s18, 0
    %p108 = por %p106, %p107
    %s109 = ssub.s32 %s12, %s19
    %p110 = scmp.eq.s32.totalorder %s109, 0
    %s112 = sadd.s32 %s111, 1
    %s113 = scalar_select %p110, %s111, %s112
    %p116 = pneg %p110
    %p117 = scmp.eq.s32.totalorder %s12, 1
    %p118 = por %p116, %p117
    %p119 = scmp.ne.s32.totalorder %s111, %s114
    %p120 = scmp.eq.s32.totalorder %s12, 0
    %p121 = por %p119, %p120
    %p122 = scmp.ne.s32.totalorder %s111, %s114
    %p123 = scmp.eq.s32.totalorder %s17, 1
    %p124 = por %p122, %p123
    %p125 = scmp.ne.s32.totalorder %s114, %s115
    %p126 = scmp.eq.s32.totalorder %s17, 0
    %p127 = por %p125, %p126
    %p128 = scmp.ne.s32.totalorder %s114, %s115
    %p129 = scmp.eq.s32.totalorder %s18, 1
    %p130 = por %p128, %p129
    %p132 = scmp.ne.s32.totalorder %s115, %s131
    %p133 = scmp.eq.s32.totalorder %s18, 0
    %p134 = por %p132, %p133
    %s135 = ssub.s32 %s12, %s19
    %p136 = scmp.eq.s32.totalorder %s135, 0
    %s138 = sadd.s32 %s137, 1
    %s139 = scalar_select %p136, %s137, %s138
    %p142 = pneg %p136
    %p143 = scmp.eq.s32.totalorder %s12, 1
    %p144 = por %p142, %p143
    %p145 = scmp.ne.s32.totalorder %s137, %s140
    %p146 = scmp.eq.s32.totalorder %s12, 0
    %p147 = por %p145, %p146
    %p148 = scmp.ne.s32.totalorder %s137, %s140
    %p149 = scmp.eq.s32.totalorder %s17, 1
    %p150 = por %p148, %p149
    %p151 = scmp.ne.s32.totalorder %s140, %s141
    %p152 = scmp.eq.s32.totalorder %s17, 0
    %p153 = por %p151, %p152
    %p154 = scmp.ne.s32.totalorder %s140, %s141
    %p155 = scmp.eq.s32.totalorder %s18, 1
    %p156 = por %p154, %p155
    %p158 = scmp.ne.s32.totalorder %s141, %s157
    %p159 = scmp.eq.s32.totalorder %s18, 0
    %p160 = por %p158, %p159
    %p161 = scmp.le.s32.totalorder 1, %s12
    %p162 = scmp.lt.s32.totalorder %s12, 3
    %p163 = pnand %p161, %p162
    %p164 = pneg %p163
    // Predicated region
    $region9: #{bottleneck_forward.6} parent=5 // pred_check
      _
    $region10: #{bottleneck_forward.6} parent=5 // pred_check_branch
      %166 = sbr.rel (%p163) target = $region12
    $region11: #{bottleneck_forward.6} parent=5 // pred_region
      %s167 = ssub.s32 %s12, 1
      // Predicated region
      $region13: #{bottleneck_forward.6} parent=11 // pred_check
        %p168 = pneg %p59
      $region14: #{bottleneck_forward.6} parent=11 // pred_check_branch
        %170 = sbr.rel (%p168) target = $region16
      $region15: #{bottleneck_forward.6} parent=11 // pred_region
        _
      $region16: #{bottleneck_forward.6} parent=11 // pred_fallthru
        _
      // Predicated region
      $region17: #{bottleneck_forward.6} parent=11 // pred_check
        %p171 = pneg %p80
      $region18: #{bottleneck_forward.6} parent=11 // pred_check_branch
        %173 = sbr.rel (%p171) target = $region20
      $region19: #{bottleneck_forward.6} parent=11 // pred_region
        _
      $region20: #{bottleneck_forward.6} parent=11 // pred_fallthru
        _
      // Predicated region
      $region21: #{bottleneck_forward.6} parent=11 // pred_check
        %p174 = pneg %p101
      $region22: #{bottleneck_forward.6} parent=11 // pred_check_branch
        %176 = sbr.rel (%p174) target = $region24
      $region23: #{bottleneck_forward.6} parent=11 // pred_region
        _
      $region24: #{bottleneck_forward.6} parent=11 // pred_fallthru
        _
    $region12: #{bottleneck_forward.6} parent=5 // pred_fallthru
      _
    %p177 = scmp.lt.s32.totalorder %s12, 2
    // Predicated region
    $region25: #{bottleneck_forward.6} parent=5 // pred_check
      %p178 = pneg %p177
    $region26: #{bottleneck_forward.6} parent=5 // pred_check_branch
      %180 = sbr.rel (%p178) target = $region28
    $region27: #{bottleneck_forward.6} parent=5 // pred_region
      // Predicated region
      $region29: #{bottleneck_forward.6} parent=27 // pred_check
        %p181 = pneg %p32
      $region30: #{bottleneck_forward.6} parent=27 // pred_check_branch
        %183 = sbr.rel (%p181) target = $region32
      $region31: #{bottleneck_forward.6} parent=27 // pred_region
        %s184 = smul.u32 32, %s12
        %p185 = scmp.lt.s32.totalorder %s184, 63
        %s186 = scalar_select %p185, %s184, 63
        %s187 = smul.addr %s186, 8
        %s188 = scalar_lea.vmem %s0, %s187
        %s189 = smul.u32 32, %s12
      $region32: #{bottleneck_forward.6} parent=27 // pred_fallthru
        _
    $region28: #{bottleneck_forward.6} parent=5 // pred_fallthru
      _
    %p190 = scmp.le.s32.totalorder 1, %s12
    %p191 = scmp.lt.s32.totalorder %s12, 3
    %p192 = pnand %p190, %p191
    %p193 = pneg %p192
    // Predicated region
    $region33: #{bottleneck_forward.6} parent=5 // pred_check
      _
    $region34: #{bottleneck_forward.6} parent=5 // pred_check_branch
      %195 = sbr.rel (%p192) target = $region36
    $region35: #{bottleneck_forward.6} parent=5 // pred_region
      %s196 = ssub.s32 %s12, 1
      %s197 = smul.u32 32, %s17
      %p198 = scmp.lt.s32.totalorder %s197, 63
      %s199 = scalar_select %p198, %s197, 63
      %s200 = smul.addr %s199, 8
      %s201 = scalar_lea.vmem %s0, %s200
      %p202 = pneg %p38
      %p203 = pneg %p35
      %p204 = pneg %p59
      %p205 = pneg %p56
      %p206 = pneg %p80
      %p207 = pneg %p77
      %p208 = pneg %p101
      %p209 = pneg %p98
      %p210 = pneg %p127
      %p211 = pneg %p124
      %s212 = smul.u32 32, %s17
      %p213 = scmp.lt.s32.totalorder %s212, 63
      %s214 = scalar_select %p213, %s212, 63
      %s215 = smul.addr %s214, 8
      %s216 = scalar_lea.vmem %s4, %s215
      %p217 = pneg %p153
      %p218 = pneg %p150
      %p219 = scmp.lt.s32.totalorder %s17, 1
      %s220 = scalar_select %p219, %s17, 1
      %s221 = smul.addr %s220, 2
      %s222 = scalar_lea.vmem %s5, %s221
      %s223 = smul.u32 32, %s17
      %p224 = scmp.lt.s32.totalorder %s223, 63
      %s225 = scalar_select %p224, %s223, 63
      %s226 = smul.addr %s225, 8
      %s227 = scalar_lea.vmem %s0, %s226
      %s228 = smul.u32 32, %s17
      %s229 = smul.u32 32, %s17
      %p230 = scmp.lt.s32.totalorder %s229, 63
      %s231 = scalar_select %p230, %s229, 63
      %s232 = smul.addr %s231, 8
      %s233 = scalar_lea.vmem %s4, %s232
      %s234 = smul.u32 32, %s17
      %p235 = scmp.lt.s32.totalorder %s17, 1
      %s236 = scalar_select %p235, %s17, 1
      %s237 = smul.addr %s236, 2
      %s238 = scalar_lea.vmem %s5, %s237
      %v240 = vld [vmem:[%s227] sm:$0xff]
      %v241 = vld [vmem:[%s227 + $0x8] sm:$0xff]
      %v242 = vld [vmem:[%s227 + $0x10] sm:$0xff]
      %v243 = vld [vmem:[%s227 + $0x18] sm:$0xff]
      %v244 = vld [vmem:[%s227 + $0x20] sm:$0xff]
      %v245 = vld [vmem:[%s227 + $0x28] sm:$0xff]
      %v246 = vld [vmem:[%s227 + $0x30] sm:$0xff]
      %v247 = vld [vmem:[%s227 + $0x38] sm:$0xff]
      %v248 = vld [vmem:[%s227 + $0x40] sm:$0xff]
      %v249 = vld [vmem:[%s227 + $0x48] sm:$0xff]
      %v250 = vld [vmem:[%s227 + $0x50] sm:$0xff]
      %v251 = vld [vmem:[%s227 + $0x58] sm:$0xff]
      %v252 = vld [vmem:[%s227 + $0x60] sm:$0xff]
      %v253 = vld [vmem:[%s227 + $0x68] sm:$0xff]
      %v254 = vld [vmem:[%s227 + $0x70] sm:$0xff]
      %v255 = vld [vmem:[%s227 + $0x78] sm:$0xff]
      %v256 = vld [vmem:[%s227 + $0x80] sm:$0xff]
      %v257 = vld [vmem:[%s227 + $0x88] sm:$0xff]
      %v258 = vld [vmem:[%s227 + $0x90] sm:$0xff]
      %v259 = vld [vmem:[%s227 + $0x98] sm:$0xff]
      %v260 = vld [vmem:[%s227 + $0xa0] sm:$0xff]
      %v261 = vld [vmem:[%s227 + $0xa8] sm:$0xff]
      %v262 = vld [vmem:[%s227 + $0xb0] sm:$0xff]
      %v263 = vld [vmem:[%s227 + $0xb8] sm:$0xff]
      %v264 = vld [vmem:[%s227 + $0xc0] sm:$0xff]
      %v265 = vld [vmem:[%s227 + $0xc8] sm:$0xff]
      %v266 = vld [vmem:[%s227 + $0xd0] sm:$0xff]
      %v267 = vld [vmem:[%s227 + $0xd8] sm:$0xff]
      %v268 = vld [vmem:[%s227 + $0xe0] sm:$0xff]
      %v269 = vld [vmem:[%s227 + $0xe8] sm:$0xff]
      %v270 = vld [vmem:[%s227 + $0xf0] sm:$0xff]
      %v271 = vld [vmem:[%s227 + $0xf8] sm:$0xff]
      %v272 = vld [vmem:[%s1] sm:$0x1]
      %v274 = vlaneseq
      %v275 = vshrl.u32 %v274, 7
      %v276 = vsub.s32 0, %v275
      %v277 = vrot.slane %v272, %v276
      %v279 = vmul.f32 %v240, %v277
      %v280 = vmul.f32 %v241, %v277
      %v281 = vmul.f32 %v242, %v277
      %v282 = vmul.f32 %v243, %v277
      %v283 = vmul.f32 %v244, %v277
      %v284 = vmul.f32 %v245, %v277
      %v285 = vmul.f32 %v246, %v277
      %v286 = vmul.f32 %v247, %v277
      %v287 = vmul.f32 %v248, %v277
      %v288 = vmul.f32 %v249, %v277
      %v289 = vmul.f32 %v250, %v277
      %v290 = vmul.f32 %v251, %v277
      %v291 = vmul.f32 %v252, %v277
      %v292 = vmul.f32 %v253, %v277
      %v293 = vmul.f32 %v254, %v277
      %v294 = vmul.f32 %v255, %v277
      %v295 = vmul.f32 %v256, %v277
      %v296 = vmul.f32 %v257, %v277
      %v297 = vmul.f32 %v258, %v277
      %v298 = vmul.f32 %v259, %v277
      %v299 = vmul.f32 %v260, %v277
      %v300 = vmul.f32 %v261, %v277
      %v301 = vmul.f32 %v262, %v277
      %v302 = vmul.f32 %v263, %v277
      %v303 = vmul.f32 %v264, %v277
      %v304 = vmul.f32 %v265, %v277
      %v305 = vmul.f32 %v266, %v277
      %v306 = vmul.f32 %v267, %v277
      %v307 = vmul.f32 %v268, %v277
      %v308 = vmul.f32 %v269, %v277
      %v309 = vmul.f32 %v270, %v277
      %v310 = vmul.f32 %v271, %v277
      %v311 = vld [vmem:[%s2] sm:$0x1]
      %v313 = vlaneseq
      %v314 = vshrl.u32 %v313, 7
      %v315 = vsub.s32 0, %v314
      %v316 = vrot.slane %v311, %v315
      %v318 = vadd.f32 %v279, %v316
      %v319 = vadd.f32 %v280, %v316
      %v320 = vadd.f32 %v281, %v316
      %v321 = vadd.f32 %v282, %v316
      %v322 = vadd.f32 %v283, %v316
      %v323 = vadd.f32 %v284, %v316
      %v324 = vadd.f32 %v285, %v316
      %v325 = vadd.f32 %v286, %v316
      %v326 = vadd.f32 %v287, %v316
      %v327 = vadd.f32 %v288, %v316
      %v328 = vadd.f32 %v289, %v316
      %v329 = vadd.f32 %v290, %v316
      %v330 = vadd.f32 %v291, %v316
      %v331 = vadd.f32 %v292, %v316
      %v332 = vadd.f32 %v293, %v316
      %v333 = vadd.f32 %v294, %v316
      %v334 = vadd.f32 %v295, %v316
      %v335 = vadd.f32 %v296, %v316
      %v336 = vadd.f32 %v297, %v316
      %v337 = vadd.f32 %v298, %v316
      %v338 = vadd.f32 %v299, %v316
      %v339 = vadd.f32 %v300, %v316
      %v340 = vadd.f32 %v301, %v316
      %v341 = vadd.f32 %v302, %v316
      %v342 = vadd.f32 %v303, %v316
      %v343 = vadd.f32 %v304, %v316
      %v344 = vadd.f32 %v305, %v316
      %v345 = vadd.f32 %v306, %v316
      %v346 = vadd.f32 %v307, %v316
      %v347 = vadd.f32 %v308, %v316
      %v348 = vadd.f32 %v309, %v316
      %v349 = vadd.f32 %v310, %v316
      %v350 = vmax.f32 %v318, 0.0
      %v351 = vmax.f32 %v319, 0.0
      %v352 = vmax.f32 %v320, 0.0
      %v353 = vmax.f32 %v321, 0.0
      %v354 = vmax.f32 %v322, 0.0
      %v355 = vmax.f32 %v323, 0.0
      %v356 = vmax.f32 %v324, 0.0
      %v357 = vmax.f32 %v325, 0.0
      %v358 = vmax.f32 %v326, 0.0
      %v359 = vmax.f32 %v327, 0.0
      %v360 = vmax.f32 %v328, 0.0
      %v361 = vmax.f32 %v329, 0.0
      %v362 = vmax.f32 %v330, 0.0
      %v363 = vmax.f32 %v331, 0.0
      %v364 = vmax.f32 %v332, 0.0
      %v365 = vmax.f32 %v333, 0.0
      %v366 = vmax.f32 %v334, 0.0
      %v367 = vmax.f32 %v335, 0.0
      %v368 = vmax.f32 %v336, 0.0
      %v369 = vmax.f32 %v337, 0.0
      %v370 = vmax.f32 %v338, 0.0
      %v371 = vmax.f32 %v339, 0.0
      %v372 = vmax.f32 %v340, 0.0
      %v373 = vmax.f32 %v341, 0.0
      %v374 = vmax.f32 %v342, 0.0
      %v375 = vmax.f32 %v343, 0.0
      %v376 = vmax.f32 %v344, 0.0
      %v377 = vmax.f32 %v345, 0.0
      %v378 = vmax.f32 %v346, 0.0
      %v379 = vmax.f32 %v347, 0.0
      %v380 = vmax.f32 %v348, 0.0
      %v381 = vmax.f32 %v349, 0.0
      %v382 = vpack.c.bf16 %v351, %v350
      %v383 = vpack.c.bf16 %v353, %v352
      %v384 = vpack.c.bf16 %v355, %v354
      %v385 = vpack.c.bf16 %v357, %v356
      %v386 = vpack.c.bf16 %v359, %v358
      %v387 = vpack.c.bf16 %v361, %v360
      %v388 = vpack.c.bf16 %v363, %v362
      %v389 = vpack.c.bf16 %v365, %v364
      %v390 = vpack.c.bf16 %v367, %v366
      %v391 = vpack.c.bf16 %v369, %v368
      %v392 = vpack.c.bf16 %v371, %v370
      %v393 = vpack.c.bf16 %v373, %v372
      %v394 = vpack.c.bf16 %v375, %v374
      %v395 = vpack.c.bf16 %v377, %v376
      %v396 = vpack.c.bf16 %v379, %v378
      %v397 = vpack.c.bf16 %v381, %v380
      %v398 = vld [vmem:[%s3] sm:$0xf]
      %v399 = vld [vmem:[%s3 + $0x4] sm:$0xf]
      %v400 = vld [vmem:[%s3 + $0x8] sm:$0xf]
      %v401 = vld [vmem:[%s3 + $0xc] sm:$0xf]
      %v406 = vunpack.c.l.b16 %v398
      %v407 = vunpack.c.l.b16 %v399
      %v408 = vunpack.c.l.b16 %v400
      %v409 = vunpack.c.l.b16 %v401
      %v410 = vpack.c.b16 %v407, %v406
      %v411 = vpack.c.b16 %v409, %v408
      %vm414 = vcmask 261120
      %v416 = vsel %vm414, %v382, 0
      %v419 = vsel %vm414, %v383, 0
      %v422 = vsel %vm414, %v384, 0
      %v425 = vsel %vm414, %v385, 0
      %v428 = vsel %vm414, %v386, 0
      %v431 = vsel %vm414, %v387, 0
      %v434 = vsel %vm414, %v388, 0
      %v437 = vsel %vm414, %v389, 0
      %v440 = vsel %vm414, %v390, 0
      %v443 = vsel %vm414, %v391, 0
      %v446 = vsel %vm414, %v392, 0
      %v449 = vsel %vm414, %v393, 0
      %v452 = vsel %vm414, %v394, 0
      %v455 = vsel %vm414, %v395, 0
      %v458 = vsel %vm414, %v396, 0
      %v461 = vsel %vm414, %v397, 0
      %463 = vmatprep.subr.bf16.mxu0 0
      %464 = vmatpush1.bf16.msra.mxu0 %v410
      %465 = vmatprep.subr.bf16.mxu0 0
      %466 = vmatpush1.bf16.msra.mxu0 %v411
      %467 = vmatprep.subr.bf16.mxu0 0
      %468 = vmatpush1.bf16.msra.mxu0 0
      %469 = vmatprep.subr.bf16.mxu0 0
      %470 = vmatpush1.bf16.msra.mxu0 0
      %471 = vmatprep.subr.bf16.mxu0 0
      %472 = vmatpush1.bf16.msra.mxu0 0
      %473 = vmatprep.subr.bf16.mxu0 0
      %474 = vmatpush1.bf16.msra.mxu0 0
      %475 = vmatprep.subr.bf16.mxu0 0
      %476 = vmatpush1.bf16.msra.mxu0 0
      %477 = vmatprep.subr.bf16.mxu0 0
      %478 = vmatpush1.bf16.msra.mxu0 0
      %479 = vmatprep.subr.bf16.mxu0 0
      %480 = vmatpush1.bf16.msra.mxu0 0
      %481 = vmatprep.subr.bf16.mxu0 0
      %482 = vmatpush1.bf16.msra.mxu0 0
      %483 = vmatprep.subr.bf16.mxu0 0
      %484 = vmatpush1.bf16.msra.mxu0 0
      %485 = vmatprep.subr.bf16.mxu0 0
      %486 = vmatpush1.bf16.msra.mxu0 0
      %487 = vmatprep.subr.bf16.mxu0 0
      %488 = vmatpush1.bf16.msra.mxu0 0
      %489 = vmatprep.subr.bf16.mxu0 0
      %490 = vmatpush1.bf16.msra.mxu0 0
      %491 = vmatprep.subr.bf16.mxu0 0
      %492 = vmatpush1.bf16.msra.mxu0 0
      %493 = vmatprep.subr.bf16.mxu0 0
      %494 = vmatpush1.bf16.msra.mxu0 0
      %495 = vmatprep.mubr.bf16.mxu0 0
      %496 = vmatmul.mubr.bf16.gmra.mrb[0].mxu0 %v416
      %v497 = vpop.f32.mrb[0].mxu0
      %v498 = vadd.f32 0.0, %v497
      %v499 = vpop.f32.mrb[0].mxu0
      %v500 = vpop.f32.mrb[0].mxu0
      %v501 = vadd.f32 0.0, %v500
      %v502 = vpop.f32.mrb[0].mxu0
      %503 = vmatprep.mubr.bf16.mxu0 0
      %504 = vmatmul.mubr.bf16.gmra.mrb[0].mxu0 %v419
      %v505 = vpop.f32.mrb[0].mxu0
      %v506 = vadd.f32 0.0, %v505
      %v507 = vpop.f32.mrb[0].mxu0
      %v508 = vpop.f32.mrb[0].mxu0
      %v509 = vadd.f32 0.0, %v508
      %v510 = vpop.f32.mrb[0].mxu0
      %511 = vmatprep.mubr.bf16.mxu0 0
      %512 = vmatmul.mubr.bf16.gmra.mrb[0].mxu0 %v422
      %v513 = vpop.f32.mrb[0].mxu0
      %v514 = vadd.f32 0.0, %v513
      %v515 = vpop.f32.mrb[0].mxu0
      %v516 = vpop.f32.mrb[0].mxu0
      %v517 = vadd.f32 0.0, %v516
      %v518 = vpop.f32.mrb[0].mxu0
      %519 = vmatprep.mubr.bf16.mxu0 0
      %520 = vmatmul.mubr.bf16.gmra.mrb[0].mxu0 %v425
      %v521 = vpop.f32.mrb[0].mxu0
      %v522 = vadd.f32 0.0, %v521
      %v523 = vpop.f32.mrb[0].mxu0
      %v524 = vpop.f32.mrb[0].mxu0
      %v525 = vadd.f32 0.0, %v524
      %v526 = vpop.f32.mrb[0].mxu0
      %527 = vmatprep.mubr.bf16.mxu0 0
      %528 = vmatmul.mubr.bf16.gmra.mrb[0].mxu0 %v428
      %v529 = vpop.f32.mrb[0].mxu0
      %v530 = vadd.f32 0.0, %v529
      %v531 = vpop.f32.mrb[0].mxu0
      %v532 = vpop.f32.mrb[0].mxu0
      %v533 = vadd.f32 0.0, %v532
      %v534 = vpop.f32.mrb[0].mxu0
      %535 = vmatprep.mubr.bf16.mxu0 0
      %536 = vmatmul.mubr.bf16.gmra.mrb[0].mxu0 %v431
      %v537 = vpop.f32.mrb[0].mxu0
      %v538 = vadd.f32 0.0, %v537
      %v539 = vpop.f32.mrb[0].mxu0
      %v540 = vpop.f32.mrb[0].mxu0
      %v541 = vadd.f32 0.0, %v540
      %v542 = vpop.f32.mrb[0].mxu0
      %543 = vmatprep.mubr.bf16.mxu0 0
      %544 = vmatmul.mubr.bf16.gmra.mrb[0].mxu0 %v434
      %v545 = vpop.f32.mrb[0].mxu0
      %v546 = vadd.f32 0.0, %v545
      %v547 = vpop.f32.mrb[0].mxu0
      %v548 = vpop.f32.mrb[0].mxu0
      %v549 = vadd.f32 0.0, %v548
      %v550 = vpop.f32.mrb[0].mxu0
      %551 = vmatprep.mubr.bf16.mxu0 0
      %552 = vmatmul.mubr.bf16.gmra.mrb[0].mxu0 %v437
      %v553 = vpop.f32.mrb[0].mxu0
      %v554 = vadd.f32 0.0, %v553
      %v555 = vpop.f32.mrb[0].mxu0
      %v556 = vpop.f32.mrb[0].mxu0
      %v557 = vadd.f32 0.0, %v556
      %v558 = vpop.f32.mrb[0].mxu0
      %559 = vmatprep.mubr.bf16.mxu0 0
      %560 = vmatmul.mubr.bf16.gmra.mrb[0].mxu0 %v440
      %v561 = vpop.f32.mrb[0].mxu0
      %v562 = vadd.f32 0.0, %v561
      %v563 = vpop.f32.mrb[0].mxu0
      %v564 = vpop.f32.mrb[0].mxu0
      %v565 = vadd.f32 0.0, %v564
      %v566 = vpop.f32.mrb[0].mxu0
      %567 = vmatprep.mubr.bf16.mxu0 0
      %568 = vmatmul.mubr.bf16.gmra.mrb[0].mxu0 %v443
      %v569 = vpop.f32.mrb[0].mxu0
      %v570 = vadd.f32 0.0, %v569
      %v571 = vpop.f32.mrb[0].mxu0
      %v572 = vpop.f32.mrb[0].mxu0
      %v573 = vadd.f32 0.0, %v572
      %v574 = vpop.f32.mrb[0].mxu0
      %575 = vmatprep.mubr.bf16.mxu0 0
      %576 = vmatmul.mubr.bf16.gmra.mrb[0].mxu0 %v446
      %v577 = vpop.f32.mrb[0].mxu0
      %v578 = vadd.f32 0.0, %v577
      %v579 = vpop.f32.mrb[0].mxu0
      %v580 = vpop.f32.mrb[0].mxu0
      %v581 = vadd.f32 0.0, %v580
      %v582 = vpop.f32.mrb[0].mxu0
      %583 = vmatprep.mubr.bf16.mxu0 0
      %584 = vmatmul.mubr.bf16.gmra.mrb[0].mxu0 %v449
      %v585 = vpop.f32.mrb[0].mxu0
      %v586 = vadd.f32 0.0, %v585
      %v587 = vpop.f32.mrb[0].mxu0
      %v588 = vpop.f32.mrb[0].mxu0
      %v589 = vadd.f32 0.0, %v588
      %v590 = vpop.f32.mrb[0].mxu0
      %591 = vmatprep.mubr.bf16.mxu0 0
      %592 = vmatmul.mubr.bf16.gmra.mrb[0].mxu0 %v452
      %v593 = vpop.f32.mrb[0].mxu0
      %v594 = vadd.f32 0.0, %v593
      %v595 = vpop.f32.mrb[0].mxu0
      %v596 = vpop.f32.mrb[0].mxu0
      %v597 = vadd.f32 0.0, %v596
      %v598 = vpop.f32.mrb[0].mxu0
      %599 = vmatprep.mubr.bf16.mxu0 0
      %600 = vmatmul.mubr.bf16.gmra.mrb[0].mxu0 %v455
      %v601 = vpop.f32.mrb[0].mxu0
      %v602 = vadd.f32 0.0, %v601
      %v603 = vpop.f32.mrb[0].mxu0
      %v604 = vpop.f32.mrb[0].mxu0
      %v605 = vadd.f32 0.0, %v604
      %v606 = vpop.f32.mrb[0].mxu0
      %607 = vmatprep.mubr.bf16.mxu0 0
      %608 = vmatmul.mubr.bf16.gmra.mrb[0].mxu0 %v458
      %v609 = vpop.f32.mrb[0].mxu0
      %v610 = vadd.f32 0.0, %v609
      %v611 = vpop.f32.mrb[0].mxu0
      %v612 = vpop.f32.mrb[0].mxu0
      %v613 = vadd.f32 0.0, %v612
      %v614 = vpop.f32.mrb[0].mxu0
      %615 = vmatprep.mubr.bf16.mxu0 0
      %616 = vmatmul.mubr.bf16.gmra.mrb[0].mxu0 %v461
      %v617 = vpop.f32.mrb[0].mxu0
      %v618 = vadd.f32 0.0, %v617
      %v619 = vpop.f32.mrb[0].mxu0
      %v620 = vpop.f32.mrb[0].mxu0
      %v621 = vadd.f32 0.0, %v620
      %v622 = vpop.f32.mrb[0].mxu0
      %623 = vdwg.mxu0
      %624 = vst [vmem:[%s233] sm:$0xff] %v498
      %625 = vst [vmem:[%s233 + $0x8] sm:$0xff] %v501
      %626 = vst [vmem:[%s233 + $0x10] sm:$0xff] %v506
      %627 = vst [vmem:[%s233 + $0x18] sm:$0xff] %v509
      %628 = vst [vmem:[%s233 + $0x20] sm:$0xff] %v514
      %629 = vst [vmem:[%s233 + $0x28] sm:$0xff] %v517
      %630 = vst [vmem:[%s233 + $0x30] sm:$0xff] %v522
      %631 = vst [vmem:[%s233 + $0x38] sm:$0xff] %v525
      %632 = vst [vmem:[%s233 + $0x40] sm:$0xff] %v530
      %633 = vst [vmem:[%s233 + $0x48] sm:$0xff] %v533
      %634 = vst [vmem:[%s233 + $0x50] sm:$0xff] %v538
      %635 = vst [vmem:[%s233 + $0x58] sm:$0xff] %v541
      %636 = vst [vmem:[%s233 + $0x60] sm:$0xff] %v546
      %637 = vst [vmem:[%s233 + $0x68] sm:$0xff] %v549
      %638 = vst [vmem:[%s233 + $0x70] sm:$0xff] %v554
      %639 = vst [vmem:[%s233 + $0x78] sm:$0xff] %v557
      %640 = vst [vmem:[%s233 + $0x80] sm:$0xff] %v562
      %641 = vst [vmem:[%s233 + $0x88] sm:$0xff] %v565
      %642 = vst [vmem:[%s233 + $0x90] sm:$0xff] %v570
      %643 = vst [vmem:[%s233 + $0x98] sm:$0xff] %v573
      %644 = vst [vmem:[%s233 + $0xa0] sm:$0xff] %v578
      %645 = vst [vmem:[%s233 + $0xa8] sm:$0xff] %v581
      %646 = vst [vmem:[%s233 + $0xb0] sm:$0xff] %v586
      %647 = vst [vmem:[%s233 + $0xb8] sm:$0xff] %v589
      %648 = vst [vmem:[%s233 + $0xc0] sm:$0xff] %v594
      %649 = vst [vmem:[%s233 + $0xc8] sm:$0xff] %v597
      %650 = vst [vmem:[%s233 + $0xd0] sm:$0xff] %v602
      %651 = vst [vmem:[%s233 + $0xd8] sm:$0xff] %v605
      %652 = vst [vmem:[%s233 + $0xe0] sm:$0xff] %v610
      %653 = vst [vmem:[%s233 + $0xe8] sm:$0xff] %v613
      %654 = vst [vmem:[%s233 + $0xf0] sm:$0xff] %v618
      %655 = vst [vmem:[%s233 + $0xf8] sm:$0xff] %v621
      %v656 = vadd.f32 %v498, %v501
      %v657 = vadd.f32 %v656, %v506
      %v658 = vadd.f32 %v657, %v509
      %v659 = vadd.f32 %v658, %v514
      %v660 = vadd.f32 %v659, %v517
      %v661 = vadd.f32 %v660, %v522
      %v662 = vadd.f32 %v661, %v525
      %v663 = vadd.f32 %v662, %v530
      %v664 = vadd.f32 %v663, %v533
      %v665 = vadd.f32 %v664, %v538
      %v666 = vadd.f32 %v665, %v541
      %v667 = vadd.f32 %v666, %v546
      %v668 = vadd.f32 %v667, %v549
      %v669 = vadd.f32 %v668, %v554
      %v670 = vadd.f32 %v669, %v557
      %v671 = vadd.f32 %v670, %v562
      %v672 = vadd.f32 %v671, %v565
      %v673 = vadd.f32 %v672, %v570
      %v674 = vadd.f32 %v673, %v573
      %v675 = vadd.f32 %v674, %v578
      %v676 = vadd.f32 %v675, %v581
      %v677 = vadd.f32 %v676, %v586
      %v678 = vadd.f32 %v677, %v589
      %v679 = vadd.f32 %v678, %v594
      %v680 = vadd.f32 %v679, %v597
      %v681 = vadd.f32 %v680, %v602
      %v682 = vadd.f32 %v681, %v605
      %v683 = vadd.f32 %v682, %v610
      %v684 = vadd.f32 %v683, %v613
      %v685 = vadd.f32 %v684, %v618
      %v686 = vadd.f32 %v685, %v621
      %v687 = vrot.slane %v686, 4
      %v688 = vadd.f32 %v686, %v687
      %v689 = vrot.slane %v688, 2
      %v690 = vadd.f32 %v688, %v689
      %v691 = vrot.slane %v690, 1
      %v692 = vadd.f32 %v690, %v691
      %v693 = vmul.f32 %v498, %v498
      %v694 = vmul.f32 %v501, %v501
      %v695 = vmul.f32 %v506, %v506
      %v696 = vmul.f32 %v509, %v509
      %v697 = vmul.f32 %v514, %v514
      %v698 = vmul.f32 %v517, %v517
      %v699 = vmul.f32 %v522, %v522
      %v700 = vmul.f32 %v525, %v525
      %v701 = vmul.f32 %v530, %v530
      %v702 = vmul.f32 %v533, %v533
      %v703 = vmul.f32 %v538, %v538
      %v704 = vmul.f32 %v541, %v541
      %v705 = vmul.f32 %v546, %v546
      %v706 = vmul.f32 %v549, %v549
      %v707 = vmul.f32 %v554, %v554
      %v708 = vmul.f32 %v557, %v557
      %v709 = vmul.f32 %v562, %v562
      %v710 = vmul.f32 %v565, %v565
      %v711 = vmul.f32 %v570, %v570
      %v712 = vmul.f32 %v573, %v573
      %v713 = vmul.f32 %v578, %v578
      %v714 = vmul.f32 %v581, %v581
      %v715 = vmul.f32 %v586, %v586
      %v716 = vmul.f32 %v589, %v589
      %v717 = vmul.f32 %v594, %v594
      %v718 = vmul.f32 %v597, %v597
      %v719 = vmul.f32 %v602, %v602
      %v720 = vmul.f32 %v605, %v605
      %v721 = vmul.f32 %v610, %v610
      %v722 = vmul.f32 %v613, %v613
      %v723 = vmul.f32 %v618, %v618
      %v724 = vmul.f32 %v621, %v621
      %v725 = vadd.f32 %v693, %v694
      %v726 = vadd.f32 %v725, %v695
      %v727 = vadd.f32 %v726, %v696
      %v728 = vadd.f32 %v727, %v697
      %v729 = vadd.f32 %v728, %v698
      %v730 = vadd.f32 %v729, %v699
      %v731 = vadd.f32 %v730, %v700
      %v732 = vadd.f32 %v731, %v701
      %v733 = vadd.f32 %v732, %v702
      %v734 = vadd.f32 %v733, %v703
      %v735 = vadd.f32 %v734, %v704
      %v736 = vadd.f32 %v735, %v705
      %v737 = vadd.f32 %v736, %v706
      %v738 = vadd.f32 %v737, %v707
      %v739 = vadd.f32 %v738, %v708
      %v740 = vadd.f32 %v739, %v709
      %v741 = vadd.f32 %v740, %v710
      %v742 = vadd.f32 %v741, %v711
      %v743 = vadd.f32 %v742, %v712
      %v744 = vadd.f32 %v743, %v713
      %v745 = vadd.f32 %v744, %v714
      %v746 = vadd.f32 %v745, %v715
      %v747 = vadd.f32 %v746, %v716
      %v748 = vadd.f32 %v747, %v717
      %v749 = vadd.f32 %v748, %v718
      %v750 = vadd.f32 %v749, %v719
      %v751 = vadd.f32 %v750, %v720
      %v752 = vadd.f32 %v751, %v721
      %v753 = vadd.f32 %v752, %v722
      %v754 = vadd.f32 %v753, %v723
      %v755 = vadd.f32 %v754, %v724
      %v756 = vrot.slane %v755, 4
      %v757 = vadd.f32 %v755, %v756
      %v758 = vrot.slane %v757, 2
      %v759 = vadd.f32 %v757, %v758
      %v760 = vrot.slane %v759, 1
      %v761 = vadd.f32 %v759, %v760
      %vm762 = vcmask 1040384
      %v763 = vsel %vm762, %v692, %v761
      %764 = vst [vmem:[%s238] sm:$0x3] %v763
      %s765 = smul.u32 32, %s17
      %p766 = scmp.lt.s32.totalorder %s765, 63
      %s767 = scalar_select %p766, %s765, 63
      %s768 = smul.addr %s767, 8
      %s769 = scalar_lea.vmem %s4, %s768
      %p770 = scmp.lt.s32.totalorder %s17, 1
      %s771 = scalar_select %p770, %s17, 1
      %s772 = smul.addr %s771, 2
      %s773 = scalar_lea.vmem %s5, %s772
      // Predicated region
      $region37: #{bottleneck_forward.6} parent=35 // pred_check
        %p774 = pneg %p124
      $region38: #{bottleneck_forward.6} parent=35 // pred_check_branch
        %776 = sbr.rel (%p774) target = $region40
      $region39: #{bottleneck_forward.6} parent=35 // pred_region
        %s777 = smul.u32 32, %s17
      $region40: #{bottleneck_forward.6} parent=35 // pred_fallthru
        _
      // Predicated region
      $region41: #{bottleneck_forward.6} parent=35 // pred_check
        %p778 = pneg %p150
      $region42: #{bottleneck_forward.6} parent=35 // pred_check_branch
        %780 = sbr.rel (%p778) target = $region44
      $region43: #{bottleneck_forward.6} parent=35 // pred_region
        _
      $region44: #{bottleneck_forward.6} parent=35 // pred_fallthru
        _
    $region36: #{bottleneck_forward.6} parent=5 // pred_fallthru
      _
    %p781 = scmp.le.s32.totalorder 2, %s12
    // Predicated region
    $region45: #{bottleneck_forward.6} parent=5 // pred_check
      %p782 = pneg %p781
    $region46: #{bottleneck_forward.6} parent=5 // pred_check_branch
      %784 = sbr.rel (%p782) target = $region48
    $region47: #{bottleneck_forward.6} parent=5 // pred_region
      %s785 = ssub.s32 %s12, 2
      // Predicated region
      $region49: #{bottleneck_forward.6} parent=47 // pred_check
        %p786 = pneg %p130
      $region50: #{bottleneck_forward.6} parent=47 // pred_check_branch
        %788 = sbr.rel (%p786) target = $region52
      $region51: #{bottleneck_forward.6} parent=47 // pred_region
        %s789 = smul.u32 32, %s18
        %p790 = scmp.lt.s32.totalorder %s789, 63
        %s791 = scalar_select %p790, %s789, 63
        %s792 = smul.addr %s791, 8
        %s793 = scalar_lea.vmem %s4, %s792
      $region52: #{bottleneck_forward.6} parent=47 // pred_fallthru
        _
      // Predicated region
      $region53: #{bottleneck_forward.6} parent=47 // pred_check
        %p794 = pneg %p156
      $region54: #{bottleneck_forward.6} parent=47 // pred_check_branch
        %796 = sbr.rel (%p794) target = $region56
      $region55: #{bottleneck_forward.6} parent=47 // pred_region
        %p797 = scmp.lt.s32.totalorder %s18, 1
        %s798 = scalar_select %p797, %s18, 1
        %s799 = smul.addr %s798, 2
        %s800 = scalar_lea.vmem %s5, %s799
      $region56: #{bottleneck_forward.6} parent=47 // pred_fallthru
        _
    $region48: #{bottleneck_forward.6} parent=5 // pred_fallthru
      _
  $region6: #{bottleneck_forward.6} parent=0 // loop_footer
    %s16 = sadd.s32 1, %s12
  $region7: #{bottleneck_forward.6} parent=0 // loop_footer_branch
    %11 = sbr.rel target = $region3
  $region8: #{bottleneck_forward.6} parent=0 // loop_exit
    _

// kernel: bottleneck_forward.5
$region0: #{bottleneck_forward.5}
  #allocation0 [shape = 'u32[]', space=smem, size = 0x4, offset = 0x4, fixed_abs, tag = 'smem constant byte address 0x4 - core index']
  #allocation1 [shape = 'u32[144,128]{1,0:T(1,128)}', space=vmem, size = 0x12000, scoped, tag = 'internal scratch']
  #allocation2 [shape = 'f32[18,18,32]{2,1,0:T(8,128)}', space=vmem, size = 0x36000, scoped, tag = 'scratch operand']
  %s0 = inlined_call_operand.vmem [shape: f32[2,16,16,32], index: 0, kind: input, shape index: {}]
  %s1 = inlined_call_operand.vmem [shape: f32[1,32], index: 1, kind: input, shape index: {}]
  %s2 = inlined_call_operand.vmem [shape: f32[1,32], index: 2, kind: input, shape index: {}]
  %s3 = inlined_call_operand.vmem [shape: bf16[288,32], index: 3, kind: input, shape index: {}]
  %s4 = inlined_call_operand.vmem [shape: f32[2,16,16,32], index: 4, kind: output, shape index: {0}]
  %s5 = inlined_call_operand.vmem [shape: f32[2,2,32], index: 5, kind: output, shape index: {1}]
  %6 = xla_tuple %s4, %s5
  %s7 = sld [smem:[#allocation0]]
  $region61: #{bottleneck_forward.5} parent=0
    _
  %s9 = ssub.s32 1, %s7
  %s10 = scalar_select 0, %s9, %s7
  loop: start=0, step=1, limit=4
  $region2: #{bottleneck_forward.5} parent=0 // loop_pre_header
    _
  $region3: #{bottleneck_forward.5} parent=0 // loop_header
    %s12 = sphi 0, %s16
    %p13 = scmp.ge.s32.totalorder %s12, 4
    %s22 = sphi 0, %s24
    %s25 = sphi 0, %s22
    %s26 = sphi 0, %s25
    %s42 = sphi 0, %s26
    %s46 = sphi 0, %s46
    %s48 = sphi 0, %s46
    %s49 = sphi 0, %s48
    %s63 = sphi 0, %s49
    %s67 = sphi 0, %s67
    %s69 = sphi 0, %s67
    %s70 = sphi 0, %s69
    %s84 = sphi 0, %s70
    %s88 = sphi 0, %s88
    %s90 = sphi 0, %s88
    %s91 = sphi 0, %s90
    %s105 = sphi 0, %s91
    %s111 = sphi 0, %s113
    %s114 = sphi 0, %s111
    %s115 = sphi 0, %s114
    %s131 = sphi 0, %s115
    %s137 = sphi 0, %s139
    %s140 = sphi 0, %s137
    %s141 = sphi 0, %s140
    %s157 = sphi 0, %s141
  $region4: #{bottleneck_forward.5} parent=0 // loop_header_branch
    %15 = sbr.rel (%p13) target = $region8
  $region5: #{bottleneck_forward.5} parent=0 // loop_body
    %s17 = ssub.s32 %s12, 1
    %s18 = ssub.s32 %s12, 2
    %s19 = sadd.s32 %s12, 1
    %s20 = ssub.s32 %s12, %s19
    %p21 = scmp.eq.s32.totalorder %s20, 0
    %s23 = sadd.s32 %s22, 1
    %s24 = scalar_select %p21, %s22, %s23
    %p27 = pneg %p21
    %p28 = scmp.eq.s32.totalorder %s12, 1
    %p29 = por %p27, %p28
    %p30 = scmp.ne.s32.totalorder %s22, %s25
    %p31 = scmp.eq.s32.totalorder %s12, 0
    %p32 = por %p30, %p31
    %p33 = scmp.ne.s32.totalorder %s22, %s25
    %p34 = scmp.eq.s32.totalorder %s17, 1
    %p35 = por %p33, %p34
    %p36 = scmp.ne.s32.totalorder %s25, %s26
    %p37 = scmp.eq.s32.totalorder %s17, 0
    %p38 = por %p36, %p37
    %p39 = scmp.ne.s32.totalorder %s25, %s26
    %p40 = scmp.eq.s32.totalorder %s18, 1
    %p41 = por %p39, %p40
    %p43 = scmp.ne.s32.totalorder %s26, %s42
    %p44 = scmp.eq.s32.totalorder %s18, 0
    %p45 = por %p43, %p44
    %s47 = sadd.s32 %s46, 1
    %p50 = scmp.eq.s32.totalorder %s12, 1
    %p51 = scmp.ne.s32.totalorder %s46, %s48
    %p52 = scmp.eq.s32.totalorder %s12, 0
    %p53 = por %p51, %p52
    %p54 = scmp.ne.s32.totalorder %s46, %s48
    %p55 = scmp.eq.s32.totalorder %s17, 1
    %p56 = por %p54, %p55
    %p57 = scmp.ne.s32.totalorder %s48, %s49
    %p58 = scmp.eq.s32.totalorder %s17, 0
    %p59 = por %p57, %p58
    %p60 = scmp.ne.s32.totalorder %s48, %s49
    %p61 = scmp.eq.s32.totalorder %s18, 1
    %p62 = por %p60, %p61
    %p64 = scmp.ne.s32.totalorder %s49, %s63
    %p65 = scmp.eq.s32.totalorder %s18, 0
    %p66 = por %p64, %p65
    %s68 = sadd.s32 %s67, 1
    %p71 = scmp.eq.s32.totalorder %s12, 1
    %p72 = scmp.ne.s32.totalorder %s67, %s69
    %p73 = scmp.eq.s32.totalorder %s12, 0
    %p74 = por %p72, %p73
    %p75 = scmp.ne.s32.totalorder %s67, %s69
    %p76 = scmp.eq.s32.totalorder %s17, 1
    %p77 = por %p75, %p76
    %p78 = scmp.ne.s32.totalorder %s69, %s70
    %p79 = scmp.eq.s32.totalorder %s17, 0
    %p80 = por %p78, %p79
    %p81 = scmp.ne.s32.totalorder %s69, %s70
    %p82 = scmp.eq.s32.totalorder %s18, 1
    %p83 = por %p81, %p82
    %p85 = scmp.ne.s32.totalorder %s70, %s84
    %p86 = scmp.eq.s32.totalorder %s18, 0
    %p87 = por %p85, %p86
    %s89 = sadd.s32 %s88, 1
    %p92 = scmp.eq.s32.totalorder %s12, 1
    %p93 = scmp.ne.s32.totalorder %s88, %s90
    %p94 = scmp.eq.s32.totalorder %s12, 0
    %p95 = por %p93, %p94
    %p96 = scmp.ne.s32.totalorder %s88, %s90
    %p97 = scmp.eq.s32.totalorder %s17, 1
    %p98 = por %p96, %p97
    %p99 = scmp.ne.s32.totalorder %s90, %s91
    %p100 = scmp.eq.s32.totalorder %s17, 0
    %p101 = por %p99, %p100
    %p102 = scmp.ne.s32.totalorder %s90, %s91
    %p103 = scmp.eq.s32.totalorder %s18, 1
    %p104 = por %p102, %p103
    %p106 = scmp.ne.s32.totalorder %s91, %s105
    %p107 = scmp.eq.s32.totalorder %s18, 0
    %p108 = por %p106, %p107
    %s109 = ssub.s32 %s12, %s19
    %p110 = scmp.eq.s32.totalorder %s109, 0
    %s112 = sadd.s32 %s111, 1
    %s113 = scalar_select %p110, %s111, %s112
    %p116 = pneg %p110
    %p117 = scmp.eq.s32.totalorder %s12, 1
    %p118 = por %p116, %p117
    %p119 = scmp.ne.s32.totalorder %s111, %s114
    %p120 = scmp.eq.s32.totalorder %s12, 0
    %p121 = por %p119, %p120
    %p122 = scmp.ne.s32.totalorder %s111, %s114
    %p123 = scmp.eq.s32.totalorder %s17, 1
    %p124 = por %p122, %p123
    %p125 = scmp.ne.s32.totalorder %s114, %s115
    %p126 = scmp.eq.s32.totalorder %s17, 0
    %p127 = por %p125, %p126
    %p128 = scmp.ne.s32.totalorder %s114, %s115
    %p129 = scmp.eq.s32.totalorder %s18, 1
    %p130 = por %p128, %p129
    %p132 = scmp.ne.s32.totalorder %s115, %s131
    %p133 = scmp.eq.s32.totalorder %s18, 0
    %p134 = por %p132, %p133
    %s135 = ssub.s32 %s12, %s19
    %p136 = scmp.eq.s32.totalorder %s135, 0
    %s138 = sadd.s32 %s137, 1
    %s139 = scalar_select %p136, %s137, %s138
    %p142 = pneg %p136
    %p143 = scmp.eq.s32.totalorder %s12, 1
    %p144 = por %p142, %p143
    %p145 = scmp.ne.s32.totalorder %s137, %s140
    %p146 = scmp.eq.s32.totalorder %s12, 0
    %p147 = por %p145, %p146
    %p148 = scmp.ne.s32.totalorder %s137, %s140
    %p149 = scmp.eq.s32.totalorder %s17, 1
    %p150 = por %p148, %p149
    %p151 = scmp.ne.s32.totalorder %s140, %s141
    %p152 = scmp.eq.s32.totalorder %s17, 0
    %p153 = por %p151, %p152
    %p154 = scmp.ne.s32.totalorder %s140, %s141
    %p155 = scmp.eq.s32.totalorder %s18, 1
    %p156 = por %p154, %p155
    %p158 = scmp.ne.s32.totalorder %s141, %s157
    %p159 = scmp.eq.s32.totalorder %s18, 0
    %p160 = por %p158, %p159
    %p161 = scmp.le.s32.totalorder 1, %s12
    %p162 = scmp.lt.s32.totalorder %s12, 3
    %p163 = pnand %p161, %p162
    %p164 = pneg %p163
    // Predicated region
    $region9: #{bottleneck_forward.5} parent=5 // pred_check
      _
    $region10: #{bottleneck_forward.5} parent=5 // pred_check_branch
      %166 = sbr.rel (%p163) target = $region12
    $region11: #{bottleneck_forward.5} parent=5 // pred_region
      %s167 = ssub.s32 %s12, 1
      // Predicated region
      $region13: #{bottleneck_forward.5} parent=11 // pred_check
        %p168 = pneg %p59
      $region14: #{bottleneck_forward.5} parent=11 // pred_check_branch
        %170 = sbr.rel (%p168) target = $region16
      $region15: #{bottleneck_forward.5} parent=11 // pred_region
        _
      $region16: #{bottleneck_forward.5} parent=11 // pred_fallthru
        _
      // Predicated region
      $region17: #{bottleneck_forward.5} parent=11 // pred_check
        %p171 = pneg %p80
      $region18: #{bottleneck_forward.5} parent=11 // pred_check_branch
        %173 = sbr.rel (%p171) target = $region20
      $region19: #{bottleneck_forward.5} parent=11 // pred_region
        _
      $region20: #{bottleneck_forward.5} parent=11 // pred_fallthru
        _
      // Predicated region
      $region21: #{bottleneck_forward.5} parent=11 // pred_check
        %p174 = pneg %p101
      $region22: #{bottleneck_forward.5} parent=11 // pred_check_branch
        %176 = sbr.rel (%p174) target = $region24
      $region23: #{bottleneck_forward.5} parent=11 // pred_region
        _
      $region24: #{bottleneck_forward.5} parent=11 // pred_fallthru
        _
    $region12: #{bottleneck_forward.5} parent=5 // pred_fallthru
      _
    %p177 = scmp.lt.s32.totalorder %s12, 2
    // Predicated region
    $region25: #{bottleneck_forward.5} parent=5 // pred_check
      %p178 = pneg %p177
    $region26: #{bottleneck_forward.5} parent=5 // pred_check_branch
      %180 = sbr.rel (%p178) target = $region28
    $region27: #{bottleneck_forward.5} parent=5 // pred_region
      // Predicated region
      $region29: #{bottleneck_forward.5} parent=27 // pred_check
        %p181 = pneg %p32
      $region30: #{bottleneck_forward.5} parent=27 // pred_check_branch
        %183 = sbr.rel (%p181) target = $region32
      $region31: #{bottleneck_forward.5} parent=27 // pred_region
        %p184 = scmp.lt.s32.totalorder %s12, 1
        %s185 = scalar_select %p184, %s12, 1
        %s186 = smul.addr %s185, 32
        %s187 = smul.addr %s186, 8
        %s188 = scalar_lea.vmem %s0, %s187
      $region32: #{bottleneck_forward.5} parent=27 // pred_fallthru
        _
    $region28: #{bottleneck_forward.5} parent=5 // pred_fallthru
      _
    %p189 = scmp.le.s32.totalorder 1, %s12
    %p190 = scmp.lt.s32.totalorder %s12, 3
    %p191 = pnand %p189, %p190
    %p192 = pneg %p191
    // Predicated region
    $region33: #{bottleneck_forward.5} parent=5 // pred_check
      _
    $region34: #{bottleneck_forward.5} parent=5 // pred_check_branch
      %194 = sbr.rel (%p191) target = $region36
    $region35: #{bottleneck_forward.5} parent=5 // pred_region
      %s195 = ssub.s32 %s12, 1
      %p196 = scmp.lt.s32.totalorder %s17, 1
      %s197 = scalar_select %p196, %s17, 1
      %s198 = smul.addr %s197, 32
      %s199 = smul.addr %s198, 8
      %s200 = scalar_lea.vmem %s0, %s199
      %p201 = pneg %p38
      %p202 = pneg %p35
      %p203 = pneg %p59
      %p204 = pneg %p56
      %p205 = pneg %p80
      %p206 = pneg %p77
      %p207 = pneg %p101
      %p208 = pneg %p98
      %p209 = pneg %p127
      %p210 = pneg %p124
      %p211 = scmp.lt.s32.totalorder %s17, 1
      %s212 = scalar_select %p211, %s17, 1
      %s213 = smul.addr %s212, 32
      %s214 = smul.addr %s213, 8
      %s215 = scalar_lea.vmem %s4, %s214
      %p216 = pneg %p153
      %p217 = pneg %p150
      %p218 = scmp.lt.s32.totalorder %s17, 1
      %s219 = scalar_select %p218, %s17, 1
      %s220 = smul.addr %s219, 2
      %s221 = scalar_lea.vmem %s5, %s220
      %p222 = scmp.lt.s32.totalorder %s17, 1
      %s223 = scalar_select %p222, %s17, 1
      %s224 = smul.addr %s223, 32
      %s225 = smul.addr %s224, 8
      %s226 = scalar_lea.vmem %s0, %s225
      %p227 = scmp.lt.s32.totalorder %s17, 1
      %s228 = scalar_select %p227, %s17, 1
      %s229 = smul.addr %s228, 32
      %s230 = smul.addr %s229, 8
      %s231 = scalar_lea.vmem %s4, %s230
      %p232 = scmp.lt.s32.totalorder %s17, 1
      %s233 = scalar_select %p232, %s17, 1
      %s234 = smul.addr %s233, 2
      %s235 = scalar_lea.vmem %s5, %s234
      %v237 = vld [vmem:[%s226] sm:$0xff]
      %v238 = vld [vmem:[%s226 + $0x8] sm:$0xff]
      %v239 = vld [vmem:[%s226 + $0x10] sm:$0xff]
      %v240 = vld [vmem:[%s226 + $0x18] sm:$0xff]
      %v241 = vld [vmem:[%s226 + $0x20] sm:$0xff]
      %v242 = vld [vmem:[%s226 + $0x28] sm:$0xff]
      %v243 = vld [vmem:[%s226 + $0x30] sm:$0xff]
      %v244 = vld [vmem:[%s226 + $0x38] sm:$0xff]
      %v245 = vld [vmem:[%s226 + $0x40] sm:$0xff]
      %v246 = vld [vmem:[%s226 + $0x48] sm:$0xff]
      %v247 = vld [vmem:[%s226 + $0x50] sm:$0xff]
      %v248 = vld [vmem:[%s226 + $0x58] sm:$0xff]
      %v249 = vld [vmem:[%s226 + $0x60] sm:$0xff]
      %v250 = vld [vmem:[%s226 + $0x68] sm:$0xff]
      %v251 = vld [vmem:[%s226 + $0x70] sm:$0xff]
      %v252 = vld [vmem:[%s226 + $0x78] sm:$0xff]
      %v253 = vld [vmem:[%s226 + $0x80] sm:$0xff]
      %v254 = vld [vmem:[%s226 + $0x88] sm:$0xff]
      %v255 = vld [vmem:[%s226 + $0x90] sm:$0xff]
      %v256 = vld [vmem:[%s226 + $0x98] sm:$0xff]
      %v257 = vld [vmem:[%s226 + $0xa0] sm:$0xff]
      %v258 = vld [vmem:[%s226 + $0xa8] sm:$0xff]
      %v259 = vld [vmem:[%s226 + $0xb0] sm:$0xff]
      %v260 = vld [vmem:[%s226 + $0xb8] sm:$0xff]
      %v261 = vld [vmem:[%s226 + $0xc0] sm:$0xff]
      %v262 = vld [vmem:[%s226 + $0xc8] sm:$0xff]
      %v263 = vld [vmem:[%s226 + $0xd0] sm:$0xff]
      %v264 = vld [vmem:[%s226 + $0xd8] sm:$0xff]
      %v265 = vld [vmem:[%s226 + $0xe0] sm:$0xff]
      %v266 = vld [vmem:[%s226 + $0xe8] sm:$0xff]
      %v267 = vld [vmem:[%s226 + $0xf0] sm:$0xff]
      %v268 = vld [vmem:[%s226 + $0xf8] sm:$0xff]
      %v269 = vld [vmem:[%s1] sm:$0x1]
      %v271 = vlaneseq
      %v272 = vshrl.u32 %v271, 7
      %v273 = vsub.s32 0, %v272
      %v274 = vrot.slane %v269, %v273
      %v276 = vmul.f32 %v237, %v274
      %v277 = vmul.f32 %v238, %v274
      %v278 = vmul.f32 %v239, %v274
      %v279 = vmul.f32 %v240, %v274
      %v280 = vmul.f32 %v241, %v274
      %v281 = vmul.f32 %v242, %v274
      %v282 = vmul.f32 %v243, %v274
      %v283 = vmul.f32 %v244, %v274
      %v284 = vmul.f32 %v245, %v274
      %v285 = vmul.f32 %v246, %v274
      %v286 = vmul.f32 %v247, %v274
      %v287 = vmul.f32 %v248, %v274
      %v288 = vmul.f32 %v249, %v274
      %v289 = vmul.f32 %v250, %v274
      %v290 = vmul.f32 %v251, %v274
      %v291 = vmul.f32 %v252, %v274
      %v292 = vmul.f32 %v253, %v274
      %v293 = vmul.f32 %v254, %v274
      %v294 = vmul.f32 %v255, %v274
      %v295 = vmul.f32 %v256, %v274
      %v296 = vmul.f32 %v257, %v274
      %v297 = vmul.f32 %v258, %v274
      %v298 = vmul.f32 %v259, %v274
      %v299 = vmul.f32 %v260, %v274
      %v300 = vmul.f32 %v261, %v274
      %v301 = vmul.f32 %v262, %v274
      %v302 = vmul.f32 %v263, %v274
      %v303 = vmul.f32 %v264, %v274
      %v304 = vmul.f32 %v265, %v274
      %v305 = vmul.f32 %v266, %v274
      %v306 = vmul.f32 %v267, %v274
      %v307 = vmul.f32 %v268, %v274
      %v308 = vld [vmem:[%s2] sm:$0x1]
      %v310 = vlaneseq
      %v311 = vshrl.u32 %v310, 7
      %v312 = vsub.s32 0, %v311
      %v313 = vrot.slane %v308, %v312
      %v315 = vadd.f32 %v276, %v313
      %v316 = vadd.f32 %v277, %v313
      %v317 = vadd.f32 %v278, %v313
      %v318 = vadd.f32 %v279, %v313
      %v319 = vadd.f32 %v280, %v313
      %v320 = vadd.f32 %v281, %v313
      %v321 = vadd.f32 %v282, %v313
      %v322 = vadd.f32 %v283, %v313
      %v323 = vadd.f32 %v284, %v313
      %v324 = vadd.f32 %v285, %v313
      %v325 = vadd.f32 %v286, %v313
      %v326 = vadd.f32 %v287, %v313
      %v327 = vadd.f32 %v288, %v313
      %v328 = vadd.f32 %v289, %v313
      %v329 = vadd.f32 %v290, %v313
      %v330 = vadd.f32 %v291, %v313
      %v331 = vadd.f32 %v292, %v313
      %v332 = vadd.f32 %v293, %v313
      %v333 = vadd.f32 %v294, %v313
      %v334 = vadd.f32 %v295, %v313
      %v335 = vadd.f32 %v296, %v313
      %v336 = vadd.f32 %v297, %v313
      %v337 = vadd.f32 %v298, %v313
      %v338 = vadd.f32 %v299, %v313
      %v339 = vadd.f32 %v300, %v313
      %v340 = vadd.f32 %v301, %v313
      %v341 = vadd.f32 %v302, %v313
      %v342 = vadd.f32 %v303, %v313
      %v343 = vadd.f32 %v304, %v313
      %v344 = vadd.f32 %v305, %v313
      %v345 = vadd.f32 %v306, %v313
      %v346 = vadd.f32 %v307, %v313
      %v347 = vmax.f32 %v315, 0.0
      %v348 = vmax.f32 %v316, 0.0
      %v349 = vmax.f32 %v317, 0.0
      %v350 = vmax.f32 %v318, 0.0
      %v351 = vmax.f32 %v319, 0.0
      %v352 = vmax.f32 %v320, 0.0
      %v353 = vmax.f32 %v321, 0.0
      %v354 = vmax.f32 %v322, 0.0
      %v355 = vmax.f32 %v323, 0.0
      %v356 = vmax.f32 %v324, 0.0
      %v357 = vmax.f32 %v325, 0.0
      %v358 = vmax.f32 %v326, 0.0
      %v359 = vmax.f32 %v327, 0.0
      %v360 = vmax.f32 %v328, 0.0
      %v361 = vmax.f32 %v329, 0.0
      %v362 = vmax.f32 %v330, 0.0
      %v363 = vmax.f32 %v331, 0.0
      %v364 = vmax.f32 %v332, 0.0
      %v365 = vmax.f32 %v333, 0.0
      %v366 = vmax.f32 %v334, 0.0
      %v367 = vmax.f32 %v335, 0.0
      %v368 = vmax.f32 %v336, 0.0
      %v369 = vmax.f32 %v337, 0.0
      %v370 = vmax.f32 %v338, 0.0
      %v371 = vmax.f32 %v339, 0.0
      %v372 = vmax.f32 %v340, 0.0
      %v373 = vmax.f32 %v341, 0.0
      %v374 = vmax.f32 %v342, 0.0
      %v375 = vmax.f32 %v343, 0.0
      %v376 = vmax.f32 %v344, 0.0
      %v377 = vmax.f32 %v345, 0.0
      %v378 = vmax.f32 %v346, 0.0
      %p379 = scmp.eq.s32.totalorder %s17, 0
      // Predicated region
      $region37: #{bottleneck_forward.5} parent=35 // pred_check
        %p380 = pneg %p379
      $region38: #{bottleneck_forward.5} parent=35 // pred_check_branch
        %382 = sbr.rel (%p380) target = $region40
      $region39: #{bottleneck_forward.5} parent=35 // pred_region
        %vm383 = vcmask 261120
        %384 = vst.msk [vmem:[#allocation2] sm:$0xff] %vm383, 0.0
        %385 = vst.msk [vmem:[#allocation2 + $0x8] sm:$0xff] %vm383, 0.0
        %vm386 = vcmask 254976
        %387 = vst.msk [vmem:[#allocation2 + $0x10] sm:$0x3] %vm386, 0.0
        %s388 = scalar_lea.vmem [#allocation2], 408
        %389 = vst.msk [vmem:[%s388] sm:$0xff] %vm383, 0.0
        %390 = vst.msk [vmem:[%s388 + $0x8] sm:$0xff] %vm383, 0.0
        %391 = vst.msk [vmem:[%s388 + $0x10] sm:$0x3] %vm386, 0.0
        %s392 = scalar_lea.vmem [#allocation2], 24
        %vm393 = vcmask 253952
        %394 = vst.msk [vmem:[%s392] sm:$0x1] %vm393, 0.0
        %395 = vst.msk [vmem:[%s392 + $0x18] sm:$0x1] %vm393, 0.0
        %396 = vst.msk [vmem:[%s392 + $0x30] sm:$0x1] %vm393, 0.0
        %397 = vst.msk [vmem:[%s392 + $0x48] sm:$0x1] %vm393, 0.0
        %398 = vst.msk [vmem:[%s392 + $0x60] sm:$0x1] %vm393, 0.0
        %399 = vst.msk [vmem:[%s392 + $0x78] sm:$0x1] %vm393, 0.0
        %400 = vst.msk [vmem:[%s392 + $0x90] sm:$0x1] %vm393, 0.0
        %401 = vst.msk [vmem:[%s392 + $0xa8] sm:$0x1] %vm393, 0.0
        %402 = vst.msk [vmem:[%s392 + $0xc0] sm:$0x1] %vm393, 0.0
        %403 = vst.msk [vmem:[%s392 + $0xd8] sm:$0x1] %vm393, 0.0
        %404 = vst.msk [vmem:[%s392 + $0xf0] sm:$0x1] %vm393, 0.0
        %405 = vst.msk [vmem:[%s392 + $0x108] sm:$0x1] %vm393, 0.0
        %406 = vst.msk [vmem:[%s392 + $0x120] sm:$0x1] %vm393, 0.0
        %407 = vst.msk [vmem:[%s392 + $0x138] sm:$0x1] %vm393, 0.0
        %408 = vst.msk [vmem:[%s392 + $0x150] sm:$0x1] %vm393, 0.0
        %409 = vst.msk [vmem:[%s392 + $0x168] sm:$0x1] %vm393, 0.0
        %410 = vst.msk [vmem:[%s392 + $0x11] sm:$0x1] %vm393, 0.0
        %411 = vst.msk [vmem:[%s392 + $0x29] sm:$0x1] %vm393, 0.0
        %412 = vst.msk [vmem:[%s392 + $0x41] sm:$0x1] %vm393, 0.0
        %413 = vst.msk [vmem:[%s392 + $0x59] sm:$0x1] %vm393, 0.0
        %414 = vst.msk [vmem:[%s392 + $0x71] sm:$0x1] %vm393, 0.0
        %415 = vst.msk [vmem:[%s392 + $0x89] sm:$0x1] %vm393, 0.0
        %416 = vst.msk [vmem:[%s392 + $0xa1] sm:$0x1] %vm393, 0.0
        %417 = vst.msk [vmem:[%s392 + $0xb9] sm:$0x1] %vm393, 0.0
        %418 = vst.msk [vmem:[%s392 + $0xd1] sm:$0x1] %vm393, 0.0
        %419 = vst.msk [vmem:[%s392 + $0xe9] sm:$0x1] %vm393, 0.0
        %420 = vst.msk [vmem:[%s392 + $0x101] sm:$0x1] %vm393, 0.0
        %421 = vst.msk [vmem:[%s392 + $0x119] sm:$0x1] %vm393, 0.0
        %422 = vst.msk [vmem:[%s392 + $0x131] sm:$0x1] %vm393, 0.0
        %423 = vst.msk [vmem:[%s392 + $0x149] sm:$0x1] %vm393, 0.0
        %424 = vst.msk [vmem:[%s392 + $0x161] sm:$0x1] %vm393, 0.0
        %425 = vst.msk [vmem:[%s392 + $0x179] sm:$0x1] %vm393, 0.0
      $region40: #{bottleneck_forward.5} parent=35 // pred_fallthru
        _
      %s426 = scalar_lea.vmem [#allocation2], 24
      %vm427 = vcmask 261120
      %428 = vst.msk [vmem:[%s426 + $0x1] sm:$0xff] %vm427, %v347
      %429 = vst.msk [vmem:[%s426 + $0x9] sm:$0xff] %vm427, %v348
      %430 = vst.msk [vmem:[%s426 + $0x19] sm:$0xff] %vm427, %v349
      %431 = vst.msk [vmem:[%s426 + $0x21] sm:$0xff] %vm427, %v350
      %432 = vst.msk [vmem:[%s426 + $0x31] sm:$0xff] %vm427, %v351
      %433 = vst.msk [vmem:[%s426 + $0x39] sm:$0xff] %vm427, %v352
      %434 = vst.msk [vmem:[%s426 + $0x49] sm:$0xff] %vm427, %v353
      %435 = vst.msk [vmem:[%s426 + $0x51] sm:$0xff] %vm427, %v354
      %436 = vst.msk [vmem:[%s426 + $0x61] sm:$0xff] %vm427, %v355
      %437 = vst.msk [vmem:[%s426 + $0x69] sm:$0xff] %vm427, %v356
      %438 = vst.msk [vmem:[%s426 + $0x79] sm:$0xff] %vm427, %v357
      %439 = vst.msk [vmem:[%s426 + $0x81] sm:$0xff] %vm427, %v358
      %440 = vst.msk [vmem:[%s426 + $0x91] sm:$0xff] %vm427, %v359
      %441 = vst.msk [vmem:[%s426 + $0x99] sm:$0xff] %vm427, %v360
      %442 = vst.msk [vmem:[%s426 + $0xa9] sm:$0xff] %vm427, %v361
      %443 = vst.msk [vmem:[%s426 + $0xb1] sm:$0xff] %vm427, %v362
      %444 = vst.msk [vmem:[%s426 + $0xc1] sm:$0xff] %vm427, %v363
      %445 = vst.msk [vmem:[%s426 + $0xc9] sm:$0xff] %vm427, %v364
      %446 = vst.msk [vmem:[%s426 + $0xd9] sm:$0xff] %vm427, %v365
      %447 = vst.msk [vmem:[%s426 + $0xe1] sm:$0xff] %vm427, %v366
      %448 = vst.msk [vmem:[%s426 + $0xf1] sm:$0xff] %vm427, %v367
      %449 = vst.msk [vmem:[%s426 + $0xf9] sm:$0xff] %vm427, %v368
      %450 = vst.msk [vmem:[%s426 + $0x109] sm:$0xff] %vm427, %v369
      %451 = vst.msk [vmem:[%s426 + $0x111] sm:$0xff] %vm427, %v370
      %452 = vst.msk [vmem:[%s426 + $0x121] sm:$0xff] %vm427, %v371
      %453 = vst.msk [vmem:[%s426 + $0x129] sm:$0xff] %vm427, %v372
      %454 = vst.msk [vmem:[%s426 + $0x139] sm:$0xff] %vm427, %v373
      %455 = vst.msk [vmem:[%s426 + $0x141] sm:$0xff] %vm427, %v374
      %456 = vst.msk [vmem:[%s426 + $0x151] sm:$0xff] %vm427, %v375
      %457 = vst.msk [vmem:[%s426 + $0x159] sm:$0xff] %vm427, %v376
      %458 = vst.msk [vmem:[%s426 + $0x169] sm:$0xff] %vm427, %v377
      %459 = vst.msk [vmem:[%s426 + $0x171] sm:$0xff] %vm427, %v378
      %v460 = vld [vmem:[#allocation2] sm:$0xff]
      %v461 = vld [vmem:[#allocation2 + $0x8] sm:$0xff]
      %v462 = vld [vmem:[#allocation2 + $0x18] sm:$0xff]
      %v463 = vld [vmem:[#allocation2 + $0x20] sm:$0xff]
      %v464 = vld [vmem:[#allocation2 + $0x30] sm:$0xff]
      %v465 = vld [vmem:[#allocation2 + $0x38] sm:$0xff]
      %v466 = vld [vmem:[#allocation2 + $0x48] sm:$0xff]
      %v467 = vld [vmem:[#allocation2 + $0x50] sm:$0xff]
      %v468 = vld [vmem:[#allocation2 + $0x60] sm:$0xff]
      %v469 = vld [vmem:[#allocation2 + $0x68] sm:$0xff]
      %v470 = vld [vmem:[#allocation2 + $0x78] sm:$0xff]
      %v471 = vld [vmem:[#allocation2 + $0x80] sm:$0xff]
      %v472 = vld [vmem:[#allocation2 + $0x90] sm:$0xff]
      %v473 = vld [vmem:[#allocation2 + $0x98] sm:$0xff]
      %v474 = vld [vmem:[#allocation2 + $0xa8] sm:$0xff]
      %v475 = vld [vmem:[#allocation2 + $0xb0] sm:$0xff]
      %v476 = vld [vmem:[#allocation2 + $0xc0] sm:$0xff]
      %v477 = vld [vmem:[#allocation2 + $0xc8] sm:$0xff]
      %v478 = vld [vmem:[#allocation2 + $0xd8] sm:$0xff]
      %v479 = vld [vmem:[#allocation2 + $0xe0] sm:$0xff]
      %v480 = vld [vmem:[#allocation2 + $0xf0] sm:$0xff]
      %v481 = vld [vmem:[#allocation2 + $0xf8] sm:$0xff]
      %v482 = vld [vmem:[#allocation2 + $0x108] sm:$0xff]
      %v483 = vld [vmem:[#allocation2 + $0x110] sm:$0xff]
      %v484 = vld [vmem:[#allocation2 + $0x120] sm:$0xff]
      %v485 = vld [vmem:[#allocation2 + $0x128] sm:$0xff]
      %v486 = vld [vmem:[#allocation2 + $0x138] sm:$0xff]
      %v487 = vld [vmem:[#allocation2 + $0x140] sm:$0xff]
      %v488 = vld [vmem:[#allocation2 + $0x150] sm:$0xff]
      %v489 = vld [vmem:[#allocation2 + $0x158] sm:$0xff]
      %v490 = vld [vmem:[#allocation2 + $0x168] sm:$0xff]
      %v491 = vld [vmem:[#allocation2 + $0x170] sm:$0xff]
      %v492 = vld [vmem:[#allocation2 + $0x1] sm:$0xff]
      %v493 = vld [vmem:[#allocation2 + $0x9] sm:$0xff]
      %v494 = vld [vmem:[#allocation2 + $0x19] sm:$0xff]
      %v495 = vld [vmem:[#allocation2 + $0x21] sm:$0xff]
      %v496 = vld [vmem:[#allocation2 + $0x31] sm:$0xff]
      %v497 = vld [vmem:[#allocation2 + $0x39] sm:$0xff]
      %v498 = vld [vmem:[#allocation2 + $0x49] sm:$0xff]
      %v499 = vld [vmem:[#allocation2 + $0x51] sm:$0xff]
      %v500 = vld [vmem:[#allocation2 + $0x61] sm:$0xff]
      %v501 = vld [vmem:[#allocation2 + $0x69] sm:$0xff]
      %v502 = vld [vmem:[#allocation2 + $0x79] sm:$0xff]
      %v503 = vld [vmem:[#allocation2 + $0x81] sm:$0xff]
      %v504 = vld [vmem:[#allocation2 + $0x91] sm:$0xff]
      %v505 = vld [vmem:[#allocation2 + $0x99] sm:$0xff]
      %v506 = vld [vmem:[#allocation2 + $0xa9] sm:$0xff]
      %v507 = vld [vmem:[#allocation2 + $0xb1] sm:$0xff]
      %v508 = vld [vmem:[#allocation2 + $0xc1] sm:$0xff]
      %v509 = vld [vmem:[#allocation2 + $0xc9] sm:$0xff]
      %v510 = vld [vmem:[#allocation2 + $0xd9] sm:$0xff]
      %v511 = vld [vmem:[#allocation2 + $0xe1] sm:$0xff]
      %v512 = vld [vmem:[#allocation2 + $0xf1] sm:$0xff]
      %v513 = vld [vmem:[#allocation2 + $0xf9] sm:$0xff]
      %v514 = vld [vmem:[#allocation2 + $0x109] sm:$0xff]
      %v515 = vld [vmem:[#allocation2 + $0x111] sm:$0xff]
      %v516 = vld [vmem:[#allocation2 + $0x121] sm:$0xff]
      %v517 = vld [vmem:[#allocation2 + $0x129] sm:$0xff]
      %v518 = vld [vmem:[#allocation2 + $0x139] sm:$0xff]
      %v519 = vld [vmem:[#allocation2 + $0x141] sm:$0xff]
      %v520 = vld [vmem:[#allocation2 + $0x151] sm:$0xff]
      %v521 = vld [vmem:[#allocation2 + $0x159] sm:$0xff]
      %v522 = vld [vmem:[#allocation2 + $0x169] sm:$0xff]
      %v523 = vld [vmem:[#allocation2 + $0x171] sm:$0xff]
      %v524 = vld [vmem:[#allocation2 + $0x2] sm:$0xff]
      %v525 = vld [vmem:[#allocation2 + $0xa] sm:$0xff]
      %v526 = vld [vmem:[#allocation2 + $0x1a] sm:$0xff]
      %v527 = vld [vmem:[#allocation2 + $0x22] sm:$0xff]
      %v528 = vld [vmem:[#allocation2 + $0x32] sm:$0xff]
      %v529 = vld [vmem:[#allocation2 + $0x3a] sm:$0xff]
      %v530 = vld [vmem:[#allocation2 + $0x4a] sm:$0xff]
      %v531 = vld [vmem:[#allocation2 + $0x52] sm:$0xff]
      %v532 = vld [vmem:[#allocation2 + $0x62] sm:$0xff]
      %v533 = vld [vmem:[#allocation2 + $0x6a] sm:$0xff]
      %v534 = vld [vmem:[#allocation2 + $0x7a] sm:$0xff]
      %v535 = vld [vmem:[#allocation2 + $0x82] sm:$0xff]
      %v536 = vld [vmem:[#allocation2 + $0x92] sm:$0xff]
      %v537 = vld [vmem:[#allocation2 + $0x9a] sm:$0xff]
      %v538 = vld [vmem:[#allocation2 + $0xaa] sm:$0xff]
      %v539 = vld [vmem:[#allocation2 + $0xb2] sm:$0xff]
      %v540 = vld [vmem:[#allocation2 + $0xc2] sm:$0xff]
      %v541 = vld [vmem:[#allocation2 + $0xca] sm:$0xff]
      %v542 = vld [vmem:[#allocation2 + $0xda] sm:$0xff]
      %v543 = vld [vmem:[#allocation2 + $0xe2] sm:$0xff]
      %v544 = vld [vmem:[#allocation2 + $0xf2] sm:$0xff]
      %v545 = vld [vmem:[#allocation2 + $0xfa] sm:$0xff]
      %v546 = vld [vmem:[#allocation2 + $0x10a] sm:$0xff]
      %v547 = vld [vmem:[#allocation2 + $0x112] sm:$0xff]
      %v548 = vld [vmem:[#allocation2 + $0x122] sm:$0xff]
      %v549 = vld [vmem:[#allocation2 + $0x12a] sm:$0xff]
      %v550 = vld [vmem:[#allocation2 + $0x13a] sm:$0xff]
      %v551 = vld [vmem:[#allocation2 + $0x142] sm:$0xff]
      %v552 = vld [vmem:[#allocation2 + $0x152] sm:$0xff]
      %v553 = vld [vmem:[#allocation2 + $0x15a] sm:$0xff]
      %v554 = vld [vmem:[#allocation2 + $0x16a] sm:$0xff]
      %v555 = vld [vmem:[#allocation2 + $0x172] sm:$0xff]
      %v556 = vld [vmem:[%s426] sm:$0xff]
      %v557 = vld [vmem:[%s426 + $0x8] sm:$0xff]
      %v558 = vld [vmem:[%s426 + $0x18] sm:$0xff]
      %v559 = vld [vmem:[%s426 + $0x20] sm:$0xff]
      %v560 = vld [vmem:[%s426 + $0x30] sm:$0xff]
      %v561 = vld [vmem:[%s426 + $0x38] sm:$0xff]
      %v562 = vld [vmem:[%s426 + $0x48] sm:$0xff]
      %v563 = vld [vmem:[%s426 + $0x50] sm:$0xff]
      %v564 = vld [vmem:[%s426 + $0x60] sm:$0xff]
      %v565 = vld [vmem:[%s426 + $0x68] sm:$0xff]
      %v566 = vld [vmem:[%s426 + $0x78] sm:$0xff]
      %v567 = vld [vmem:[%s426 + $0x80] sm:$0xff]
      %v568 = vld [vmem:[%s426 + $0x90] sm:$0xff]
      %v569 = vld [vmem:[%s426 + $0x98] sm:$0xff]
      %v570 = vld [vmem:[%s426 + $0xa8] sm:$0xff]
      %v571 = vld [vmem:[%s426 + $0xb0] sm:$0xff]
      %v572 = vld [vmem:[%s426 + $0xc0] sm:$0xff]
      %v573 = vld [vmem:[%s426 + $0xc8] sm:$0xff]
      %v574 = vld [vmem:[%s426 + $0xd8] sm:$0xff]
      %v575 = vld [vmem:[%s426 + $0xe0] sm:$0xff]
      %v576 = vld [vmem:[%s426 + $0xf0] sm:$0xff]
      %v577 = vld [vmem:[%s426 + $0xf8] sm:$0xff]
      %v578 = vld [vmem:[%s426 + $0x108] sm:$0xff]
      %v579 = vld [vmem:[%s426 + $0x110] sm:$0xff]
      %v580 = vld [vmem:[%s426 + $0x120] sm:$0xff]
      %v581 = vld [vmem:[%s426 + $0x128] sm:$0xff]
      %v582 = vld [vmem:[%s426 + $0x138] sm:$0xff]
      %v583 = vld [vmem:[%s426 + $0x140] sm:$0xff]
      %v584 = vld [vmem:[%s426 + $0x150] sm:$0xff]
      %v585 = vld [vmem:[%s426 + $0x158] sm:$0xff]
      %v586 = vld [vmem:[%s426 + $0x168] sm:$0xff]
      %v587 = vld [vmem:[%s426 + $0x170] sm:$0xff]
      %v588 = vld [vmem:[%s426 + $0x1] sm:$0xff]
      %v589 = vld [vmem:[%s426 + $0x9] sm:$0xff]
      %v590 = vld [vmem:[%s426 + $0x19] sm:$0xff]
      %v591 = vld [vmem:[%s426 + $0x21] sm:$0xff]
      %v592 = vld [vmem:[%s426 + $0x31] sm:$0xff]
      %v593 = vld [vmem:[%s426 + $0x39] sm:$0xff]
      %v594 = vld [vmem:[%s426 + $0x49] sm:$0xff]
      %v595 = vld [vmem:[%s426 + $0x51] sm:$0xff]
      %v596 = vld [vmem:[%s426 + $0x61] sm:$0xff]
      %v597 = vld [vmem:[%s426 + $0x69] sm:$0xff]
      %v598 = vld [vmem:[%s426 + $0x79] sm:$0xff]
      %v599 = vld [vmem:[%s426 + $0x81] sm:$0xff]
      %v600 = vld [vmem:[%s426 + $0x91] sm:$0xff]
      %v601 = vld [vmem:[%s426 + $0x99] sm:$0xff]
      %v602 = vld [vmem:[%s426 + $0xa9] sm:$0xff]
      %v603 = vld [vmem:[%s426 + $0xb1] sm:$0xff]
      %v604 = vld [vmem:[%s426 + $0xc1] sm:$0xff]
      %v605 = vld [vmem:[%s426 + $0xc9] sm:$0xff]
      %v606 = vld [vmem:[%s426 + $0xd9] sm:$0xff]
      %v607 = vld [vmem:[%s426 + $0xe1] sm:$0xff]
      %v608 = vld [vmem:[%s426 + $0xf1] sm:$0xff]
      %v609 = vld [vmem:[%s426 + $0xf9] sm:$0xff]
      %v610 = vld [vmem:[%s426 + $0x109] sm:$0xff]
      %v611 = vld [vmem:[%s426 + $0x111] sm:$0xff]
      %v612 = vld [vmem:[%s426 + $0x121] sm:$0xff]
      %v613 = vld [vmem:[%s426 + $0x129] sm:$0xff]
      %v614 = vld [vmem:[%s426 + $0x139] sm:$0xff]
      %v615 = vld [vmem:[%s426 + $0x141] sm:$0xff]
      %v616 = vld [vmem:[%s426 + $0x151] sm:$0xff]
      %v617 = vld [vmem:[%s426 + $0x159] sm:$0xff]
      %v618 = vld [vmem:[%s426 + $0x169] sm:$0xff]
      %v619 = vld [vmem:[%s426 + $0x171] sm:$0xff]
      %v620 = vld [vmem:[%s426 + $0x2] sm:$0xff]
      %v621 = vld [vmem:[%s426 + $0xa] sm:$0xff]
      %v622 = vld [vmem:[%s426 + $0x1a] sm:$0xff]
      %v623 = vld [vmem:[%s426 + $0x22] sm:$0xff]
      %v624 = vld [vmem:[%s426 + $0x32] sm:$0xff]
      %v625 = vld [vmem:[%s426 + $0x3a] sm:$0xff]
      %v626 = vld [vmem:[%s426 + $0x4a] sm:$0xff]
      %v627 = vld [vmem:[%s426 + $0x52] sm:$0xff]
      %v628 = vld [vmem:[%s426 + $0x62] sm:$0xff]
      %v629 = vld [vmem:[%s426 + $0x6a] sm:$0xff]
      %v630 = vld [vmem:[%s426 + $0x7a] sm:$0xff]
      %v631 = vld [vmem:[%s426 + $0x82] sm:$0xff]
      %v632 = vld [vmem:[%s426 + $0x92] sm:$0xff]
      %v633 = vld [vmem:[%s426 + $0x9a] sm:$0xff]
      %v634 = vld [vmem:[%s426 + $0xaa] sm:$0xff]
      %v635 = vld [vmem:[%s426 + $0xb2] sm:$0xff]
      %v636 = vld [vmem:[%s426 + $0xc2] sm:$0xff]
      %v637 = vld [vmem:[%s426 + $0xca] sm:$0xff]
      %v638 = vld [vmem:[%s426 + $0xda] sm:$0xff]
      %v639 = vld [vmem:[%s426 + $0xe2] sm:$0xff]
      %v640 = vld [vmem:[%s426 + $0xf2] sm:$0xff]
      %v641 = vld [vmem:[%s426 + $0xfa] sm:$0xff]
      %v642 = vld [vmem:[%s426 + $0x10a] sm:$0xff]
      %v643 = vld [vmem:[%s426 + $0x112] sm:$0xff]
      %v644 = vld [vmem:[%s426 + $0x122] sm:$0xff]
      %v645 = vld [vmem:[%s426 + $0x12a] sm:$0xff]
      %v646 = vld [vmem:[%s426 + $0x13a] sm:$0xff]
      %v647 = vld [vmem:[%s426 + $0x142] sm:$0xff]
      %v648 = vld [vmem:[%s426 + $0x152] sm:$0xff]
      %v649 = vld [vmem:[%s426 + $0x15a] sm:$0xff]
      %v650 = vld [vmem:[%s426 + $0x16a] sm:$0xff]
      %v651 = vld [vmem:[%s426 + $0x172] sm:$0xff]
      %s652 = scalar_lea.vmem [#allocation2], 48
      %v653 = vld [vmem:[%s652] sm:$0xff]
      %v654 = vld [vmem:[%s652 + $0x8] sm:$0xff]
      %v655 = vld [vmem:[%s652 + $0x18] sm:$0xff]
      %v656 = vld [vmem:[%s652 + $0x20] sm:$0xff]
      %v657 = vld [vmem:[%s652 + $0x30] sm:$0xff]
      %v658 = vld [vmem:[%s652 + $0x38] sm:$0xff]
      %v659 = vld [vmem:[%s652 + $0x48] sm:$0xff]
      %v660 = vld [vmem:[%s652 + $0x50] sm:$0xff]
      %v661 = vld [vmem:[%s652 + $0x60] sm:$0xff]
      %v662 = vld [vmem:[%s652 + $0x68] sm:$0xff]
      %v663 = vld [vmem:[%s652 + $0x78] sm:$0xff]
      %v664 = vld [vmem:[%s652 + $0x80] sm:$0xff]
      %v665 = vld [vmem:[%s652 + $0x90] sm:$0xff]
      %v666 = vld [vmem:[%s652 + $0x98] sm:$0xff]
      %v667 = vld [vmem:[%s652 + $0xa8] sm:$0xff]
      %v668 = vld [vmem:[%s652 + $0xb0] sm:$0xff]
      %v669 = vld [vmem:[%s652 + $0xc0] sm:$0xff]
      %v670 = vld [vmem:[%s652 + $0xc8] sm:$0xff]
      %v671 = vld [vmem:[%s652 + $0xd8] sm:$0xff]
      %v672 = vld [vmem:[%s652 + $0xe0] sm:$0xff]
      %v673 = vld [vmem:[%s652 + $0xf0] sm:$0xff]
      %v674 = vld [vmem:[%s652 + $0xf8] sm:$0xff]
      %v675 = vld [vmem:[%s652 + $0x108] sm:$0xff]
      %v676 = vld [vmem:[%s652 + $0x110] sm:$0xff]
      %v677 = vld [vmem:[%s652 + $0x120] sm:$0xff]
      %v678 = vld [vmem:[%s652 + $0x128] sm:$0xff]
      %v679 = vld [vmem:[%s652 + $0x138] sm:$0xff]
      %v680 = vld [vmem:[%s652 + $0x140] sm:$0xff]
      %v681 = vld [vmem:[%s652 + $0x150] sm:$0xff]
      %v682 = vld [vmem:[%s652 + $0x158] sm:$0xff]
      %v683 = vld [vmem:[%s652 + $0x168] sm:$0xff]
      %v684 = vld [vmem:[%s652 + $0x170] sm:$0xff]
      %v685 = vld [vmem:[%s652 + $0x1] sm:$0xff]
      %v686 = vld [vmem:[%s652 + $0x9] sm:$0xff]
      %v687 = vld [vmem:[%s652 + $0x19] sm:$0xff]
      %v688 = vld [vmem:[%s652 + $0x21] sm:$0xff]
      %v689 = vld [vmem:[%s652 + $0x31] sm:$0xff]
      %v690 = vld [vmem:[%s652 + $0x39] sm:$0xff]
      %v691 = vld [vmem:[%s652 + $0x49] sm:$0xff]
      %v692 = vld [vmem:[%s652 + $0x51] sm:$0xff]
      %v693 = vld [vmem:[%s652 + $0x61] sm:$0xff]
      %v694 = vld [vmem:[%s652 + $0x69] sm:$0xff]
      %v695 = vld [vmem:[%s652 + $0x79] sm:$0xff]
      %v696 = vld [vmem:[%s652 + $0x81] sm:$0xff]
      %v697 = vld [vmem:[%s652 + $0x91] sm:$0xff]
      %v698 = vld [vmem:[%s652 + $0x99] sm:$0xff]
      %v699 = vld [vmem:[%s652 + $0xa9] sm:$0xff]
      %v700 = vld [vmem:[%s652 + $0xb1] sm:$0xff]
      %v701 = vld [vmem:[%s652 + $0xc1] sm:$0xff]
      %v702 = vld [vmem:[%s652 + $0xc9] sm:$0xff]
      %v703 = vld [vmem:[%s652 + $0xd9] sm:$0xff]
      %v704 = vld [vmem:[%s652 + $0xe1] sm:$0xff]
      %v705 = vld [vmem:[%s652 + $0xf1] sm:$0xff]
      %v706 = vld [vmem:[%s652 + $0xf9] sm:$0xff]
      %v707 = vld [vmem:[%s652 + $0x109] sm:$0xff]
      %v708 = vld [vmem:[%s652 + $0x111] sm:$0xff]
      %v709 = vld [vmem:[%s652 + $0x121] sm:$0xff]
      %v710 = vld [vmem:[%s652 + $0x129] sm:$0xff]
      %v711 = vld [vmem:[%s652 + $0x139] sm:$0xff]
      %v712 = vld [vmem:[%s652 + $0x141] sm:$0xff]
      %v713 = vld [vmem:[%s652 + $0x151] sm:$0xff]
      %v714 = vld [vmem:[%s652 + $0x159] sm:$0xff]
      %v715 = vld [vmem:[%s652 + $0x169] sm:$0xff]
      %v716 = vld [vmem:[%s652 + $0x171] sm:$0xff]
      %v717 = vld [vmem:[%s652 + $0x2] sm:$0xff]
      %v718 = vld [vmem:[%s652 + $0xa] sm:$0xff]
      %v719 = vld [vmem:[%s652 + $0x1a] sm:$0xff]
      %v720 = vld [vmem:[%s652 + $0x22] sm:$0xff]
      %v721 = vld [vmem:[%s652 + $0x32] sm:$0xff]
      %v722 = vld [vmem:[%s652 + $0x3a] sm:$0xff]
      %v723 = vld [vmem:[%s652 + $0x4a] sm:$0xff]
      %v724 = vld [vmem:[%s652 + $0x52] sm:$0xff]
      %v725 = vld [vmem:[%s652 + $0x62] sm:$0xff]
      %v726 = vld [vmem:[%s652 + $0x6a] sm:$0xff]
      %v727 = vld [vmem:[%s652 + $0x7a] sm:$0xff]
      %v728 = vld [vmem:[%s652 + $0x82] sm:$0xff]
      %v729 = vld [vmem:[%s652 + $0x92] sm:$0xff]
      %v730 = vld [vmem:[%s652 + $0x9a] sm:$0xff]
      %v731 = vld [vmem:[%s652 + $0xaa] sm:$0xff]
      %v732 = vld [vmem:[%s652 + $0xb2] sm:$0xff]
      %v733 = vld [vmem:[%s652 + $0xc2] sm:$0xff]
      %v734 = vld [vmem:[%s652 + $0xca] sm:$0xff]
      %v735 = vld [vmem:[%s652 + $0xda] sm:$0xff]
      %v736 = vld [vmem:[%s652 + $0xe2] sm:$0xff]
      %v737 = vld [vmem:[%s652 + $0xf2] sm:$0xff]
      %v738 = vld [vmem:[%s652 + $0xfa] sm:$0xff]
      %v739 = vld [vmem:[%s652 + $0x10a] sm:$0xff]
      %v740 = vld [vmem:[%s652 + $0x112] sm:$0xff]
      %v741 = vld [vmem:[%s652 + $0x122] sm:$0xff]
      %v742 = vld [vmem:[%s652 + $0x12a] sm:$0xff]
      %v743 = vld [vmem:[%s652 + $0x13a] sm:$0xff]
      %v744 = vld [vmem:[%s652 + $0x142] sm:$0xff]
      %v745 = vld [vmem:[%s652 + $0x152] sm:$0xff]
      %v746 = vld [vmem:[%s652 + $0x15a] sm:$0xff]
      %v747 = vld [vmem:[%s652 + $0x16a] sm:$0xff]
      %v748 = vld [vmem:[%s652 + $0x172] sm:$0xff]
      %781 = vrot.lane.b32.xlu0 %v492, 32
      %v782 = vpop.permute.xlu0 %781
      %783 = vrot.lane.b32.xlu0 %v493, 32
      %v784 = vpop.permute.xlu0 %783
      %785 = vrot.lane.b32.xlu0 %v494, 32
      %v786 = vpop.permute.xlu0 %785
      %787 = vrot.lane.b32.xlu0 %v495, 32
      %v788 = vpop.permute.xlu0 %787
      %789 = vrot.lane.b32.xlu0 %v496, 32
      %v790 = vpop.permute.xlu0 %789
      %791 = vrot.lane.b32.xlu0 %v497, 32
      %v792 = vpop.permute.xlu0 %791
      %793 = vrot.lane.b32.xlu0 %v498, 32
      %v794 = vpop.permute.xlu0 %793
      %795 = vrot.lane.b32.xlu0 %v499, 32
      %v796 = vpop.permute.xlu0 %795
      %797 = vrot.lane.b32.xlu0 %v500, 32
      %v798 = vpop.permute.xlu0 %797
      %799 = vrot.lane.b32.xlu0 %v501, 32
      %v800 = vpop.permute.xlu0 %799
      %801 = vrot.lane.b32.xlu0 %v502, 32
      %v802 = vpop.permute.xlu0 %801
      %803 = vrot.lane.b32.xlu0 %v503, 32
      %v804 = vpop.permute.xlu0 %803
      %805 = vrot.lane.b32.xlu0 %v504, 32
      %v806 = vpop.permute.xlu0 %805
      %807 = vrot.lane.b32.xlu0 %v505, 32
      %v808 = vpop.permute.xlu0 %807
      %809 = vrot.lane.b32.xlu0 %v506, 32
      %v810 = vpop.permute.xlu0 %809
      %811 = vrot.lane.b32.xlu0 %v507, 32
      %v812 = vpop.permute.xlu0 %811
      %813 = vrot.lane.b32.xlu0 %v508, 32
      %v814 = vpop.permute.xlu0 %813
      %815 = vrot.lane.b32.xlu0 %v509, 32
      %v816 = vpop.permute.xlu0 %815
      %817 = vrot.lane.b32.xlu0 %v510, 32
      %v818 = vpop.permute.xlu0 %817
      %819 = vrot.lane.b32.xlu0 %v511, 32
      %v820 = vpop.permute.xlu0 %819
      %821 = vrot.lane.b32.xlu0 %v512, 32
      %v822 = vpop.permute.xlu0 %821
      %823 = vrot.lane.b32.xlu0 %v513, 32
      %v824 = vpop.permute.xlu0 %823
      %825 = vrot.lane.b32.xlu0 %v514, 32
      %v826 = vpop.permute.xlu0 %825
      %827 = vrot.lane.b32.xlu0 %v515, 32
      %v828 = vpop.permute.xlu0 %827
      %829 = vrot.lane.b32.xlu0 %v516, 32
      %v830 = vpop.permute.xlu0 %829
      %831 = vrot.lane.b32.xlu0 %v517, 32
      %v832 = vpop.permute.xlu0 %831
      %833 = vrot.lane.b32.xlu0 %v518, 32
      %v834 = vpop.permute.xlu0 %833
      %835 = vrot.lane.b32.xlu0 %v519, 32
      %v836 = vpop.permute.xlu0 %835
      %837 = vrot.lane.b32.xlu0 %v520, 32
      %v838 = vpop.permute.xlu0 %837
      %839 = vrot.lane.b32.xlu0 %v521, 32
      %v840 = vpop.permute.xlu0 %839
      %841 = vrot.lane.b32.xlu0 %v522, 32
      %v842 = vpop.permute.xlu0 %841
      %843 = vrot.lane.b32.xlu0 %v523, 32
      %v844 = vpop.permute.xlu0 %843
      %909 = vrot.lane.b32.xlu0 %v524, 64
      %v910 = vpop.permute.xlu0 %909
      %911 = vrot.lane.b32.xlu0 %v525, 64
      %v912 = vpop.permute.xlu0 %911
      %913 = vrot.lane.b32.xlu0 %v526, 64
      %v914 = vpop.permute.xlu0 %913
      %915 = vrot.lane.b32.xlu0 %v527, 64
      %v916 = vpop.permute.xlu0 %915
      %917 = vrot.lane.b32.xlu0 %v528, 64
      %v918 = vpop.permute.xlu0 %917
      %919 = vrot.lane.b32.xlu0 %v529, 64
      %v920 = vpop.permute.xlu0 %919
      %921 = vrot.lane.b32.xlu0 %v530, 64
      %v922 = vpop.permute.xlu0 %921
      %923 = vrot.lane.b32.xlu0 %v531, 64
      %v924 = vpop.permute.xlu0 %923
      %925 = vrot.lane.b32.xlu0 %v532, 64
      %v926 = vpop.permute.xlu0 %925
      %927 = vrot.lane.b32.xlu0 %v533, 64
      %v928 = vpop.permute.xlu0 %927
      %929 = vrot.lane.b32.xlu0 %v534, 64
      %v930 = vpop.permute.xlu0 %929
      %931 = vrot.lane.b32.xlu0 %v535, 64
      %v932 = vpop.permute.xlu0 %931
      %933 = vrot.lane.b32.xlu0 %v536, 64
      %v934 = vpop.permute.xlu0 %933
      %935 = vrot.lane.b32.xlu0 %v537, 64
      %v936 = vpop.permute.xlu0 %935
      %937 = vrot.lane.b32.xlu0 %v538, 64
      %v938 = vpop.permute.xlu0 %937
      %939 = vrot.lane.b32.xlu0 %v539, 64
      %v940 = vpop.permute.xlu0 %939
      %941 = vrot.lane.b32.xlu0 %v540, 64
      %v942 = vpop.permute.xlu0 %941
      %943 = vrot.lane.b32.xlu0 %v541, 64
      %v944 = vpop.permute.xlu0 %943
      %945 = vrot.lane.b32.xlu0 %v542, 64
      %v946 = vpop.permute.xlu0 %945
      %947 = vrot.lane.b32.xlu0 %v543, 64
      %v948 = vpop.permute.xlu0 %947
      %949 = vrot.lane.b32.xlu0 %v544, 64
      %v950 = vpop.permute.xlu0 %949
      %951 = vrot.lane.b32.xlu0 %v545, 64
      %v952 = vpop.permute.xlu0 %951
      %953 = vrot.lane.b32.xlu0 %v546, 64
      %v954 = vpop.permute.xlu0 %953
      %955 = vrot.lane.b32.xlu0 %v547, 64
      %v956 = vpop.permute.xlu0 %955
      %957 = vrot.lane.b32.xlu0 %v548, 64
      %v958 = vpop.permute.xlu0 %957
      %959 = vrot.lane.b32.xlu0 %v549, 64
      %v960 = vpop.permute.xlu0 %959
      %961 = vrot.lane.b32.xlu0 %v550, 64
      %v962 = vpop.permute.xlu0 %961
      %963 = vrot.lane.b32.xlu0 %v551, 64
      %v964 = vpop.permute.xlu0 %963
      %965 = vrot.lane.b32.xlu0 %v552, 64
      %v966 = vpop.permute.xlu0 %965
      %967 = vrot.lane.b32.xlu0 %v553, 64
      %v968 = vpop.permute.xlu0 %967
      %969 = vrot.lane.b32.xlu0 %v554, 64
      %v970 = vpop.permute.xlu0 %969
      %971 = vrot.lane.b32.xlu0 %v555, 64
      %v972 = vpop.permute.xlu0 %971
      %1037 = vrot.lane.b32.xlu0 %v556, 96
      %v1038 = vpop.permute.xlu0 %1037
      %1039 = vrot.lane.b32.xlu0 %v557, 96
      %v1040 = vpop.permute.xlu0 %1039
      %1041 = vrot.lane.b32.xlu0 %v558, 96
      %v1042 = vpop.permute.xlu0 %1041
      %1043 = vrot.lane.b32.xlu0 %v559, 96
      %v1044 = vpop.permute.xlu0 %1043
      %1045 = vrot.lane.b32.xlu0 %v560, 96
      %v1046 = vpop.permute.xlu0 %1045
      %1047 = vrot.lane.b32.xlu0 %v561, 96
      %v1048 = vpop.permute.xlu0 %1047
      %1049 = vrot.lane.b32.xlu0 %v562, 96
      %v1050 = vpop.permute.xlu0 %1049
      %1051 = vrot.lane.b32.xlu0 %v563, 96
      %v1052 = vpop.permute.xlu0 %1051
      %1053 = vrot.lane.b32.xlu0 %v564, 96
      %v1054 = vpop.permute.xlu0 %1053
      %1055 = vrot.lane.b32.xlu0 %v565, 96
      %v1056 = vpop.permute.xlu0 %1055
      %1057 = vrot.lane.b32.xlu0 %v566, 96
      %v1058 = vpop.permute.xlu0 %1057
      %1059 = vrot.lane.b32.xlu0 %v567, 96
      %v1060 = vpop.permute.xlu0 %1059
      %1061 = vrot.lane.b32.xlu0 %v568, 96
      %v1062 = vpop.permute.xlu0 %1061
      %1063 = vrot.lane.b32.xlu0 %v569, 96
      %v1064 = vpop.permute.xlu0 %1063
      %1065 = vrot.lane.b32.xlu0 %v570, 96
      %v1066 = vpop.permute.xlu0 %1065
      %1067 = vrot.lane.b32.xlu0 %v571, 96
      %v1068 = vpop.permute.xlu0 %1067
      %1069 = vrot.lane.b32.xlu0 %v572, 96
      %v1070 = vpop.permute.xlu0 %1069
      %1071 = vrot.lane.b32.xlu0 %v573, 96
      %v1072 = vpop.permute.xlu0 %1071
      %1073 = vrot.lane.b32.xlu0 %v574, 96
      %v1074 = vpop.permute.xlu0 %1073
      %1075 = vrot.lane.b32.xlu0 %v575, 96
      %v1076 = vpop.permute.xlu0 %1075
      %1077 = vrot.lane.b32.xlu0 %v576, 96
      %v1078 = vpop.permute.xlu0 %1077
      %1079 = vrot.lane.b32.xlu0 %v577, 96
      %v1080 = vpop.permute.xlu0 %1079
      %1081 = vrot.lane.b32.xlu0 %v578, 96
      %v1082 = vpop.permute.xlu0 %1081
      %1083 = vrot.lane.b32.xlu0 %v579, 96
      %v1084 = vpop.permute.xlu0 %1083
      %1085 = vrot.lane.b32.xlu0 %v580, 96
      %v1086 = vpop.permute.xlu0 %1085
      %1087 = vrot.lane.b32.xlu0 %v581, 96
      %v1088 = vpop.permute.xlu0 %1087
      %1089 = vrot.lane.b32.xlu0 %v582, 96
      %v1090 = vpop.permute.xlu0 %1089
      %1091 = vrot.lane.b32.xlu0 %v583, 96
      %v1092 = vpop.permute.xlu0 %1091
      %1093 = vrot.lane.b32.xlu0 %v584, 96
      %v1094 = vpop.permute.xlu0 %1093
      %1095 = vrot.lane.b32.xlu0 %v585, 96
      %v1096 = vpop.permute.xlu0 %1095
      %1097 = vrot.lane.b32.xlu0 %v586, 96
      %v1098 = vpop.permute.xlu0 %1097
      %1099 = vrot.lane.b32.xlu0 %v587, 96
      %v1100 = vpop.permute.xlu0 %1099
      %1165 = vrot.lane.b32.xlu0 %v620, 32
      %v1166 = vpop.permute.xlu0 %1165
      %1167 = vrot.lane.b32.xlu0 %v621, 32
      %v1168 = vpop.permute.xlu0 %1167
      %1169 = vrot.lane.b32.xlu0 %v622, 32
      %v1170 = vpop.permute.xlu0 %1169
      %1171 = vrot.lane.b32.xlu0 %v623, 32
      %v1172 = vpop.permute.xlu0 %1171
      %1173 = vrot.lane.b32.xlu0 %v624, 32
      %v1174 = vpop.permute.xlu0 %1173
      %1175 = vrot.lane.b32.xlu0 %v625, 32
      %v1176 = vpop.permute.xlu0 %1175
      %1177 = vrot.lane.b32.xlu0 %v626, 32
      %v1178 = vpop.permute.xlu0 %1177
      %1179 = vrot.lane.b32.xlu0 %v627, 32
      %v1180 = vpop.permute.xlu0 %1179
      %1181 = vrot.lane.b32.xlu0 %v628, 32
      %v1182 = vpop.permute.xlu0 %1181
      %1183 = vrot.lane.b32.xlu0 %v629, 32
      %v1184 = vpop.permute.xlu0 %1183
      %1185 = vrot.lane.b32.xlu0 %v630, 32
      %v1186 = vpop.permute.xlu0 %1185
      %1187 = vrot.lane.b32.xlu0 %v631, 32
      %v1188 = vpop.permute.xlu0 %1187
      %1189 = vrot.lane.b32.xlu0 %v632, 32
      %v1190 = vpop.permute.xlu0 %1189
      %1191 = vrot.lane.b32.xlu0 %v633, 32
      %v1192 = vpop.permute.xlu0 %1191
      %1193 = vrot.lane.b32.xlu0 %v634, 32
      %v1194 = vpop.permute.xlu0 %1193
      %1195 = vrot.lane.b32.xlu0 %v635, 32
      %v1196 = vpop.permute.xlu0 %1195
      %1197 = vrot.lane.b32.xlu0 %v636, 32
      %v1198 = vpop.permute.xlu0 %1197
      %1199 = vrot.lane.b32.xlu0 %v637, 32
      %v1200 = vpop.permute.xlu0 %1199
      %1201 = vrot.lane.b32.xlu0 %v638, 32
      %v1202 = vpop.permute.xlu0 %1201
      %1203 = vrot.lane.b32.xlu0 %v639, 32
      %v1204 = vpop.permute.xlu0 %1203
      %1205 = vrot.lane.b32.xlu0 %v640, 32
      %v1206 = vpop.permute.xlu0 %1205
      %1207 = vrot.lane.b32.xlu0 %v641, 32
      %v1208 = vpop.permute.xlu0 %1207
      %1209 = vrot.lane.b32.xlu0 %v642, 32
      %v1210 = vpop.permute.xlu0 %1209
      %1211 = vrot.lane.b32.xlu0 %v643, 32
      %v1212 = vpop.permute.xlu0 %1211
      %1213 = vrot.lane.b32.xlu0 %v644, 32
      %v1214 = vpop.permute.xlu0 %1213
      %1215 = vrot.lane.b32.xlu0 %v645, 32
      %v1216 = vpop.permute.xlu0 %1215
      %1217 = vrot.lane.b32.xlu0 %v646, 32
      %v1218 = vpop.permute.xlu0 %1217
      %1219 = vrot.lane.b32.xlu0 %v647, 32
      %v1220 = vpop.permute.xlu0 %1219
      %1221 = vrot.lane.b32.xlu0 %v648, 32
      %v1222 = vpop.permute.xlu0 %1221
      %1223 = vrot.lane.b32.xlu0 %v649, 32
      %v1224 = vpop.permute.xlu0 %1223
      %1225 = vrot.lane.b32.xlu0 %v650, 32
      %v1226 = vpop.permute.xlu0 %1225
      %1227 = vrot.lane.b32.xlu0 %v651, 32
      %v1228 = vpop.permute.xlu0 %1227
      %1293 = vrot.lane.b32.xlu0 %v653, 64
      %v1294 = vpop.permute.xlu0 %1293
      %1295 = vrot.lane.b32.xlu0 %v654, 64
      %v1296 = vpop.permute.xlu0 %1295
      %1297 = vrot.lane.b32.xlu0 %v655, 64
      %v1298 = vpop.permute.xlu0 %1297
      %1299 = vrot.lane.b32.xlu0 %v656, 64
      %v1300 = vpop.permute.xlu0 %1299
      %1301 = vrot.lane.b32.xlu0 %v657, 64
      %v1302 = vpop.permute.xlu0 %1301
      %1303 = vrot.lane.b32.xlu0 %v658, 64
      %v1304 = vpop.permute.xlu0 %1303
      %1305 = vrot.lane.b32.xlu0 %v659, 64
      %v1306 = vpop.permute.xlu0 %1305
      %1307 = vrot.lane.b32.xlu0 %v660, 64
      %v1308 = vpop.permute.xlu0 %1307
      %1309 = vrot.lane.b32.xlu0 %v661, 64
      %v1310 = vpop.permute.xlu0 %1309
      %1311 = vrot.lane.b32.xlu0 %v662, 64
      %v1312 = vpop.permute.xlu0 %1311
      %1313 = vrot.lane.b32.xlu0 %v663, 64
      %v1314 = vpop.permute.xlu0 %1313
      %1315 = vrot.lane.b32.xlu0 %v664, 64
      %v1316 = vpop.permute.xlu0 %1315
      %1317 = vrot.lane.b32.xlu0 %v665, 64
      %v1318 = vpop.permute.xlu0 %1317
      %1319 = vrot.lane.b32.xlu0 %v666, 64
      %v1320 = vpop.permute.xlu0 %1319
      %1321 = vrot.lane.b32.xlu0 %v667, 64
      %v1322 = vpop.permute.xlu0 %1321
      %1323 = vrot.lane.b32.xlu0 %v668, 64
      %v1324 = vpop.permute.xlu0 %1323
      %1325 = vrot.lane.b32.xlu0 %v669, 64
      %v1326 = vpop.permute.xlu0 %1325
      %1327 = vrot.lane.b32.xlu0 %v670, 64
      %v1328 = vpop.permute.xlu0 %1327
      %1329 = vrot.lane.b32.xlu0 %v671, 64
      %v1330 = vpop.permute.xlu0 %1329
      %1331 = vrot.lane.b32.xlu0 %v672, 64
      %v1332 = vpop.permute.xlu0 %1331
      %1333 = vrot.lane.b32.xlu0 %v673, 64
      %v1334 = vpop.permute.xlu0 %1333
      %1335 = vrot.lane.b32.xlu0 %v674, 64
      %v1336 = vpop.permute.xlu0 %1335
      %1337 = vrot.lane.b32.xlu0 %v675, 64
      %v1338 = vpop.permute.xlu0 %1337
      %1339 = vrot.lane.b32.xlu0 %v676, 64
      %v1340 = vpop.permute.xlu0 %1339
      %1341 = vrot.lane.b32.xlu0 %v677, 64
      %v1342 = vpop.permute.xlu0 %1341
      %1343 = vrot.lane.b32.xlu0 %v678, 64
      %v1344 = vpop.permute.xlu0 %1343
      %1345 = vrot.lane.b32.xlu0 %v679, 64
      %v1346 = vpop.permute.xlu0 %1345
      %1347 = vrot.lane.b32.xlu0 %v680, 64
      %v1348 = vpop.permute.xlu0 %1347
      %1349 = vrot.lane.b32.xlu0 %v681, 64
      %v1350 = vpop.permute.xlu0 %1349
      %1351 = vrot.lane.b32.xlu0 %v682, 64
      %v1352 = vpop.permute.xlu0 %1351
      %1353 = vrot.lane.b32.xlu0 %v683, 64
      %v1354 = vpop.permute.xlu0 %1353
      %1355 = vrot.lane.b32.xlu0 %v684, 64
      %v1356 = vpop.permute.xlu0 %1355
      %1421 = vrot.lane.b32.xlu0 %v685, 96
      %v1422 = vpop.permute.xlu0 %1421
      %1423 = vrot.lane.b32.xlu0 %v686, 96
      %v1424 = vpop.permute.xlu0 %1423
      %1425 = vrot.lane.b32.xlu0 %v687, 96
      %v1426 = vpop.permute.xlu0 %1425
      %1427 = vrot.lane.b32.xlu0 %v688, 96
      %v1428 = vpop.permute.xlu0 %1427
      %1429 = vrot.lane.b32.xlu0 %v689, 96
      %v1430 = vpop.permute.xlu0 %1429
      %1431 = vrot.lane.b32.xlu0 %v690, 96
      %v1432 = vpop.permute.xlu0 %1431
      %1433 = vrot.lane.b32.xlu0 %v691, 96
      %v1434 = vpop.permute.xlu0 %1433
      %1435 = vrot.lane.b32.xlu0 %v692, 96
      %v1436 = vpop.permute.xlu0 %1435
      %1437 = vrot.lane.b32.xlu0 %v693, 96
      %v1438 = vpop.permute.xlu0 %1437
      %1439 = vrot.lane.b32.xlu0 %v694, 96
      %v1440 = vpop.permute.xlu0 %1439
      %1441 = vrot.lane.b32.xlu0 %v695, 96
      %v1442 = vpop.permute.xlu0 %1441
      %1443 = vrot.lane.b32.xlu0 %v696, 96
      %v1444 = vpop.permute.xlu0 %1443
      %1445 = vrot.lane.b32.xlu0 %v697, 96
      %v1446 = vpop.permute.xlu0 %1445
      %1447 = vrot.lane.b32.xlu0 %v698, 96
      %v1448 = vpop.permute.xlu0 %1447
      %1449 = vrot.lane.b32.xlu0 %v699, 96
      %v1450 = vpop.permute.xlu0 %1449
      %1451 = vrot.lane.b32.xlu0 %v700, 96
      %v1452 = vpop.permute.xlu0 %1451
      %1453 = vrot.lane.b32.xlu0 %v701, 96
      %v1454 = vpop.permute.xlu0 %1453
      %1455 = vrot.lane.b32.xlu0 %v702, 96
      %v1456 = vpop.permute.xlu0 %1455
      %1457 = vrot.lane.b32.xlu0 %v703, 96
      %v1458 = vpop.permute.xlu0 %1457
      %1459 = vrot.lane.b32.xlu0 %v704, 96
      %v1460 = vpop.permute.xlu0 %1459
      %1461 = vrot.lane.b32.xlu0 %v705, 96
      %v1462 = vpop.permute.xlu0 %1461
      %1463 = vrot.lane.b32.xlu0 %v706, 96
      %v1464 = vpop.permute.xlu0 %1463
      %1465 = vrot.lane.b32.xlu0 %v707, 96
      %v1466 = vpop.permute.xlu0 %1465
      %1467 = vrot.lane.b32.xlu0 %v708, 96
      %v1468 = vpop.permute.xlu0 %1467
      %1469 = vrot.lane.b32.xlu0 %v709, 96
      %v1470 = vpop.permute.xlu0 %1469
      %1471 = vrot.lane.b32.xlu0 %v710, 96
      %v1472 = vpop.permute.xlu0 %1471
      %1473 = vrot.lane.b32.xlu0 %v711, 96
      %v1474 = vpop.permute.xlu0 %1473
      %1475 = vrot.lane.b32.xlu0 %v712, 96
      %v1476 = vpop.permute.xlu0 %1475
      %1477 = vrot.lane.b32.xlu0 %v713, 96
      %v1478 = vpop.permute.xlu0 %1477
      %1479 = vrot.lane.b32.xlu0 %v714, 96
      %v1480 = vpop.permute.xlu0 %1479
      %1481 = vrot.lane.b32.xlu0 %v715, 96
      %v1482 = vpop.permute.xlu0 %1481
      %1483 = vrot.lane.b32.xlu0 %v716, 96
      %v1484 = vpop.permute.xlu0 %1483
      %v1517 = vsel %vm427, %v460, %v782
      %v1518 = vsel %vm427, %v461, %v784
      %v1519 = vsel %vm427, %v462, %v786
      %v1520 = vsel %vm427, %v463, %v788
      %v1521 = vsel %vm427, %v464, %v790
      %v1522 = vsel %vm427, %v465, %v792
      %v1523 = vsel %vm427, %v466, %v794
      %v1524 = vsel %vm427, %v467, %v796
      %v1525 = vsel %vm427, %v468, %v798
      %v1526 = vsel %vm427, %v469, %v800
      %v1527 = vsel %vm427, %v470, %v802
      %v1528 = vsel %vm427, %v471, %v804
      %v1529 = vsel %vm427, %v472, %v806
      %v1530 = vsel %vm427, %v473, %v808
      %v1531 = vsel %vm427, %v474, %v810
      %v1532 = vsel %vm427, %v475, %v812
      %v1533 = vsel %vm427, %v476, %v814
      %v1534 = vsel %vm427, %v477, %v816
      %v1535 = vsel %vm427, %v478, %v818
      %v1536 = vsel %vm427, %v479, %v820
      %v1537 = vsel %vm427, %v480, %v822
      %v1538 = vsel %vm427, %v481, %v824
      %v1539 = vsel %vm427, %v482, %v826
      %v1540 = vsel %vm427, %v483, %v828
      %v1541 = vsel %vm427, %v484, %v830
      %v1542 = vsel %vm427, %v485, %v832
      %v1543 = vsel %vm427, %v486, %v834
      %v1544 = vsel %vm427, %v487, %v836
      %v1545 = vsel %vm427, %v488, %v838
      %v1546 = vsel %vm427, %v489, %v840
      %v1547 = vsel %vm427, %v490, %v842
      %v1548 = vsel %vm427, %v491, %v844
      %vm1549 = vcmask 523264
      %v1550 = vsel %vm1549, %v1517, %v910
      %v1551 = vsel %vm1549, %v1518, %v912
      %v1552 = vsel %vm1549, %v1519, %v914
      %v1553 = vsel %vm1549, %v1520, %v916
      %v1554 = vsel %vm1549, %v1521, %v918
      %v1555 = vsel %vm1549, %v1522, %v920
      %v1556 = vsel %vm1549, %v1523, %v922
      %v1557 = vsel %vm1549, %v1524, %v924
      %v1558 = vsel %vm1549, %v1525, %v926
      %v1559 = vsel %vm1549, %v1526, %v928
      %v1560 = vsel %vm1549, %v1527, %v930
      %v1561 = vsel %vm1549, %v1528, %v932
      %v1562 = vsel %vm1549, %v1529, %v934
      %v1563 = vsel %vm1549, %v1530, %v936
      %v1564 = vsel %vm1549, %v1531, %v938
      %v1565 = vsel %vm1549, %v1532, %v940
      %v1566 = vsel %vm1549, %v1533, %v942
      %v1567 = vsel %vm1549, %v1534, %v944
      %v1568 = vsel %vm1549, %v1535, %v946
      %v1569 = vsel %vm1549, %v1536, %v948
      %v1570 = vsel %vm1549, %v1537, %v950
      %v1571 = vsel %vm1549, %v1538, %v952
      %v1572 = vsel %vm1549, %v1539, %v954
      %v1573 = vsel %vm1549, %v1540, %v956
      %v1574 = vsel %vm1549, %v1541, %v958
      %v1575 = vsel %vm1549, %v1542, %v960
      %v1576 = vsel %vm1549, %v1543, %v962
      %v1577 = vsel %vm1549, %v1544, %v964
      %v1578 = vsel %vm1549, %v1545, %v966
      %v1579 = vsel %vm1549, %v1546, %v968
      %v1580 = vsel %vm1549, %v1547, %v970
      %v1581 = vsel %vm1549, %v1548, %v972
      %vm1582 = vcmask 785408
      %v1583 = vsel %vm1582, %v1550, %v1038
      %v1584 = vsel %vm1582, %v1551, %v1040
      %v1585 = vsel %vm1582, %v1552, %v1042
      %v1586 = vsel %vm1582, %v1553, %v1044
      %v1587 = vsel %vm1582, %v1554, %v1046
      %v1588 = vsel %vm1582, %v1555, %v1048
      %v1589 = vsel %vm1582, %v1556, %v1050
      %v1590 = vsel %vm1582, %v1557, %v1052
      %v1591 = vsel %vm1582, %v1558, %v1054
      %v1592 = vsel %vm1582, %v1559, %v1056
      %v1593 = vsel %vm1582, %v1560, %v1058
      %v1594 = vsel %vm1582, %v1561, %v1060
      %v1595 = vsel %vm1582, %v1562, %v1062
      %v1596 = vsel %vm1582, %v1563, %v1064
      %v1597 = vsel %vm1582, %v1564, %v1066
      %v1598 = vsel %vm1582, %v1565, %v1068
      %v1599 = vsel %vm1582, %v1566, %v1070
      %v1600 = vsel %vm1582, %v1567, %v1072
      %v1601 = vsel %vm1582, %v1568, %v1074
      %v1602 = vsel %vm1582, %v1569, %v1076
      %v1603 = vsel %vm1582, %v1570, %v1078
      %v1604 = vsel %vm1582, %v1571, %v1080
      %v1605 = vsel %vm1582, %v1572, %v1082
      %v1606 = vsel %vm1582, %v1573, %v1084
      %v1607 = vsel %vm1582, %v1574, %v1086
      %v1608 = vsel %vm1582, %v1575, %v1088
      %v1609 = vsel %vm1582, %v1576, %v1090
      %v1610 = vsel %vm1582, %v1577, %v1092
      %v1611 = vsel %vm1582, %v1578, %v1094
      %v1612 = vsel %vm1582, %v1579, %v1096
      %v1613 = vsel %vm1582, %v1580, %v1098
      %v1614 = vsel %vm1582, %v1581, %v1100
      %v1615 = vsel %vm427, %v588, %v1166
      %v1616 = vsel %vm427, %v589, %v1168
      %v1617 = vsel %vm427, %v590, %v1170
      %v1618 = vsel %vm427, %v591, %v1172
      %v1619 = vsel %vm427, %v592, %v1174
      %v1620 = vsel %vm427, %v593, %v1176
      %v1621 = vsel %vm427, %v594, %v1178
      %v1622 = vsel %vm427, %v595, %v1180
      %v1623 = vsel %vm427, %v596, %v1182
      %v1624 = vsel %vm427, %v597, %v1184
      %v1625 = vsel %vm427, %v598, %v1186
      %v1626 = vsel %vm427, %v599, %v1188
      %v1627 = vsel %vm427, %v600, %v1190
      %v1628 = vsel %vm427, %v601, %v1192
      %v1629 = vsel %vm427, %v602, %v1194
      %v1630 = vsel %vm427, %v603, %v1196
      %v1631 = vsel %vm427, %v604, %v1198
      %v1632 = vsel %vm427, %v605, %v1200
      %v1633 = vsel %vm427, %v606, %v1202
      %v1634 = vsel %vm427, %v607, %v1204
      %v1635 = vsel %vm427, %v608, %v1206
      %v1636 = vsel %vm427, %v609, %v1208
      %v1637 = vsel %vm427, %v610, %v1210
      %v1638 = vsel %vm427, %v611, %v1212
      %v1639 = vsel %vm427, %v612, %v1214
      %v1640 = vsel %vm427, %v613, %v1216
      %v1641 = vsel %vm427, %v614, %v1218
      %v1642 = vsel %vm427, %v615, %v1220
      %v1643 = vsel %vm427, %v616, %v1222
      %v1644 = vsel %vm427, %v617, %v1224
      %v1645 = vsel %vm427, %v618, %v1226
      %v1646 = vsel %vm427, %v619, %v1228
      %v1647 = vsel %vm1549, %v1615, %v1294
      %v1648 = vsel %vm1549, %v1616, %v1296
      %v1649 = vsel %vm1549, %v1617, %v1298
      %v1650 = vsel %vm1549, %v1618, %v1300
      %v1651 = vsel %vm1549, %v1619, %v1302
      %v1652 = vsel %vm1549, %v1620, %v1304
      %v1653 = vsel %vm1549, %v1621, %v1306
      %v1654 = vsel %vm1549, %v1622, %v1308
      %v1655 = vsel %vm1549, %v1623, %v1310
      %v1656 = vsel %vm1549, %v1624, %v1312
      %v1657 = vsel %vm1549, %v1625, %v1314
      %v1658 = vsel %vm1549, %v1626, %v1316
      %v1659 = vsel %vm1549, %v1627, %v1318
      %v1660 = vsel %vm1549, %v1628, %v1320
      %v1661 = vsel %vm1549, %v1629, %v1322
      %v1662 = vsel %vm1549, %v1630, %v1324
      %v1663 = vsel %vm1549, %v1631, %v1326
      %v1664 = vsel %vm1549, %v1632, %v1328
      %v1665 = vsel %vm1549, %v1633, %v1330
      %v1666 = vsel %vm1549, %v1634, %v1332
      %v1667 = vsel %vm1549, %v1635, %v1334
      %v1668 = vsel %vm1549, %v1636, %v1336
      %v1669 = vsel %vm1549, %v1637, %v1338
      %v1670 = vsel %vm1549, %v1638, %v1340
      %v1671 = vsel %vm1549, %v1639, %v1342
      %v1672 = vsel %vm1549, %v1640, %v1344
      %v1673 = vsel %vm1549, %v1641, %v1346
      %v1674 = vsel %vm1549, %v1642, %v1348
      %v1675 = vsel %vm1549, %v1643, %v1350
      %v1676 = vsel %vm1549, %v1644, %v1352
      %v1677 = vsel %vm1549, %v1645, %v1354
      %v1678 = vsel %vm1549, %v1646, %v1356
      %v1679 = vsel %vm1582, %v1647, %v1422
      %v1680 = vsel %vm1582, %v1648, %v1424
      %v1681 = vsel %vm1582, %v1649, %v1426
      %v1682 = vsel %vm1582, %v1650, %v1428
      %v1683 = vsel %vm1582, %v1651, %v1430
      %v1684 = vsel %vm1582, %v1652, %v1432
      %v1685 = vsel %vm1582, %v1653, %v1434
      %v1686 = vsel %vm1582, %v1654, %v1436
      %v1687 = vsel %vm1582, %v1655, %v1438
      %v1688 = vsel %vm1582, %v1656, %v1440
      %v1689 = vsel %vm1582, %v1657, %v1442
      %v1690 = vsel %vm1582, %v1658, %v1444
      %v1691 = vsel %vm1582, %v1659, %v1446
      %v1692 = vsel %vm1582, %v1660, %v1448
      %v1693 = vsel %vm1582, %v1661, %v1450
      %v1694 = vsel %vm1582, %v1662, %v1452
      %v1695 = vsel %vm1582, %v1663, %v1454
      %v1696 = vsel %vm1582, %v1664, %v1456
      %v1697 = vsel %vm1582, %v1665, %v1458
      %v1698 = vsel %vm1582, %v1666, %v1460
      %v1699 = vsel %vm1582, %v1667, %v1462
      %v1700 = vsel %vm1582, %v1668, %v1464
      %v1701 = vsel %vm1582, %v1669, %v1466
      %v1702 = vsel %vm1582, %v1670, %v1468
      %v1703 = vsel %vm1582, %v1671, %v1470
      %v1704 = vsel %vm1582, %v1672, %v1472
      %v1705 = vsel %vm1582, %v1673, %v1474
      %v1706 = vsel %vm1582, %v1674, %v1476
      %v1707 = vsel %vm1582, %v1675, %v1478
      %v1708 = vsel %vm1582, %v1676, %v1480
      %v1709 = vsel %vm1582, %v1677, %v1482
      %v1710 = vsel %vm1582, %v1678, %v1484
      %v1711 = vpack.c.bf16 %v1584, %v1583
      %v1712 = vpack.c.bf16 %v1680, %v1679
      %v1713 = vpack.c.bf16 %v718, %v717
      %v1714 = vpack.c.bf16 %v1586, %v1585
      %v1715 = vpack.c.bf16 %v1682, %v1681
      %v1716 = vpack.c.bf16 %v720, %v719
      %v1717 = vpack.c.bf16 %v1588, %v1587
      %v1718 = vpack.c.bf16 %v1684, %v1683
      %v1719 = vpack.c.bf16 %v722, %v721
      %v1720 = vpack.c.bf16 %v1590, %v1589
      %v1721 = vpack.c.bf16 %v1686, %v1685
      %v1722 = vpack.c.bf16 %v724, %v723
      %v1723 = vpack.c.bf16 %v1592, %v1591
      %v1724 = vpack.c.bf16 %v1688, %v1687
      %v1725 = vpack.c.bf16 %v726, %v725
      %v1726 = vpack.c.bf16 %v1594, %v1593
      %v1727 = vpack.c.bf16 %v1690, %v1689
      %v1728 = vpack.c.bf16 %v728, %v727
      %v1729 = vpack.c.bf16 %v1596, %v1595
      %v1730 = vpack.c.bf16 %v1692, %v1691
      %v1731 = vpack.c.bf16 %v730, %v729
      %v1732 = vpack.c.bf16 %v1598, %v1597
      %v1733 = vpack.c.bf16 %v1694, %v1693
      %v1734 = vpack.c.bf16 %v732, %v731
      %v1735 = vpack.c.bf16 %v1600, %v1599
      %v1736 = vpack.c.bf16 %v1696, %v1695
      %v1737 = vpack.c.bf16 %v734, %v733
      %v1738 = vpack.c.bf16 %v1602, %v1601
      %v1739 = vpack.c.bf16 %v1698, %v1697
      %v1740 = vpack.c.bf16 %v736, %v735
      %v1741 = vpack.c.bf16 %v1604, %v1603
      %v1742 = vpack.c.bf16 %v1700, %v1699
      %v1743 = vpack.c.bf16 %v738, %v737
      %v1744 = vpack.c.bf16 %v1606, %v1605
      %v1745 = vpack.c.bf16 %v1702, %v1701
      %v1746 = vpack.c.bf16 %v740, %v739
      %v1747 = vpack.c.bf16 %v1608, %v1607
      %v1748 = vpack.c.bf16 %v1704, %v1703
      %v1749 = vpack.c.bf16 %v742, %v741
      %v1750 = vpack.c.bf16 %v1610, %v1609
      %v1751 = vpack.c.bf16 %v1706, %v1705
      %v1752 = vpack.c.bf16 %v744, %v743
      %v1753 = vpack.c.bf16 %v1612, %v1611
      %v1754 = vpack.c.bf16 %v1708, %v1707
      %v1755 = vpack.c.bf16 %v746, %v745
      %v1756 = vpack.c.bf16 %v1614, %v1613
      %v1757 = vpack.c.bf16 %v1710, %v1709
      %v1758 = vpack.c.bf16 %v748, %v747
      %v1759 = vld [vmem:[%s3] sm:$0xf]
      %v1760 = vld [vmem:[%s3 + $0x4] sm:$0xf]
      %v1761 = vld [vmem:[%s3 + $0x8] sm:$0xf]
      %v1762 = vld [vmem:[%s3 + $0xc] sm:$0xf]
      %v1763 = vld [vmem:[%s3 + $0x10] sm:$0xf]
      %v1764 = vld [vmem:[%s3 + $0x14] sm:$0xf]
      %v1765 = vld [vmem:[%s3 + $0x18] sm:$0xf]
      %v1766 = vld [vmem:[%s3 + $0x1c] sm:$0xf]
      %v1767 = vld [vmem:[%s3 + $0x20] sm:$0xf]
      %v1768 = vld [vmem:[%s3 + $0x24] sm:$0xf]
      %v1769 = vld [vmem:[%s3 + $0x28] sm:$0xf]
      %v1770 = vld [vmem:[%s3 + $0x2c] sm:$0xf]
      %v1771 = vld [vmem:[%s3 + $0x30] sm:$0xf]
      %v1772 = vld [vmem:[%s3 + $0x34] sm:$0xf]
      %v1773 = vld [vmem:[%s3 + $0x38] sm:$0xf]
      %v1774 = vld [vmem:[%s3 + $0x3c] sm:$0xf]
      %v1775 = vld [vmem:[%s3 + $0x40] sm:$0xf]
      %v1776 = vld [vmem:[%s3 + $0x44] sm:$0xf]
      %v1777 = vld [vmem:[%s3 + $0x48] sm:$0xf]
      %v1778 = vld [vmem:[%s3 + $0x4c] sm:$0xf]
      %v1779 = vld [vmem:[%s3 + $0x50] sm:$0xf]
      %v1780 = vld [vmem:[%s3 + $0x54] sm:$0xf]
      %v1781 = vld [vmem:[%s3 + $0x58] sm:$0xf]
      %v1782 = vld [vmem:[%s3 + $0x5c] sm:$0xf]
      %v1783 = vld [vmem:[%s3 + $0x60] sm:$0xf]
      %v1784 = vld [vmem:[%s3 + $0x64] sm:$0xf]
      %v1785 = vld [vmem:[%s3 + $0x68] sm:$0xf]
      %v1786 = vld [vmem:[%s3 + $0x6c] sm:$0xf]
      %v1787 = vld [vmem:[%s3 + $0x70] sm:$0xf]
      %v1788 = vld [vmem:[%s3 + $0x74] sm:$0xf]
      %v1789 = vld [vmem:[%s3 + $0x78] sm:$0xf]
      %v1790 = vld [vmem:[%s3 + $0x7c] sm:$0xf]
      %v1791 = vld [vmem:[%s3 + $0x80] sm:$0xf]
      %v1792 = vld [vmem:[%s3 + $0x84] sm:$0xf]
      %v1793 = vld [vmem:[%s3 + $0x88] sm:$0xf]
      %v1794 = vld [vmem:[%s3 + $0x8c] sm:$0xf]
      %v1831 = vunpack.c.l.b16 %v1759
      %v1832 = vunpack.c.l.b16 %v1760
      %v1833 = vunpack.c.l.b16 %v1761
      %v1834 = vunpack.c.l.b16 %v1762
      %v1835 = vunpack.c.l.b16 %v1763
      %v1836 = vunpack.c.l.b16 %v1764
      %v1837 = vunpack.c.l.b16 %v1765
      %v1838 = vunpack.c.l.b16 %v1766
      %v1839 = vunpack.c.l.b16 %v1767
      %v1840 = vunpack.c.l.b16 %v1768
      %v1841 = vunpack.c.l.b16 %v1769
      %v1842 = vunpack.c.l.b16 %v1770
      %v1843 = vunpack.c.l.b16 %v1771
      %v1844 = vunpack.c.l.b16 %v1772
      %v1845 = vunpack.c.l.b16 %v1773
      %v1846 = vunpack.c.l.b16 %v1774
      %v1847 = vunpack.c.l.b16 %v1775
      %v1848 = vunpack.c.l.b16 %v1776
      %v1849 = vunpack.c.l.b16 %v1777
      %v1850 = vunpack.c.l.b16 %v1778
      %v1851 = vunpack.c.l.b16 %v1779
      %v1852 = vunpack.c.l.b16 %v1780
      %v1853 = vunpack.c.l.b16 %v1781
      %v1854 = vunpack.c.l.b16 %v1782
      %v1855 = vunpack.c.l.b16 %v1783
      %v1856 = vunpack.c.l.b16 %v1784
      %v1857 = vunpack.c.l.b16 %v1785
      %v1858 = vunpack.c.l.b16 %v1786
      %v1859 = vunpack.c.l.b16 %v1787
      %v1860 = vunpack.c.l.b16 %v1788
      %v1861 = vunpack.c.l.b16 %v1789
      %v1862 = vunpack.c.l.b16 %v1790
      %v1863 = vunpack.c.l.b16 %v1791
      %v1864 = vunpack.c.l.b16 %v1792
      %v1865 = vunpack.c.l.b16 %v1793
      %v1866 = vunpack.c.l.b16 %v1794
      %v1867 = vpack.c.b16 %v1832, %v1831
      %v1868 = vpack.c.b16 %v1834, %v1833
      %v1869 = vpack.c.b16 %v1836, %v1835
      %v1870 = vpack.c.b16 %v1838, %v1837
      %v1871 = vpack.c.b16 %v1840, %v1839
      %v1872 = vpack.c.b16 %v1842, %v1841
      %v1873 = vpack.c.b16 %v1844, %v1843
      %v1874 = vpack.c.b16 %v1846, %v1845
      %v1875 = vpack.c.b16 %v1848, %v1847
      %v1876 = vpack.c.b16 %v1850, %v1849
      %v1877 = vpack.c.b16 %v1852, %v1851
      %v1878 = vpack.c.b16 %v1854, %v1853
      %v1879 = vpack.c.b16 %v1856, %v1855
      %v1880 = vpack.c.b16 %v1858, %v1857
      %v1881 = vpack.c.b16 %v1860, %v1859
      %v1882 = vpack.c.b16 %v1862, %v1861
      %v1883 = vpack.c.b16 %v1864, %v1863
      %v1884 = vpack.c.b16 %v1866, %v1865
      %v1904 = vsel %vm427, %v1713, 0
      %v1907 = vsel %vm427, %v1716, 0
      %v1910 = vsel %vm427, %v1719, 0
      %v1913 = vsel %vm427, %v1722, 0
      %v1916 = vsel %vm427, %v1725, 0
      %v1919 = vsel %vm427, %v1728, 0
      %v1922 = vsel %vm427, %v1731, 0
      %v1925 = vsel %vm427, %v1734, 0
      %v1928 = vsel %vm427, %v1737, 0
      %v1931 = vsel %vm427, %v1740, 0
      %v1934 = vsel %vm427, %v1743, 0
      %v1937 = vsel %vm427, %v1746, 0
      %v1940 = vsel %vm427, %v1749, 0
      %v1943 = vsel %vm427, %v1752, 0
      %v1946 = vsel %vm427, %v1755, 0
      %v1949 = vsel %vm427, %v1758, 0
      %1951 = vmatprep.subr.bf16.mxu0 0
      %1952 = vmatpush1.bf16.msra.mxu0 %v1867
      %1953 = vmatprep.subr.bf16.mxu0 0
      %1954 = vmatpush1.bf16.msra.mxu0 %v1868
      %1955 = vmatprep.subr.bf16.mxu0 0
      %1956 = vmatpush1.bf16.msra.mxu0 %v1869
      %1957 = vmatprep.subr.bf16.mxu0 0
      %1958 = vmatpush1.bf16.msra.mxu0 %v1870
      %1959 = vmatprep.subr.bf16.mxu0 0
      %1960 = vmatpush1.bf16.msra.mxu0 %v1871
      %1961 = vmatprep.subr.bf16.mxu0 0
      %1962 = vmatpush1.bf16.msra.mxu0 %v1872
      %1963 = vmatprep.subr.bf16.mxu0 0
      %1964 = vmatpush1.bf16.msra.mxu0 %v1873
      %1965 = vmatprep.subr.bf16.mxu0 0
      %1966 = vmatpush1.bf16.msra.mxu0 %v1874
      %1967 = vmatprep.subr.bf16.mxu0 0
      %1968 = vmatpush1.bf16.msra.mxu0 %v1875
      %1969 = vmatprep.subr.bf16.mxu0 0
      %1970 = vmatpush1.bf16.msra.mxu0 %v1876
      %1971 = vmatprep.subr.bf16.mxu0 0
      %1972 = vmatpush1.bf16.msra.mxu0 %v1877
      %1973 = vmatprep.subr.bf16.mxu0 0
      %1974 = vmatpush1.bf16.msra.mxu0 %v1878
      %1975 = vmatprep.subr.bf16.mxu0 0
      %1976 = vmatpush1.bf16.msra.mxu0 %v1879
      %1977 = vmatprep.subr.bf16.mxu0 0
      %1978 = vmatpush1.bf16.msra.mxu0 %v1880
      %1979 = vmatprep.subr.bf16.mxu0 0
      %1980 = vmatpush1.bf16.msra.mxu0 %v1881
      %1981 = vmatprep.subr.bf16.mxu0 0
      %1982 = vmatpush1.bf16.msra.mxu0 %v1882
      %1983 = vmatprep.mubr.bf16.mxu0 %v1712
      %1984 = vmatmul.mubr.bf16.gmra.mrb[0].mxu0 %v1711
      %v1985 = vpop.f32.mrb[0].mxu0
      %v1986 = vadd.f32 0.0, %v1985
      %v1987 = vpop.f32.mrb[0].mxu0
      %v1988 = vpop.f32.mrb[0].mxu0
      %v1989 = vadd.f32 0.0, %v1988
      %v1990 = vpop.f32.mrb[0].mxu0
      %1991 = vmatprep.mubr.bf16.mxu0 %v1715
      %1992 = vmatmul.mubr.bf16.gmra.mrb[0].mxu0 %v1714
      %v1993 = vpop.f32.mrb[0].mxu0
      %v1994 = vadd.f32 0.0, %v1993
      %v1995 = vpop.f32.mrb[0].mxu0
      %v1996 = vpop.f32.mrb[0].mxu0
      %v1997 = vadd.f32 0.0, %v1996
      %v1998 = vpop.f32.mrb[0].mxu0
      %1999 = vmatprep.mubr.bf16.mxu0 %v1718
      %2000 = vmatmul.mubr.bf16.gmra.mrb[0].mxu0 %v1717
      %v2001 = vpop.f32.mrb[0].mxu0
      %v2002 = vadd.f32 0.0, %v2001
      %v2003 = vpop.f32.mrb[0].mxu0
      %v2004 = vpop.f32.mrb[0].mxu0
      %v2005 = vadd.f32 0.0, %v2004
      %v2006 = vpop.f32.mrb[0].mxu0
      %2007 = vmatprep.mubr.bf16.mxu0 %v1721
      %2008 = vmatmul.mubr.bf16.gmra.mrb[0].mxu0 %v1720
      %v2009 = vpop.f32.mrb[0].mxu0
      %v2010 = vadd.f32 0.0, %v2009
      %v2011 = vpop.f32.mrb[0].mxu0
      %v2012 = vpop.f32.mrb[0].mxu0
      %v2013 = vadd.f32 0.0, %v2012
      %v2014 = vpop.f32.mrb[0].mxu0
      %2015 = vmatprep.mubr.bf16.mxu0 %v1724
      %2016 = vmatmul.mubr.bf16.gmra.mrb[0].mxu0 %v1723
      %v2017 = vpop.f32.mrb[0].mxu0
      %v2018 = vadd.f32 0.0, %v2017
      %v2019 = vpop.f32.mrb[0].mxu0
      %v2020 = vpop.f32.mrb[0].mxu0
      %v2021 = vadd.f32 0.0, %v2020
      %v2022 = vpop.f32.mrb[0].mxu0
      %2023 = vmatprep.mubr.bf16.mxu0 %v1727
      %2024 = vmatmul.mubr.bf16.gmra.mrb[0].mxu0 %v1726
      %v2025 = vpop.f32.mrb[0].mxu0
      %v2026 = vadd.f32 0.0, %v2025
      %v2027 = vpop.f32.mrb[0].mxu0
      %v2028 = vpop.f32.mrb[0].mxu0
      %v2029 = vadd.f32 0.0, %v2028
      %v2030 = vpop.f32.mrb[0].mxu0
      %2031 = vmatprep.mubr.bf16.mxu0 %v1730
      %2032 = vmatmul.mubr.bf16.gmra.mrb[0].mxu0 %v1729
      %v2033 = vpop.f32.mrb[0].mxu0
      %v2034 = vadd.f32 0.0, %v2033
      %v2035 = vpop.f32.mrb[0].mxu0
      %v2036 = vpop.f32.mrb[0].mxu0
      %v2037 = vadd.f32 0.0, %v2036
      %v2038 = vpop.f32.mrb[0].mxu0
      %2039 = vmatprep.mubr.bf16.mxu0 %v1733
      %2040 = vmatmul.mubr.bf16.gmra.mrb[0].mxu0 %v1732
      %v2041 = vpop.f32.mrb[0].mxu0
      %v2042 = vadd.f32 0.0, %v2041
      %v2043 = vpop.f32.mrb[0].mxu0
      %v2044 = vpop.f32.mrb[0].mxu0
      %v2045 = vadd.f32 0.0, %v2044
      %v2046 = vpop.f32.mrb[0].mxu0
      %2047 = vmatprep.mubr.bf16.mxu0 %v1736
      %2048 = vmatmul.mubr.bf16.gmra.mrb[0].mxu0 %v1735
      %v2049 = vpop.f32.mrb[0].mxu0
      %v2050 = vadd.f32 0.0, %v2049
      %v2051 = vpop.f32.mrb[0].mxu0
      %v2052 = vpop.f32.mrb[0].mxu0
      %v2053 = vadd.f32 0.0, %v2052
      %v2054 = vpop.f32.mrb[0].mxu0
      %2055 = vmatprep.mubr.bf16.mxu0 %v1739
      %2056 = vmatmul.mubr.bf16.gmra.mrb[0].mxu0 %v1738
      %v2057 = vpop.f32.mrb[0].mxu0
      %v2058 = vadd.f32 0.0, %v2057
      %v2059 = vpop.f32.mrb[0].mxu0
      %v2060 = vpop.f32.mrb[0].mxu0
      %v2061 = vadd.f32 0.0, %v2060
      %v2062 = vpop.f32.mrb[0].mxu0
      %2063 = vmatprep.mubr.bf16.mxu0 %v1742
      %2064 = vmatmul.mubr.bf16.gmra.mrb[0].mxu0 %v1741
      %v2065 = vpop.f32.mrb[0].mxu0
      %v2066 = vadd.f32 0.0, %v2065
      %v2067 = vpop.f32.mrb[0].mxu0
      %v2068 = vpop.f32.mrb[0].mxu0
      %v2069 = vadd.f32 0.0, %v2068
      %v2070 = vpop.f32.mrb[0].mxu0
      %2071 = vmatprep.mubr.bf16.mxu0 %v1745
      %2072 = vmatmul.mubr.bf16.gmra.mrb[0].mxu0 %v1744
      %v2073 = vpop.f32.mrb[0].mxu0
      %v2074 = vadd.f32 0.0, %v2073
      %v2075 = vpop.f32.mrb[0].mxu0
      %v2076 = vpop.f32.mrb[0].mxu0
      %v2077 = vadd.f32 0.0, %v2076
      %v2078 = vpop.f32.mrb[0].mxu0
      %2079 = vmatprep.mubr.bf16.mxu0 %v1748
      %2080 = vmatmul.mubr.bf16.gmra.mrb[0].mxu0 %v1747
      %v2081 = vpop.f32.mrb[0].mxu0
      %v2082 = vadd.f32 0.0, %v2081
      %v2083 = vpop.f32.mrb[0].mxu0
      %v2084 = vpop.f32.mrb[0].mxu0
      %v2085 = vadd.f32 0.0, %v2084
      %v2086 = vpop.f32.mrb[0].mxu0
      %2087 = vmatprep.mubr.bf16.mxu0 %v1751
      %2088 = vmatmul.mubr.bf16.gmra.mrb[0].mxu0 %v1750
      %v2089 = vpop.f32.mrb[0].mxu0
      %v2090 = vadd.f32 0.0, %v2089
      %v2091 = vpop.f32.mrb[0].mxu0
      %v2092 = vpop.f32.mrb[0].mxu0
      %v2093 = vadd.f32 0.0, %v2092
      %v2094 = vpop.f32.mrb[0].mxu0
      %2095 = vmatprep.mubr.bf16.mxu0 %v1754
      %2096 = vmatmul.mubr.bf16.gmra.mrb[0].mxu0 %v1753
      %v2097 = vpop.f32.mrb[0].mxu0
      %v2098 = vadd.f32 0.0, %v2097
      %v2099 = vpop.f32.mrb[0].mxu0
      %v2100 = vpop.f32.mrb[0].mxu0
      %v2101 = vadd.f32 0.0, %v2100
      %v2102 = vpop.f32.mrb[0].mxu0
      %2103 = vmatprep.mubr.bf16.mxu0 %v1757
      %2104 = vmatmul.mubr.bf16.gmra.mrb[0].mxu0 %v1756
      %v2105 = vpop.f32.mrb[0].mxu0
      %v2106 = vadd.f32 0.0, %v2105
      %v2107 = vpop.f32.mrb[0].mxu0
      %v2108 = vpop.f32.mrb[0].mxu0
      %v2109 = vadd.f32 0.0, %v2108
      %v2110 = vpop.f32.mrb[0].mxu0
      %2111 = vdwg.mxu0
      %2112 = vmatprep.subr.bf16.mxu0 0
      %2113 = vmatpush1.bf16.msra.mxu0 %v1883
      %2114 = vmatprep.subr.bf16.mxu0 0
      %2115 = vmatpush1.bf16.msra.mxu0 %v1884
      %2116 = vmatprep.subr.bf16.mxu0 0
      %2117 = vmatpush1.bf16.msra.mxu0 0
      %2118 = vmatprep.subr.bf16.mxu0 0
      %2119 = vmatpush1.bf16.msra.mxu0 0
      %2120 = vmatprep.subr.bf16.mxu0 0
      %2121 = vmatpush1.bf16.msra.mxu0 0
      %2122 = vmatprep.subr.bf16.mxu0 0
      %2123 = vmatpush1.bf16.msra.mxu0 0
      %2124 = vmatprep.subr.bf16.mxu0 0
      %2125 = vmatpush1.bf16.msra.mxu0 0
      %2126 = vmatprep.subr.bf16.mxu0 0
      %2127 = vmatpush1.bf16.msra.mxu0 0
      %2128 = vmatprep.subr.bf16.mxu0 0
      %2129 = vmatpush1.bf16.msra.mxu0 0
      %2130 = vmatprep.subr.bf16.mxu0 0
      %2131 = vmatpush1.bf16.msra.mxu0 0
      %2132 = vmatprep.subr.bf16.mxu0 0
      %2133 = vmatpush1.bf16.msra.mxu0 0
      %2134 = vmatprep.subr.bf16.mxu0 0
      %2135 = vmatpush1.bf16.msra.mxu0 0
      %2136 = vmatprep.subr.bf16.mxu0 0
      %2137 = vmatpush1.bf16.msra.mxu0 0
      %2138 = vmatprep.subr.bf16.mxu0 0
      %2139 = vmatpush1.bf16.msra.mxu0 0
      %2140 = vmatprep.subr.bf16.mxu0 0
      %2141 = vmatpush1.bf16.msra.mxu0 0
      %2142 = vmatprep.subr.bf16.mxu0 0
      %2143 = vmatpush1.bf16.msra.mxu0 0
      %2144 = vmatprep.mubr.bf16.mxu0 0
      %2145 = vmatmul.mubr.bf16.gmra.mrb[0].mxu0 %v1904
      %v2146 = vpop.f32.mrb[0].mxu0
      %v2147 = vadd.f32 %v1986, %v2146
      %v2148 = vpop.f32.mrb[0].mxu0
      %v2149 = vpop.f32.mrb[0].mxu0
      %v2150 = vadd.f32 %v1989, %v2149
      %v2151 = vpop.f32.mrb[0].mxu0
      %2152 = vmatprep.mubr.bf16.mxu0 0
      %2153 = vmatmul.mubr.bf16.gmra.mrb[0].mxu0 %v1907
      %v2154 = vpop.f32.mrb[0].mxu0
      %v2155 = vadd.f32 %v1994, %v2154
      %v2156 = vpop.f32.mrb[0].mxu0
      %v2157 = vpop.f32.mrb[0].mxu0
      %v2158 = vadd.f32 %v1997, %v2157
      %v2159 = vpop.f32.mrb[0].mxu0
      %2160 = vmatprep.mubr.bf16.mxu0 0
      %2161 = vmatmul.mubr.bf16.gmra.mrb[0].mxu0 %v1910
      %v2162 = vpop.f32.mrb[0].mxu0
      %v2163 = vadd.f32 %v2002, %v2162
      %v2164 = vpop.f32.mrb[0].mxu0
      %v2165 = vpop.f32.mrb[0].mxu0
      %v2166 = vadd.f32 %v2005, %v2165
      %v2167 = vpop.f32.mrb[0].mxu0
      %2168 = vmatprep.mubr.bf16.mxu0 0
      %2169 = vmatmul.mubr.bf16.gmra.mrb[0].mxu0 %v1913
      %v2170 = vpop.f32.mrb[0].mxu0
      %v2171 = vadd.f32 %v2010, %v2170
      %v2172 = vpop.f32.mrb[0].mxu0
      %v2173 = vpop.f32.mrb[0].mxu0
      %v2174 = vadd.f32 %v2013, %v2173
      %v2175 = vpop.f32.mrb[0].mxu0
      %2176 = vmatprep.mubr.bf16.mxu0 0
      %2177 = vmatmul.mubr.bf16.gmra.mrb[0].mxu0 %v1916
      %v2178 = vpop.f32.mrb[0].mxu0
      %v2179 = vadd.f32 %v2018, %v2178
      %v2180 = vpop.f32.mrb[0].mxu0
      %v2181 = vpop.f32.mrb[0].mxu0
      %v2182 = vadd.f32 %v2021, %v2181
      %v2183 = vpop.f32.mrb[0].mxu0
      %2184 = vmatprep.mubr.bf16.mxu0 0
      %2185 = vmatmul.mubr.bf16.gmra.mrb[0].mxu0 %v1919
      %v2186 = vpop.f32.mrb[0].mxu0
      %v2187 = vadd.f32 %v2026, %v2186
      %v2188 = vpop.f32.mrb[0].mxu0
      %v2189 = vpop.f32.mrb[0].mxu0
      %v2190 = vadd.f32 %v2029, %v2189
      %v2191 = vpop.f32.mrb[0].mxu0
      %2192 = vmatprep.mubr.bf16.mxu0 0
      %2193 = vmatmul.mubr.bf16.gmra.mrb[0].mxu0 %v1922
      %v2194 = vpop.f32.mrb[0].mxu0
      %v2195 = vadd.f32 %v2034, %v2194
      %v2196 = vpop.f32.mrb[0].mxu0
      %v2197 = vpop.f32.mrb[0].mxu0
      %v2198 = vadd.f32 %v2037, %v2197
      %v2199 = vpop.f32.mrb[0].mxu0
      %2200 = vmatprep.mubr.bf16.mxu0 0
      %2201 = vmatmul.mubr.bf16.gmra.mrb[0].mxu0 %v1925
      %v2202 = vpop.f32.mrb[0].mxu0
      %v2203 = vadd.f32 %v2042, %v2202
      %v2204 = vpop.f32.mrb[0].mxu0
      %v2205 = vpop.f32.mrb[0].mxu0
      %v2206 = vadd.f32 %v2045, %v2205
      %v2207 = vpop.f32.mrb[0].mxu0
      %2208 = vmatprep.mubr.bf16.mxu0 0
      %2209 = vmatmul.mubr.bf16.gmra.mrb[0].mxu0 %v1928
      %v2210 = vpop.f32.mrb[0].mxu0
      %v2211 = vadd.f32 %v2050, %v2210
      %v2212 = vpop.f32.mrb[0].mxu0
      %v2213 = vpop.f32.mrb[0].mxu0
      %v2214 = vadd.f32 %v2053, %v2213
      %v2215 = vpop.f32.mrb[0].mxu0
      %2216 = vmatprep.mubr.bf16.mxu0 0
      %2217 = vmatmul.mubr.bf16.gmra.mrb[0].mxu0 %v1931
      %v2218 = vpop.f32.mrb[0].mxu0
      %v2219 = vadd.f32 %v2058, %v2218
      %v2220 = vpop.f32.mrb[0].mxu0
      %v2221 = vpop.f32.mrb[0].mxu0
      %v2222 = vadd.f32 %v2061, %v2221
      %v2223 = vpop.f32.mrb[0].mxu0
      %2224 = vmatprep.mubr.bf16.mxu0 0
      %2225 = vmatmul.mubr.bf16.gmra.mrb[0].mxu0 %v1934
      %v2226 = vpop.f32.mrb[0].mxu0
      %v2227 = vadd.f32 %v2066, %v2226
      %v2228 = vpop.f32.mrb[0].mxu0
      %v2229 = vpop.f32.mrb[0].mxu0
      %v2230 = vadd.f32 %v2069, %v2229
      %v2231 = vpop.f32.mrb[0].mxu0
      %2232 = vmatprep.mubr.bf16.mxu0 0
      %2233 = vmatmul.mubr.bf16.gmra.mrb[0].mxu0 %v1937
      %v2234 = vpop.f32.mrb[0].mxu0
      %v2235 = vadd.f32 %v2074, %v2234
      %v2236 = vpop.f32.mrb[0].mxu0
      %v2237 = vpop.f32.mrb[0].mxu0
      %v2238 = vadd.f32 %v2077, %v2237
      %v2239 = vpop.f32.mrb[0].mxu0
      %2240 = vmatprep.mubr.bf16.mxu0 0
      %2241 = vmatmul.mubr.bf16.gmra.mrb[0].mxu0 %v1940
      %v2242 = vpop.f32.mrb[0].mxu0
      %v2243 = vadd.f32 %v2082, %v2242
      %v2244 = vpop.f32.mrb[0].mxu0
      %v2245 = vpop.f32.mrb[0].mxu0
      %v2246 = vadd.f32 %v2085, %v2245
      %v2247 = vpop.f32.mrb[0].mxu0
      %2248 = vmatprep.mubr.bf16.mxu0 0
      %2249 = vmatmul.mubr.bf16.gmra.mrb[0].mxu0 %v1943
      %v2250 = vpop.f32.mrb[0].mxu0
      %v2251 = vadd.f32 %v2090, %v2250
      %v2252 = vpop.f32.mrb[0].mxu0
      %v2253 = vpop.f32.mrb[0].mxu0
      %v2254 = vadd.f32 %v2093, %v2253
      %v2255 = vpop.f32.mrb[0].mxu0
      %2256 = vmatprep.mubr.bf16.mxu0 0
      %2257 = vmatmul.mubr.bf16.gmra.mrb[0].mxu0 %v1946
      %v2258 = vpop.f32.mrb[0].mxu0
      %v2259 = vadd.f32 %v2098, %v2258
      %v2260 = vpop.f32.mrb[0].mxu0
      %v2261 = vpop.f32.mrb[0].mxu0
      %v2262 = vadd.f32 %v2101, %v2261
      %v2263 = vpop.f32.mrb[0].mxu0
      %2264 = vmatprep.mubr.bf16.mxu0 0
      %2265 = vmatmul.mubr.bf16.gmra.mrb[0].mxu0 %v1949
      %v2266 = vpop.f32.mrb[0].mxu0
      %v2267 = vadd.f32 %v2106, %v2266
      %v2268 = vpop.f32.mrb[0].mxu0
      %v2269 = vpop.f32.mrb[0].mxu0
      %v2270 = vadd.f32 %v2109, %v2269
      %v2271 = vpop.f32.mrb[0].mxu0
      %2272 = vdwg.mxu0
      %2273 = vst.msk [vmem:[%s231] sm:$0xff] %vm427, %v2147
      %2274 = vst.msk [vmem:[%s231 + $0x8] sm:$0xff] %vm427, %v2150
      %2275 = vst.msk [vmem:[%s231 + $0x10] sm:$0xff] %vm427, %v2155
      %2276 = vst.msk [vmem:[%s231 + $0x18] sm:$0xff] %vm427, %v2158
      %2277 = vst.msk [vmem:[%s231 + $0x20] sm:$0xff] %vm427, %v2163
      %2278 = vst.msk [vmem:[%s231 + $0x28] sm:$0xff] %vm427, %v2166
      %2279 = vst.msk [vmem:[%s231 + $0x30] sm:$0xff] %vm427, %v2171
      %2280 = vst.msk [vmem:[%s231 + $0x38] sm:$0xff] %vm427, %v2174
      %2281 = vst.msk [vmem:[%s231 + $0x40] sm:$0xff] %vm427, %v2179
      %2282 = vst.msk [vmem:[%s231 + $0x48] sm:$0xff] %vm427, %v2182
      %2283 = vst.msk [vmem:[%s231 + $0x50] sm:$0xff] %vm427, %v2187
      %2284 = vst.msk [vmem:[%s231 + $0x58] sm:$0xff] %vm427, %v2190
      %2285 = vst.msk [vmem:[%s231 + $0x60] sm:$0xff] %vm427, %v2195
      %2286 = vst.msk [vmem:[%s231 + $0x68] sm:$0xff] %vm427, %v2198
      %2287 = vst.msk [vmem:[%s231 + $0x70] sm:$0xff] %vm427, %v2203
      %2288 = vst.msk [vmem:[%s231 + $0x78] sm:$0xff] %vm427, %v2206
      %2289 = vst.msk [vmem:[%s231 + $0x80] sm:$0xff] %vm427, %v2211
      %2290 = vst.msk [vmem:[%s231 + $0x88] sm:$0xff] %vm427, %v2214
      %2291 = vst.msk [vmem:[%s231 + $0x90] sm:$0xff] %vm427, %v2219
      %2292 = vst.msk [vmem:[%s231 + $0x98] sm:$0xff] %vm427, %v2222
      %2293 = vst.msk [vmem:[%s231 + $0xa0] sm:$0xff] %vm427, %v2227
      %2294 = vst.msk [vmem:[%s231 + $0xa8] sm:$0xff] %vm427, %v2230
      %2295 = vst.msk [vmem:[%s231 + $0xb0] sm:$0xff] %vm427, %v2235
      %2296 = vst.msk [vmem:[%s231 + $0xb8] sm:$0xff] %vm427, %v2238
      %2297 = vst.msk [vmem:[%s231 + $0xc0] sm:$0xff] %vm427, %v2243
      %2298 = vst.msk [vmem:[%s231 + $0xc8] sm:$0xff] %vm427, %v2246
      %2299 = vst.msk [vmem:[%s231 + $0xd0] sm:$0xff] %vm427, %v2251
      %2300 = vst.msk [vmem:[%s231 + $0xd8] sm:$0xff] %vm427, %v2254
      %2301 = vst.msk [vmem:[%s231 + $0xe0] sm:$0xff] %vm427, %v2259
      %2302 = vst.msk [vmem:[%s231 + $0xe8] sm:$0xff] %vm427, %v2262
      %2303 = vst.msk [vmem:[%s231 + $0xf0] sm:$0xff] %vm427, %v2267
      %2304 = vst.msk [vmem:[%s231 + $0xf8] sm:$0xff] %vm427, %v2270
      %v2305 = vsel %vm427, %v2147, 0.0
      %v2306 = vsel %vm427, %v2150, 0.0
      %v2307 = vadd.f32 %v2305, %v2306
      %v2308 = vsel %vm427, %v2155, 0.0
      %v2309 = vadd.f32 %v2307, %v2308
      %v2310 = vsel %vm427, %v2158, 0.0
      %v2311 = vadd.f32 %v2309, %v2310
      %v2312 = vsel %vm427, %v2163, 0.0
      %v2313 = vadd.f32 %v2311, %v2312
      %v2314 = vsel %vm427, %v2166, 0.0
      %v2315 = vadd.f32 %v2313, %v2314
      %v2316 = vsel %vm427, %v2171, 0.0
      %v2317 = vadd.f32 %v2315, %v2316
      %v2318 = vsel %vm427, %v2174, 0.0
      %v2319 = vadd.f32 %v2317, %v2318
      %v2320 = vsel %vm427, %v2179, 0.0
      %v2321 = vadd.f32 %v2319, %v2320
      %v2322 = vsel %vm427, %v2182, 0.0
      %v2323 = vadd.f32 %v2321, %v2322
      %v2324 = vsel %vm427, %v2187, 0.0
      %v2325 = vadd.f32 %v2323, %v2324
      %v2326 = vsel %vm427, %v2190, 0.0
      %v2327 = vadd.f32 %v2325, %v2326
      %v2328 = vsel %vm427, %v2195, 0.0
      %v2329 = vadd.f32 %v2327, %v2328
      %v2330 = vsel %vm427, %v2198, 0.0
      %v2331 = vadd.f32 %v2329, %v2330
      %v2332 = vsel %vm427, %v2203, 0.0
      %v2333 = vadd.f32 %v2331, %v2332
      %v2334 = vsel %vm427, %v2206, 0.0
      %v2335 = vadd.f32 %v2333, %v2334
      %v2336 = vsel %vm427, %v2211, 0.0
      %v2337 = vadd.f32 %v2335, %v2336
      %v2338 = vsel %vm427, %v2214, 0.0
      %v2339 = vadd.f32 %v2337, %v2338
      %v2340 = vsel %vm427, %v2219, 0.0
      %v2341 = vadd.f32 %v2339, %v2340
      %v2342 = vsel %vm427, %v2222, 0.0
      %v2343 = vadd.f32 %v2341, %v2342
      %v2344 = vsel %vm427, %v2227, 0.0
      %v2345 = vadd.f32 %v2343, %v2344
      %v2346 = vsel %vm427, %v2230, 0.0
      %v2347 = vadd.f32 %v2345, %v2346
      %v2348 = vsel %vm427, %v2235, 0.0
      %v2349 = vadd.f32 %v2347, %v2348
      %v2350 = vsel %vm427, %v2238, 0.0
      %v2351 = vadd.f32 %v2349, %v2350
      %v2352 = vsel %vm427, %v2243, 0.0
      %v2353 = vadd.f32 %v2351, %v2352
      %v2354 = vsel %vm427, %v2246, 0.0
      %v2355 = vadd.f32 %v2353, %v2354
      %v2356 = vsel %vm427, %v2251, 0.0
      %v2357 = vadd.f32 %v2355, %v2356
      %v2358 = vsel %vm427, %v2254, 0.0
      %v2359 = vadd.f32 %v2357, %v2358
      %v2360 = vsel %vm427, %v2259, 0.0
      %v2361 = vadd.f32 %v2359, %v2360
      %v2362 = vsel %vm427, %v2262, 0.0
      %v2363 = vadd.f32 %v2361, %v2362
      %v2364 = vsel %vm427, %v2267, 0.0
      %v2365 = vadd.f32 %v2363, %v2364
      %v2366 = vsel %vm427, %v2270, 0.0
      %v2367 = vadd.f32 %v2365, %v2366
      %v2368 = vrot.slane %v2367, 4
      %v2369 = vadd.f32 %v2367, %v2368
      %v2370 = vrot.slane %v2369, 2
      %v2371 = vadd.f32 %v2369, %v2370
      %v2372 = vrot.slane %v2371, 1
      %v2373 = vadd.f32 %v2371, %v2372
      %v2374 = vmul.f32 %v2147, %v2147
      %v2375 = vmul.f32 %v2150, %v2150
      %v2376 = vmul.f32 %v2155, %v2155
      %v2377 = vmul.f32 %v2158, %v2158
      %v2378 = vmul.f32 %v2163, %v2163
      %v2379 = vmul.f32 %v2166, %v2166
      %v2380 = vmul.f32 %v2171, %v2171
      %v2381 = vmul.f32 %v2174, %v2174
      %v2382 = vmul.f32 %v2179, %v2179
      %v2383 = vmul.f32 %v2182, %v2182
      %v2384 = vmul.f32 %v2187, %v2187
      %v2385 = vmul.f32 %v2190, %v2190
      %v2386 = vmul.f32 %v2195, %v2195
      %v2387 = vmul.f32 %v2198, %v2198
      %v2388 = vmul.f32 %v2203, %v2203
      %v2389 = vmul.f32 %v2206, %v2206
      %v2390 = vmul.f32 %v2211, %v2211
      %v2391 = vmul.f32 %v2214, %v2214
      %v2392 = vmul.f32 %v2219, %v2219
      %v2393 = vmul.f32 %v2222, %v2222
      %v2394 = vmul.f32 %v2227, %v2227
      %v2395 = vmul.f32 %v2230, %v2230
      %v2396 = vmul.f32 %v2235, %v2235
      %v2397 = vmul.f32 %v2238, %v2238
      %v2398 = vmul.f32 %v2243, %v2243
      %v2399 = vmul.f32 %v2246, %v2246
      %v2400 = vmul.f32 %v2251, %v2251
      %v2401 = vmul.f32 %v2254, %v2254
      %v2402 = vmul.f32 %v2259, %v2259
      %v2403 = vmul.f32 %v2262, %v2262
      %v2404 = vmul.f32 %v2267, %v2267
      %v2405 = vmul.f32 %v2270, %v2270
      %v2406 = vsel %vm427, %v2374, 0.0
      %v2407 = vsel %vm427, %v2375, 0.0
      %v2408 = vadd.f32 %v2406, %v2407
      %v2409 = vsel %vm427, %v2376, 0.0
      %v2410 = vadd.f32 %v2408, %v2409
      %v2411 = vsel %vm427, %v2377, 0.0
      %v2412 = vadd.f32 %v2410, %v2411
      %v2413 = vsel %vm427, %v2378, 0.0
      %v2414 = vadd.f32 %v2412, %v2413
      %v2415 = vsel %vm427, %v2379, 0.0
      %v2416 = vadd.f32 %v2414, %v2415
      %v2417 = vsel %vm427, %v2380, 0.0
      %v2418 = vadd.f32 %v2416, %v2417
      %v2419 = vsel %vm427, %v2381, 0.0
      %v2420 = vadd.f32 %v2418, %v2419
      %v2421 = vsel %vm427, %v2382, 0.0
      %v2422 = vadd.f32 %v2420, %v2421
      %v2423 = vsel %vm427, %v2383, 0.0
      %v2424 = vadd.f32 %v2422, %v2423
      %v2425 = vsel %vm427, %v2384, 0.0
      %v2426 = vadd.f32 %v2424, %v2425
      %v2427 = vsel %vm427, %v2385, 0.0
      %v2428 = vadd.f32 %v2426, %v2427
      %v2429 = vsel %vm427, %v2386, 0.0
      %v2430 = vadd.f32 %v2428, %v2429
      %v2431 = vsel %vm427, %v2387, 0.0
      %v2432 = vadd.f32 %v2430, %v2431
      %v2433 = vsel %vm427, %v2388, 0.0
      %v2434 = vadd.f32 %v2432, %v2433
      %v2435 = vsel %vm427, %v2389, 0.0
      %v2436 = vadd.f32 %v2434, %v2435
      %v2437 = vsel %vm427, %v2390, 0.0
      %v2438 = vadd.f32 %v2436, %v2437
      %v2439 = vsel %vm427, %v2391, 0.0
      %v2440 = vadd.f32 %v2438, %v2439
      %v2441 = vsel %vm427, %v2392, 0.0
      %v2442 = vadd.f32 %v2440, %v2441
      %v2443 = vsel %vm427, %v2393, 0.0
      %v2444 = vadd.f32 %v2442, %v2443
      %v2445 = vsel %vm427, %v2394, 0.0
      %v2446 = vadd.f32 %v2444, %v2445
      %v2447 = vsel %vm427, %v2395, 0.0
      %v2448 = vadd.f32 %v2446, %v2447
      %v2449 = vsel %vm427, %v2396, 0.0
      %v2450 = vadd.f32 %v2448, %v2449
      %v2451 = vsel %vm427, %v2397, 0.0
      %v2452 = vadd.f32 %v2450, %v2451
      %v2453 = vsel %vm427, %v2398, 0.0
      %v2454 = vadd.f32 %v2452, %v2453
      %v2455 = vsel %vm427, %v2399, 0.0
      %v2456 = vadd.f32 %v2454, %v2455
      %v2457 = vsel %vm427, %v2400, 0.0
      %v2458 = vadd.f32 %v2456, %v2457
      %v2459 = vsel %vm427, %v2401, 0.0
      %v2460 = vadd.f32 %v2458, %v2459
      %v2461 = vsel %vm427, %v2402, 0.0
      %v2462 = vadd.f32 %v2460, %v2461
      %v2463 = vsel %vm427, %v2403, 0.0
      %v2464 = vadd.f32 %v2462, %v2463
      %v2465 = vsel %vm427, %v2404, 0.0
      %v2466 = vadd.f32 %v2464, %v2465
      %v2467 = vsel %vm427, %v2405, 0.0
      %v2468 = vadd.f32 %v2466, %v2467
      %v2469 = vrot.slane %v2468, 4
      %v2470 = vadd.f32 %v2468, %v2469
      %v2471 = vrot.slane %v2470, 2
      %v2472 = vadd.f32 %v2470, %v2471
      %v2473 = vrot.slane %v2472, 1
      %v2474 = vadd.f32 %v2472, %v2473
      %vm2475 = vcmask 1040384
      %v2476 = vsel %vm2475, %v2373, %v2474
      %vm2477 = vcmask 254976
      %2478 = vst.msk [vmem:[%s235] sm:$0x3] %vm2477, %v2476
      %p2479 = scmp.lt.s32.totalorder %s17, 1
      %s2480 = scalar_select %p2479, %s17, 1
      %s2481 = smul.addr %s2480, 32
      %s2482 = smul.addr %s2481, 8
      %s2483 = scalar_lea.vmem %s4, %s2482
      %p2484 = scmp.lt.s32.totalorder %s17, 1
      %s2485 = scalar_select %p2484, %s17, 1
      %s2486 = smul.addr %s2485, 2
      %s2487 = scalar_lea.vmem %s5, %s2486
      // Predicated region
      $region41: #{bottleneck_forward.5} parent=35 // pred_check
        %p2488 = pneg %p124
      $region42: #{bottleneck_forward.5} parent=35 // pred_check_branch
        %2490 = sbr.rel (%p2488) target = $region44
      $region43: #{bottleneck_forward.5} parent=35 // pred_region
        _
      $region44: #{bottleneck_forward.5} parent=35 // pred_fallthru
        _
      // Predicated region
      $region45: #{bottleneck_forward.5} parent=35 // pred_check
        %p2491 = pneg %p150
      $region46: #{bottleneck_forward.5} parent=35 // pred_check_branch
        %2493 = sbr.rel (%p2491) target = $region48
      $region47: #{bottleneck_forward.5} parent=35 // pred_region
        _
      $region48: #{bottleneck_forward.5} parent=35 // pred_fallthru
        _
    $region36: #{bottleneck_forward.5} parent=5 // pred_fallthru
      _
    %p2494 = scmp.le.s32.totalorder 2, %s12
    // Predicated region
    $region49: #{bottleneck_forward.5} parent=5 // pred_check
      %p2495 = pneg %p2494
    $region50: #{bottleneck_forward.5} parent=5 // pred_check_branch
      %2497 = sbr.rel (%p2495) target = $region52
    $region51: #{bottleneck_forward.5} parent=5 // pred_region
      %s2498 = ssub.s32 %s12, 2
      // Predicated region
      $region53: #{bottleneck_forward.5} parent=51 // pred_check
        %p2499 = pneg %p130
      $region54: #{bottleneck_forward.5} parent=51 // pred_check_branch
        %2501 = sbr.rel (%p2499) target = $region56
      $region55: #{bottleneck_forward.5} parent=51 // pred_region
        %p2502 = scmp.lt.s32.totalorder %s18, 1
        %s2503 = scalar_select %p2502, %s18, 1
        %s2504 = smul.addr %s2503, 32
        %s2505 = smul.addr %s2504, 8
        %s2506 = scalar_lea.vmem %s4, %s2505
      $region56: #{bottleneck_forward.5} parent=51 // pred_fallthru
        _
      // Predicated region
      $region57: #{bottleneck_forward.5} parent=51 // pred_check
        %p2507 = pneg %p156
      $region58: #{bottleneck_forward.5} parent=51 // pred_check_branch
        %2509 = sbr.rel (%p2507) target = $region60
      $region59: #{bottleneck_forward.5} parent=51 // pred_region
        %p2510 = scmp.lt.s32.totalorder %s18, 1
        %s2511 = scalar_select %p2510, %s18, 1
        %s2512 = smul.addr %s2511, 2
        %s2513 = scalar_lea.vmem %s5, %s2512
      $region60: #{bottleneck_forward.5} parent=51 // pred_fallthru
        _
    $region52: #{bottleneck_forward.5} parent=5 // pred_fallthru
      _
  $region6: #{bottleneck_forward.5} parent=0 // loop_footer
    %s16 = sadd.s32 1, %s12
  $region7: #{bottleneck_forward.5} parent=0 // loop_footer_branch
    %11 = sbr.rel target = $region3
  $region8: #{bottleneck_forward.5} parent=0 // loop_exit
    _

</llo_original>
